<compile_context>
chip_gen: v6e
topology: v6e:2x2x1
jax: 0.10.0
libtpu: 0.0.40
codegen_flags: <defaults>
</compile_context>

<pallas_src>
import functools

import jax
import jax.numpy as jnp
from jax.experimental import pallas as pl
from jax.experimental.pallas import tpu as pltpu

_BN_EPS = 1e-5
_VMEM_LIMIT = 32 * 1024 * 1024


def _round_up(x, m):
    return ((x + m - 1) // m) * m


def _pick_row_tile(m):
    """Row tile tm (multiple of 16) and padded row count mp (multiple of tm).
    Guarantees >= 2 row blocks whenever m >= 32 so both v7x TCs get work."""
    if m >= 1024:
        tm = 512
    elif m >= 512:
        tm = 256
    elif m >= 256:
        tm = 128
    else:
        mp = _round_up(m, 32)
        return mp // 2, mp
    return tm, _round_up(m, tm)


# -----------------------------------------------------------------------------
# Pallas kernel 1: conv-as-GEMM (bf16 x bf16 -> f32 acc -> bf16 out) with fused
# per-output-channel BN statistics (sum, sum of squares).
# -----------------------------------------------------------------------------
def _gemm_stats_kernel_single(a_ref, b_ref, o_ref, sum_ref, sq_ref):
    # Single K step: no accumulator scratch, no gates; write once.
    acc = jnp.dot(a_ref[...], b_ref[...], preferred_element_type=jnp.float32)
    o_ref[...] = acc.astype(o_ref.dtype)
    # Padded rows are zero so they contribute nothing; the per-row-block
    # partials are reduced (and divided by the true M) outside the kernel.
    sum_ref[0] = jnp.sum(acc, axis=0, keepdims=True)
    sq_ref[0] = jnp.sum(acc * acc, axis=0, keepdims=True)


def _gemm_stats_kernel_multi(a_ref, b_ref, o_ref, sum_ref, sq_ref, acc_ref):
    k = pl.program_id(2)

    @pl.when(k == 0)
    def _():
        acc_ref[...] = jnp.zeros_like(acc_ref)

    acc_ref[...] += jnp.dot(a_ref[...], b_ref[...],
                            preferred_element_type=jnp.float32)

    @pl.when(k == pl.num_programs(2) - 1)
    def _():
        acc = acc_ref[...]
        o_ref[...] = acc.astype(o_ref.dtype)
        sum_ref[0] = jnp.sum(acc, axis=0, keepdims=True)
        sq_ref[0] = jnp.sum(acc * acc, axis=0, keepdims=True)


def conv_gemm_stats(a_bf16, b_bf16, tm):
    """(Mp, K) bf16 @ (K, N) bf16 -> (Mp, Np) bf16 with Np = round_up(N, 128),
    plus per-column f32 sum / sum-of-squares over the Mp rows."""
    mp, k_dim = a_bf16.shape
    k2, n_dim = b_bf16.shape
    assert k_dim == k2 and mp % tm == 0

    # Never run the MXU narrower than the 128-lane width: zero-pad weight
    # columns (outputs and stats of padded columns are exactly zero).
    np_ = _round_up(n_dim, 128)
    if np_ != n_dim:
        b_bf16 = jnp.pad(b_bf16, ((0, 0), (0, np_ - n_dim)))
    if np_ <= 512:
        tn = np_
    elif np_ % 256 == 0:
        tn = 256
    else:
        tn = 128

    # K: single step (no acc scratch / gates) when it fits VMEM comfortably on
    # every generation, otherwise loop with tk = 512.
    if k_dim <= 1024:
        tk, kp = k_dim, k_dim
    else:
        tk = 512
        kp = _round_up(k_dim, tk)
        a_bf16 = jnp.pad(a_bf16, ((0, 0), (0, kp - k_dim)))
        b_bf16 = jnp.pad(b_bf16, ((0, kp - k_dim), (0, 0)))

    mb, nb, kb = mp // tm, np_ // tn, kp // tk
    out_shapes = (jax.ShapeDtypeStruct((mp, np_), jnp.bfloat16),
                  jax.ShapeDtypeStruct((mb, 1, np_), jnp.float32),
                  jax.ShapeDtypeStruct((mb, 1, np_), jnp.float32))

    if kb == 1:
        kernel = _gemm_stats_kernel_single
        grid = (mb, nb)
        in_specs = [pl.BlockSpec((tm, tk), lambda i, j: (i, 0)),
                    pl.BlockSpec((tk, tn), lambda i, j: (0, j))]
        out_specs = [pl.BlockSpec((tm, tn), lambda i, j: (i, j)),
                     pl.BlockSpec((1, 1, tn), lambda i, j: (i, 0, j)),
                     pl.BlockSpec((1, 1, tn), lambda i, j: (i, 0, j))]
        scratch = []
        sem = ("parallel", "parallel")
    else:
        kernel = _gemm_stats_kernel_multi
        grid = (mb, nb, kb)
        in_specs = [pl.BlockSpec((tm, tk), lambda i, j, k: (i, k)),
                    pl.BlockSpec((tk, tn), lambda i, j, k: (k, j))]
        out_specs = [pl.BlockSpec((tm, tn), lambda i, j, k: (i, j)),
                     pl.BlockSpec((1, 1, tn), lambda i, j, k: (i, 0, j)),
                     pl.BlockSpec((1, 1, tn), lambda i, j, k: (i, 0, j))]
        scratch = [pltpu.VMEM((tm, tn), jnp.float32)]
        sem = ("parallel", "parallel", "arbitrary")

    out, psum, psq = pl.pallas_call(
        kernel,
        out_shape=out_shapes,
        grid_spec=pltpu.PrefetchScalarGridSpec(
            num_scalar_prefetch=0, grid=grid,
            in_specs=in_specs, out_specs=out_specs, scratch_shapes=scratch),
        compiler_params=pltpu.CompilerParams(
            dimension_semantics=sem, vmem_limit_bytes=_VMEM_LIMIT),
    )(a_bf16, b_bf16)

    total = jnp.sum(psum, axis=0).reshape(np_)
    total_sq = jnp.sum(psq, axis=0).reshape(np_)
    return out, total, total_sq


# -----------------------------------------------------------------------------
# Pallas kernel 2: fused BN scale/shift + ReLU + channel-concat + residual add.
# One full-width (Mp, cout) output -> lane-dense HBM writeback, no XLA concat.
# -----------------------------------------------------------------------------
def _make_fuse_kernel(c1, c2, has_map):
    cout = c1 + 2 * c2

    def kernel(*refs):
        if has_map:
            (o1m_ref, o2_ref, o3_ref,
             s1, b1, s2, b2, s3, b3, sm, bm, out_ref) = refs
        else:
            (o1m_ref, o2_ref, o3_ref, res_ref,
             s1, b1, s2, b2, s3, b3, out_ref) = refs

        o1m = o1m_ref[...].astype(jnp.float32)      # (tm, np1) fused conv1[+map]
        y1 = jnp.maximum(o1m[:, :c1] * s1[...] + b1[...], 0.0)
        y2 = jnp.maximum(o2_ref[...][:, :c2].astype(jnp.float32)
                         * s2[...] + b2[...], 0.0)
        y3 = jnp.maximum(o3_ref[...][:, :c2].astype(jnp.float32)
                         * s3[...] + b3[...], 0.0)
        if has_map:
            res = o1m[:, c1:c1 + cout] * sm[...] + bm[...]   # projection BN
        else:
            res = res_ref[...].astype(jnp.float32)           # identity shortcut
        out_ref[...] = jnp.concatenate([y1, y2, y3], axis=-1) + res

    return kernel


def fused_bn_relu_residual(o1m, o2, o3, res, vecs, c1, c2, tm, has_map):
    cout = c1 + 2 * c2
    mp = o1m.shape[0]
    assert mp % tm == 0

    def row_spec(arr):
        return pl.BlockSpec((tm, arr.shape[1]), lambda i: (i, 0))

    inputs = [o1m, o2, o3]
    in_specs = [row_spec(o1m), row_spec(o2), row_spec(o3)]
    if not has_map:
        inputs.append(res)
        in_specs.append(row_spec(res))
    for v in vecs:
        c = v.shape[0]
        inputs.append(v.reshape(1, c).astype(jnp.float32))
        in_specs.append(pl.BlockSpec((1, c), lambda i: (0, 0)))

    # NOTE: pipeline_mode=pl.Buffered(3) on the row inputs is an option if DMA
    # latency is exposed here; left at the default double-buffering.
    return pl.pallas_call(
        _make_fuse_kernel(c1, c2, has_map),
        out_shape=jax.ShapeDtypeStruct((mp, cout), jnp.float32),
        grid_spec=pltpu.PrefetchScalarGridSpec(
            num_scalar_prefetch=0, grid=(mp // tm,),
            in_specs=in_specs,
            out_specs=pl.BlockSpec((tm, cout), lambda i: (i, 0))),
        compiler_params=pltpu.CompilerParams(
            dimension_semantics=("parallel",), vmem_limit_bytes=_VMEM_LIMIT),
    )(*inputs)


# -----------------------------------------------------------------------------
# JAX glue: im2col (bf16), BN stat -> scale/shift, full forward
# -----------------------------------------------------------------------------
def _strided_slice(xp, kh, kw, stride, oh, ow):
    return xp[:, kh:kh + stride * (oh - 1) + 1:stride,
              kw:kw + stride * (ow - 1) + 1:stride, :]


def _im2col(x_bf16, ksize, stride, padding, oh, ow, mp):
    """NHWC bf16 -> (Mp, ksize*ksize*Cin) bf16 patch matrix (tap-major,
    cin-minor column order; rows zero-padded to Mp)."""
    n, _, _, cin = x_bf16.shape
    m = n * oh * ow
    if ksize == 1 and padding == 0:
        a = _strided_slice(x_bf16, 0, 0, stride, oh, ow).reshape(m, cin)
    else:
        xp = jnp.pad(x_bf16, ((0, 0), (padding, padding),
                              (padding, padding), (0, 0)))
        taps = [_strided_slice(xp, kh, kw, stride, oh, ow)
                for kh in range(ksize) for kw in range(ksize)]
        a = jnp.stack(taps, axis=3).reshape(m, ksize * ksize * cin)
    return jnp.pad(a, ((0, mp - m), (0, 0)))


def _bn_scale_shift(total, total_sq, gamma, beta, m_true):
    # Training-mode batch statistics, biased variance (matches torch BN forward).
    mean = total / m_true
    var = jnp.maximum(total_sq / m_true - mean * mean, 0.0)
    scale = gamma / jnp.sqrt(var + _BN_EPS)
    shift = beta - mean * scale
    return scale, shift


def inception_forward(params, x_nchw):
    x = jnp.transpose(x_nchw, (0, 2, 3, 1)).astype(jnp.float32)   # NCHW -> NHWC
    n, h, w_sp, _ = x.shape
    stride = params["stride"]
    cout = params["out_channels"]
    c1, c2 = cout // 2, cout // 4
    oh = (h - 1) // stride + 1
    ow = (w_sp - 1) // stride + 1
    m = n * oh * ow
    tm, mp = _pick_row_tile(m)
    xb = x.astype(jnp.bfloat16)
    has_map = "w1m_mat" in params       # fused conv1 + projection weights

    a_1x1 = _im2col(xb, 1, stride, 0, oh, ow, mp)   # shared by conv1 and map
    a_3x3 = _im2col(xb, 3, stride, 1, oh, ow, mp)
    a_5x5 = _im2col(xb, 5, stride, 2, oh, ow, mp)
    # TODO(synk): replace the 3x3/5x5 im2col above with a direct-conv Pallas
    #             GEMM (taps as an 'arbitrary' grid axis over shifted windows).

    if has_map:
        # One GEMM for conv1 + map: N = c1 + cout, stats split by column.
        o1m, t1m, q1m = conv_gemm_stats(a_1x1, params["w1m_mat"], tm)
        s1, b1 = _bn_scale_shift(t1m[:c1], q1m[:c1],
                                 params["bn1_g"], params["bn1_b"], m)
        sm, bm = _bn_scale_shift(t1m[c1:c1 + cout], q1m[c1:c1 + cout],
                                 params["bn_map_g"], params["bn_map_b"], m)
        vecs, res = None, None
    else:
        o1m, t1, q1 = conv_gemm_stats(a_1x1, params["w1_mat"], tm)
        s1, b1 = _bn_scale_shift(t1[:c1], q1[:c1],
                                 params["bn1_g"], params["bn1_b"], m)
        # identity shortcut: raw input rows (f32), padded to Mp
        res = jnp.pad(x.reshape(m, cout), ((0, mp - m), (0, 0)))

    o2, t2, q2 = conv_gemm_stats(a_3x3, params["w2_mat"], tm)
    s2, b2 = _bn_scale_shift(t2[:c2], q2[:c2],
                             params["bn2_g"], params["bn2_b"], m)
    o3, t3, q3 = conv_gemm_stats(a_5x5, params["w3_mat"], tm)
    s3, b3 = _bn_scale_shift(t3[:c2], q3[:c2],
                             params["bn3_g"], params["bn3_b"], m)

    if has_map:
        vecs = [s1, b1, s2, b2, s3, b3, sm, bm]
    else:
        vecs = [s1, b1, s2, b2, s3, b3]

    y = fused_bn_relu_residual(o1m, o2, o3, res, vecs, c1, c2, tm, has_map)
    y = y[:m].reshape(n, oh, ow, cout)
    return jnp.transpose(y, (0, 3, 1, 2))                          # NHWC -> NCHW


# -----------------------------------------------------------------------------
# deterministic parameter construction (mirrors the torch __init__); GEMM-layout
# bf16 weight matrices are precomputed here (conv1 + map fused along N).
# -----------------------------------------------------------------------------
def init_params(key, in_channels, out_channels, stride):
    if out_channels % 16 != 0:
        raise NotImplementedError
    c1, c2 = out_channels // 2, out_channels // 4
    keys = jax.random.split(key, 4)

    def conv_w(k, co, ci, ks):
        bound = 1.0 / float(ci * ks * ks) ** 0.5     # torch Conv2d default init
        return jax.random.uniform(k, (co, ci, ks, ks), jnp.float32,
                                  -bound, bound)

    def to_mat(w):   # torch (Cout,Cin,KH,KW) -> (KH*KW*Cin, Cout), tap-major
        return jnp.transpose(w, (2, 3, 1, 0)).reshape(-1, w.shape[0]).astype(
            jnp.bfloat16)

    w1 = conv_w(keys[0], c1, in_channels, 1)
    w2 = conv_w(keys[1], c2, in_channels, 3)
    w3 = conv_w(keys[2], c2, in_channels, 5)
    params = {
        "stride": stride,
        "in_channels": in_channels,
        "out_channels": out_channels,
        "w2_mat": to_mat(w2),
        "bn2_g": jnp.ones((c2,), jnp.float32),
        "bn2_b": jnp.zeros((c2,), jnp.float32),
        "w3_mat": to_mat(w3),
        "bn3_g": jnp.ones((c2,), jnp.float32),
        "bn3_b": jnp.zeros((c2,), jnp.float32),
        "bn1_g": jnp.ones((c1,), jnp.float32),
        "bn1_b": jnp.zeros((c1,), jnp.float32),
    }
    if in_channels != out_channels or stride != 1:
        wm = conv_w(keys[3], out_channels, in_channels, 1)
        params["w1m_mat"] = jnp.concatenate([to_mat(w1), to_mat(wm)], axis=1)
        params["bn_map_g"] = jnp.ones((out_channels,), jnp.float32)
        params["bn_map_b"] = jnp.zeros((out_channels,), jnp.float32)
    else:
        params["w1_mat"] = to_mat(w1)
    # NOTE: nn.Conv2d biases exist in the torch module but cancel exactly under
    # training-mode BatchNorm (they shift x and its batch mean equally), so they
    # are intentionally omitted from the compute path.
    return params


# -----------------------------------------------------------------------------
if __name__ == "__main__":
    key = jax.random.PRNGKey(0)
    k_p1, k_p2, k_x1, k_x2 = jax.random.split(key, 4)

    # Config 1: projection shortcut (in != out, stride 2) -> fused 1x1+map GEMM.
    params1 = init_params(k_p1, in_channels=32, out_channels=64, stride=2)
    x1 = jax.random.normal(k_x1, (2, 32, 16, 16), jnp.float32)
    y1 = jax.block_until_ready(
        jax.jit(functools.partial(inception_forward, params1))(x1))
    assert y1.shape == (2, 64, 8, 8), y1.shape
    assert bool(jnp.all(jnp.isfinite(y1)))

    # Config 2: identity shortcut (in == out, stride 1) -> exercises the
    # multi-K-step GEMM (5x5 branch, K = 1600) and the identity residual path.
    params2 = init_params(k_p2, in_channels=64, out_channels=64, stride=1)
    x2 = jax.random.normal(k_x2, (2, 64, 8, 8), jnp.float32)
    y2 = jax.block_until_ready(
        jax.jit(functools.partial(inception_forward, params2))(x2))
    assert y2.shape == (2, 64, 8, 8), y2.shape
    assert bool(jnp.all(jnp.isfinite(y2)))

    print("KERNEL_OK")
</pallas_src>

<mosaic_0001>
module attributes {stable_mosaic.version = 11 : i64} {
  func.func @_gemm_stats_kernel_single(%arg0: i32, %arg1: i32, %arg2: memref<64x32xbf16, #tpu.memory_space<vmem>>, %arg3: memref<32x128xbf16, #tpu.memory_space<vmem>>, %arg4: memref<64x128xbf16, #tpu.memory_space<vmem>>, %arg5: memref<1x1x128xf32, #tpu.memory_space<vmem>>, %arg6: memref<1x1x128xf32, #tpu.memory_space<vmem>>) attributes {dimension_semantics = [#tpu.dimension_semantics<parallel>, #tpu.dimension_semantics<parallel>], iteration_bounds = array<i64: 2, 1>, scalar_prefetch = 0 : i64, scratch_operands = 0 : i64, tpu.core_type = #tpu.core_type<tc>, window_params = [{transform_indices = @transform_0, window_bounds = array<i64: 64, 32>}, {transform_indices = @transform_1, window_bounds = array<i64: 32, 128>}, {transform_indices = @transform_2, window_bounds = array<i64: 64, 128>}, {transform_indices = @transform_3, window_bounds = array<i64: 1, 1, 128>}, {transform_indices = @transform_4, window_bounds = array<i64: 1, 1, 128>}]} {
    %c0 = arith.constant 0 : index
    %c0_0 = arith.constant 0 : index
    %0 = vector.load %arg2[%c0, %c0_0] : memref<64x32xbf16, #tpu.memory_space<vmem>>, vector<64x32xbf16>
    %c0_1 = arith.constant 0 : index
    %c0_2 = arith.constant 0 : index
    %1 = vector.load %arg3[%c0_1, %c0_2] : memref<32x128xbf16, #tpu.memory_space<vmem>>, vector<32x128xbf16>
    %cst = arith.constant dense<0.000000e+00> : vector<64x128xf32>
    %2 = tpu.matmul %0, %1, %cst {dimension_numbers = #tpu.dot_dimension_numbers<[1], [0], [0], [1], [0, 0, 1, 1], [], []>} : vector<64x32xbf16>, vector<32x128xbf16>, vector<64x128xf32> -> vector<64x128xf32>
    %3 = arith.truncf %2 : vector<64x128xf32> to vector<64x128xbf16>
    %c0_3 = arith.constant 0 : index
    %c0_4 = arith.constant 0 : index
    %4 = vector.load %arg4[%c0_3, %c0_4] : memref<64x128xbf16, #tpu.memory_space<vmem>>, vector<64x128xbf16>
    tpu.vector_store %arg4[%c0_3, %c0_4], %3 {strides = array<i32>} : memref<64x128xbf16, #tpu.memory_space<vmem>>, vector<64x128xbf16>,
    %cst_5 = arith.constant dense<0.000000e+00> : vector<128xf32>
    %5 = vector.multi_reduction <add>, %2, %cst_5 [0] : vector<64x128xf32> to vector<128xf32>
    %6 = vector.shape_cast %5 : vector<128xf32> to vector<1x128xf32>
    %c0_6 = arith.constant 0 : index
    %c0_7 = arith.constant 0 : index
    %c0_8 = arith.constant 0 : index
    %7 = vector.load %arg5[%c0_6, %c0_7, %c0_8] : memref<1x1x128xf32, #tpu.memory_space<vmem>>, vector<1x1x128xf32>
    %8 = vector.shape_cast %7 : vector<1x1x128xf32> to vector<1x128xf32>
    %9 = vector.shape_cast %6 : vector<1x128xf32> to vector<1x1x128xf32>
    tpu.vector_store %arg5[%c0_6, %c0_7, %c0_8], %9 {strides = array<i32>} : memref<1x1x128xf32, #tpu.memory_space<vmem>>, vector<1x1x128xf32>,
    %10 = arith.mulf %2, %2 : vector<64x128xf32>
    %cst_9 = arith.constant dense<0.000000e+00> : vector<128xf32>
    %11 = vector.multi_reduction <add>, %10, %cst_9 [0] : vector<64x128xf32> to vector<128xf32>
    %12 = vector.shape_cast %11 : vector<128xf32> to vector<1x128xf32>
    %c0_10 = arith.constant 0 : index
    %c0_11 = arith.constant 0 : index
    %c0_12 = arith.constant 0 : index
    %13 = vector.load %arg6[%c0_10, %c0_11, %c0_12] : memref<1x1x128xf32, #tpu.memory_space<vmem>>, vector<1x1x128xf32>
    %14 = vector.shape_cast %13 : vector<1x1x128xf32> to vector<1x128xf32>
    %15 = vector.shape_cast %12 : vector<1x128xf32> to vector<1x1x128xf32>
    tpu.vector_store %arg6[%c0_10, %c0_11, %c0_12], %15 {strides = array<i32>} : memref<1x1x128xf32, #tpu.memory_space<vmem>>, vector<1x1x128xf32>,
    return
  }
  func.func @transform_0(%arg0: i32, %arg1: i32) -> (i32, i32) {
    %c0_i32 = arith.constant 0 : i32
    %c0_i32_0 = arith.constant 0 : i32
    return %arg0, %c0_i32 : i32, i32
  }
  func.func @transform_1(%arg0: i32, %arg1: i32) -> (i32, i32) {
    %c0_i32 = arith.constant 0 : i32
    %c0_i32_0 = arith.constant 0 : i32
    return %c0_i32, %arg1 : i32, i32
  }
  func.func @transform_2(%arg0: i32, %arg1: i32) -> (i32, i32) {
    %c0_i32 = arith.constant 0 : i32
    return %arg0, %arg1 : i32, i32
  }
  func.func @transform_3(%arg0: i32, %arg1: i32) -> (i32, i32, i32) {
    %c0_i32 = arith.constant 0 : i32
    %c0_i32_0 = arith.constant 0 : i32
    return %arg0, %c0_i32, %arg1 : i32, i32, i32
  }
  func.func @transform_4(%arg0: i32, %arg1: i32) -> (i32, i32, i32) {
    %c0_i32 = arith.constant 0 : i32
    %c0_i32_0 = arith.constant 0 : i32
    return %arg0, %c0_i32, %arg1 : i32, i32, i32
  }
}

module attributes {stable_mosaic.version = 11 : i64} {
  func.func @_gemm_stats_kernel_single(%arg0: i32, %arg1: i32, %arg2: memref<64x288xbf16, #tpu.memory_space<vmem>>, %arg3: memref<288x128xbf16, #tpu.memory_space<vmem>>, %arg4: memref<64x128xbf16, #tpu.memory_space<vmem>>, %arg5: memref<1x1x128xf32, #tpu.memory_space<vmem>>, %arg6: memref<1x1x128xf32, #tpu.memory_space<vmem>>) attributes {dimension_semantics = [#tpu.dimension_semantics<parallel>, #tpu.dimension_semantics<parallel>], iteration_bounds = array<i64: 2, 1>, scalar_prefetch = 0 : i64, scratch_operands = 0 : i64, tpu.core_type = #tpu.core_type<tc>, window_params = [{transform_indices = @transform_0, window_bounds = array<i64: 64, 288>}, {transform_indices = @transform_1, window_bounds = array<i64: 288, 128>}, {transform_indices = @transform_2, window_bounds = array<i64: 64, 128>}, {transform_indices = @transform_3, window_bounds = array<i64: 1, 1, 128>}, {transform_indices = @transform_4, window_bounds = array<i64: 1, 1, 128>}]} {
    %c0 = arith.constant 0 : index
    %c0_0 = arith.constant 0 : index
    %0 = vector.load %arg2[%c0, %c0_0] : memref<64x288xbf16, #tpu.memory_space<vmem>>, vector<64x288xbf16>
    %c0_1 = arith.constant 0 : index
    %c0_2 = arith.constant 0 : index
    %1 = vector.load %arg3[%c0_1, %c0_2] : memref<288x128xbf16, #tpu.memory_space<vmem>>, vector<288x128xbf16>
    %cst = arith.constant dense<0.000000e+00> : vector<64x128xf32>
    %2 = tpu.matmul %0, %1, %cst {dimension_numbers = #tpu.dot_dimension_numbers<[1], [0], [0], [1], [0, 0, 1, 1], [], []>} : vector<64x288xbf16>, vector<288x128xbf16>, vector<64x128xf32> -> vector<64x128xf32>
    %3 = arith.truncf %2 : vector<64x128xf32> to vector<64x128xbf16>
    %c0_3 = arith.constant 0 : index
    %c0_4 = arith.constant 0 : index
    %4 = vector.load %arg4[%c0_3, %c0_4] : memref<64x128xbf16, #tpu.memory_space<vmem>>, vector<64x128xbf16>
    tpu.vector_store %arg4[%c0_3, %c0_4], %3 {strides = array<i32>} : memref<64x128xbf16, #tpu.memory_space<vmem>>, vector<64x128xbf16>,
    %cst_5 = arith.constant dense<0.000000e+00> : vector<128xf32>
    %5 = vector.multi_reduction <add>, %2, %cst_5 [0] : vector<64x128xf32> to vector<128xf32>
    %6 = vector.shape_cast %5 : vector<128xf32> to vector<1x128xf32>
    %c0_6 = arith.constant 0 : index
    %c0_7 = arith.constant 0 : index
    %c0_8 = arith.constant 0 : index
    %7 = vector.load %arg5[%c0_6, %c0_7, %c0_8] : memref<1x1x128xf32, #tpu.memory_space<vmem>>, vector<1x1x128xf32>
    %8 = vector.shape_cast %7 : vector<1x1x128xf32> to vector<1x128xf32>
    %9 = vector.shape_cast %6 : vector<1x128xf32> to vector<1x1x128xf32>
    tpu.vector_store %arg5[%c0_6, %c0_7, %c0_8], %9 {strides = array<i32>} : memref<1x1x128xf32, #tpu.memory_space<vmem>>, vector<1x1x128xf32>,
    %10 = arith.mulf %2, %2 : vector<64x128xf32>
    %cst_9 = arith.constant dense<0.000000e+00> : vector<128xf32>
    %11 = vector.multi_reduction <add>, %10, %cst_9 [0] : vector<64x128xf32> to vector<128xf32>
    %12 = vector.shape_cast %11 : vector<128xf32> to vector<1x128xf32>
    %c0_10 = arith.constant 0 : index
    %c0_11 = arith.constant 0 : index
    %c0_12 = arith.constant 0 : index
    %13 = vector.load %arg6[%c0_10, %c0_11, %c0_12] : memref<1x1x128xf32, #tpu.memory_space<vmem>>, vector<1x1x128xf32>
    %14 = vector.shape_cast %13 : vector<1x1x128xf32> to vector<1x128xf32>
    %15 = vector.shape_cast %12 : vector<1x128xf32> to vector<1x1x128xf32>
    tpu.vector_store %arg6[%c0_10, %c0_11, %c0_12], %15 {strides = array<i32>} : memref<1x1x128xf32, #tpu.memory_space<vmem>>, vector<1x1x128xf32>,
    return
  }
  func.func @transform_0(%arg0: i32, %arg1: i32) -> (i32, i32) {
    %c0_i32 = arith.constant 0 : i32
    %c0_i32_0 = arith.constant 0 : i32
    return %arg0, %c0_i32 : i32, i32
  }
  func.func @transform_1(%arg0: i32, %arg1: i32) -> (i32, i32) {
    %c0_i32 = arith.constant 0 : i32
    %c0_i32_0 = arith.constant 0 : i32
    return %c0_i32, %arg1 : i32, i32
  }
  func.func @transform_2(%arg0: i32, %arg1: i32) -> (i32, i32) {
    %c0_i32 = arith.constant 0 : i32
    return %arg0, %arg1 : i32, i32
  }
  func.func @transform_3(%arg0: i32, %arg1: i32) -> (i32, i32, i32) {
    %c0_i32 = arith.constant 0 : i32
    %c0_i32_0 = arith.constant 0 : i32
    return %arg0, %c0_i32, %arg1 : i32, i32, i32
  }
  func.func @transform_4(%arg0: i32, %arg1: i32) -> (i32, i32, i32) {
    %c0_i32 = arith.constant 0 : i32
    %c0_i32_0 = arith.constant 0 : i32
    return %arg0, %c0_i32, %arg1 : i32, i32, i32
  }
}

module attributes {stable_mosaic.version = 11 : i64} {
  func.func @_gemm_stats_kernel_single(%arg0: i32, %arg1: i32, %arg2: memref<64x800xbf16, #tpu.memory_space<vmem>>, %arg3: memref<800x128xbf16, #tpu.memory_space<vmem>>, %arg4: memref<64x128xbf16, #tpu.memory_space<vmem>>, %arg5: memref<1x1x128xf32, #tpu.memory_space<vmem>>, %arg6: memref<1x1x128xf32, #tpu.memory_space<vmem>>) attributes {dimension_semantics = [#tpu.dimension_semantics<parallel>, #tpu.dimension_semantics<parallel>], iteration_bounds = array<i64: 2, 1>, scalar_prefetch = 0 : i64, scratch_operands = 0 : i64, tpu.core_type = #tpu.core_type<tc>, window_params = [{transform_indices = @transform_0, window_bounds = array<i64: 64, 800>}, {transform_indices = @transform_1, window_bounds = array<i64: 800, 128>}, {transform_indices = @transform_2, window_bounds = array<i64: 64, 128>}, {transform_indices = @transform_3, window_bounds = array<i64: 1, 1, 128>}, {transform_indices = @transform_4, window_bounds = array<i64: 1, 1, 128>}]} {
    %c0 = arith.constant 0 : index
    %c0_0 = arith.constant 0 : index
    %0 = vector.load %arg2[%c0, %c0_0] : memref<64x800xbf16, #tpu.memory_space<vmem>>, vector<64x800xbf16>
    %c0_1 = arith.constant 0 : index
    %c0_2 = arith.constant 0 : index
    %1 = vector.load %arg3[%c0_1, %c0_2] : memref<800x128xbf16, #tpu.memory_space<vmem>>, vector<800x128xbf16>
    %cst = arith.constant dense<0.000000e+00> : vector<64x128xf32>
    %2 = tpu.matmul %0, %1, %cst {dimension_numbers = #tpu.dot_dimension_numbers<[1], [0], [0], [1], [0, 0, 1, 1], [], []>} : vector<64x800xbf16>, vector<800x128xbf16>, vector<64x128xf32> -> vector<64x128xf32>
    %3 = arith.truncf %2 : vector<64x128xf32> to vector<64x128xbf16>
    %c0_3 = arith.constant 0 : index
    %c0_4 = arith.constant 0 : index
    %4 = vector.load %arg4[%c0_3, %c0_4] : memref<64x128xbf16, #tpu.memory_space<vmem>>, vector<64x128xbf16>
    tpu.vector_store %arg4[%c0_3, %c0_4], %3 {strides = array<i32>} : memref<64x128xbf16, #tpu.memory_space<vmem>>, vector<64x128xbf16>,
    %cst_5 = arith.constant dense<0.000000e+00> : vector<128xf32>
    %5 = vector.multi_reduction <add>, %2, %cst_5 [0] : vector<64x128xf32> to vector<128xf32>
    %6 = vector.shape_cast %5 : vector<128xf32> to vector<1x128xf32>
    %c0_6 = arith.constant 0 : index
    %c0_7 = arith.constant 0 : index
    %c0_8 = arith.constant 0 : index
    %7 = vector.load %arg5[%c0_6, %c0_7, %c0_8] : memref<1x1x128xf32, #tpu.memory_space<vmem>>, vector<1x1x128xf32>
    %8 = vector.shape_cast %7 : vector<1x1x128xf32> to vector<1x128xf32>
    %9 = vector.shape_cast %6 : vector<1x128xf32> to vector<1x1x128xf32>
    tpu.vector_store %arg5[%c0_6, %c0_7, %c0_8], %9 {strides = array<i32>} : memref<1x1x128xf32, #tpu.memory_space<vmem>>, vector<1x1x128xf32>,
    %10 = arith.mulf %2, %2 : vector<64x128xf32>
    %cst_9 = arith.constant dense<0.000000e+00> : vector<128xf32>
    %11 = vector.multi_reduction <add>, %10, %cst_9 [0] : vector<64x128xf32> to vector<128xf32>
    %12 = vector.shape_cast %11 : vector<128xf32> to vector<1x128xf32>
    %c0_10 = arith.constant 0 : index
    %c0_11 = arith.constant 0 : index
    %c0_12 = arith.constant 0 : index
    %13 = vector.load %arg6[%c0_10, %c0_11, %c0_12] : memref<1x1x128xf32, #tpu.memory_space<vmem>>, vector<1x1x128xf32>
    %14 = vector.shape_cast %13 : vector<1x1x128xf32> to vector<1x128xf32>
    %15 = vector.shape_cast %12 : vector<1x128xf32> to vector<1x1x128xf32>
    tpu.vector_store %arg6[%c0_10, %c0_11, %c0_12], %15 {strides = array<i32>} : memref<1x1x128xf32, #tpu.memory_space<vmem>>, vector<1x1x128xf32>,
    return
  }
  func.func @transform_0(%arg0: i32, %arg1: i32) -> (i32, i32) {
    %c0_i32 = arith.constant 0 : i32
    %c0_i32_0 = arith.constant 0 : i32
    return %arg0, %c0_i32 : i32, i32
  }
  func.func @transform_1(%arg0: i32, %arg1: i32) -> (i32, i32) {
    %c0_i32 = arith.constant 0 : i32
    %c0_i32_0 = arith.constant 0 : i32
    return %c0_i32, %arg1 : i32, i32
  }
  func.func @transform_2(%arg0: i32, %arg1: i32) -> (i32, i32) {
    %c0_i32 = arith.constant 0 : i32
    return %arg0, %arg1 : i32, i32
  }
  func.func @transform_3(%arg0: i32, %arg1: i32) -> (i32, i32, i32) {
    %c0_i32 = arith.constant 0 : i32
    %c0_i32_0 = arith.constant 0 : i32
    return %arg0, %c0_i32, %arg1 : i32, i32, i32
  }
  func.func @transform_4(%arg0: i32, %arg1: i32) -> (i32, i32, i32) {
    %c0_i32 = arith.constant 0 : i32
    %c0_i32_0 = arith.constant 0 : i32
    return %arg0, %c0_i32, %arg1 : i32, i32, i32
  }
}

module attributes {stable_mosaic.version = 11 : i64} {
  func.func @kernel(%arg0: i32, %arg1: memref<64x128xbf16, #tpu.memory_space<vmem>>, %arg2: memref<64x128xbf16, #tpu.memory_space<vmem>>, %arg3: memref<64x128xbf16, #tpu.memory_space<vmem>>, %arg4: memref<1x32xf32, #tpu.memory_space<vmem>>, %arg5: memref<1x32xf32, #tpu.memory_space<vmem>>, %arg6: memref<1x16xf32, #tpu.memory_space<vmem>>, %arg7: memref<1x16xf32, #tpu.memory_space<vmem>>, %arg8: memref<1x16xf32, #tpu.memory_space<vmem>>, %arg9: memref<1x16xf32, #tpu.memory_space<vmem>>, %arg10: memref<1x64xf32, #tpu.memory_space<vmem>>, %arg11: memref<1x64xf32, #tpu.memory_space<vmem>>, %arg12: memref<64x64xf32, #tpu.memory_space<vmem>>) attributes {dimension_semantics = [#tpu.dimension_semantics<parallel>], iteration_bounds = array<i64: 2>, scalar_prefetch = 0 : i64, scratch_operands = 0 : i64, tpu.core_type = #tpu.core_type<tc>, window_params = [{transform_indices = @transform_0, window_bounds = array<i64: 64, 128>}, {transform_indices = @transform_1, window_bounds = array<i64: 64, 128>}, {transform_indices = @transform_2, window_bounds = array<i64: 64, 128>}, {pipeline_mode = #tpu.pipeline_mode<synchronous>, transform_indices = @transform_3, window_bounds = array<i64: 1, 32>}, {pipeline_mode = #tpu.pipeline_mode<synchronous>, transform_indices = @transform_4, window_bounds = array<i64: 1, 32>}, {pipeline_mode = #tpu.pipeline_mode<synchronous>, transform_indices = @transform_5, window_bounds = array<i64: 1, 16>}, {pipeline_mode = #tpu.pipeline_mode<synchronous>, transform_indices = @transform_6, window_bounds = array<i64: 1, 16>}, {pipeline_mode = #tpu.pipeline_mode<synchronous>, transform_indices = @transform_7, window_bounds = array<i64: 1, 16>}, {pipeline_mode = #tpu.pipeline_mode<synchronous>, transform_indices = @transform_8, window_bounds = array<i64: 1, 16>}, {pipeline_mode = #tpu.pipeline_mode<synchronous>, transform_indices = @transform_9, window_bounds = array<i64: 1, 64>}, {pipeline_mode = #tpu.pipeline_mode<synchronous>, transform_indices = @transform_10, window_bounds = array<i64: 1, 64>}, {transform_indices = @transform_11, window_bounds = array<i64: 64, 64>}]} {
    %c0 = arith.constant 0 : index
    %c0_0 = arith.constant 0 : index
    %0 = vector.load %arg1[%c0, %c0_0] : memref<64x128xbf16, #tpu.memory_space<vmem>>, vector<64x128xbf16>
    %1 = arith.extf %0 : vector<64x128xbf16> to vector<64x128xf32>
    %2 = vector.extract_strided_slice %1 {offsets = [0, 0], sizes = [64, 32], strides = [1, 1]} : vector<64x128xf32> to vector<64x32xf32>
    %c0_1 = arith.constant 0 : index
    %c0_2 = arith.constant 0 : index
    %3 = vector.load %arg4[%c0_1, %c0_2] : memref<1x32xf32, #tpu.memory_space<vmem>>, vector<1x32xf32>
    %4 = vector.broadcast %3 : vector<1x32xf32> to vector<64x32xf32>
    %5 = arith.mulf %2, %4 : vector<64x32xf32>
    %c0_3 = arith.constant 0 : index
    %c0_4 = arith.constant 0 : index
    %6 = vector.load %arg5[%c0_3, %c0_4] : memref<1x32xf32, #tpu.memory_space<vmem>>, vector<1x32xf32>
    %7 = vector.broadcast %6 : vector<1x32xf32> to vector<64x32xf32>
    %8 = arith.addf %5, %7 : vector<64x32xf32>
    %cst = arith.constant 0.000000e+00 : f32
    %9 = vector.broadcast %cst : f32 to vector<64x32xf32>
    %10 = arith.maximumf %8, %9 : vector<64x32xf32>
    %c0_5 = arith.constant 0 : index
    %c0_6 = arith.constant 0 : index
    %11 = vector.load %arg2[%c0_5, %c0_6] : memref<64x128xbf16, #tpu.memory_space<vmem>>, vector<64x128xbf16>
    %12 = vector.extract_strided_slice %11 {offsets = [0, 0], sizes = [64, 16], strides = [1, 1]} : vector<64x128xbf16> to vector<64x16xbf16>
    %13 = arith.extf %12 : vector<64x16xbf16> to vector<64x16xf32>
    %c0_7 = arith.constant 0 : index
    %c0_8 = arith.constant 0 : index
    %14 = vector.load %arg6[%c0_7, %c0_8] : memref<1x16xf32, #tpu.memory_space<vmem>>, vector<1x16xf32>
    %15 = vector.broadcast %14 : vector<1x16xf32> to vector<64x16xf32>
    %16 = arith.mulf %13, %15 : vector<64x16xf32>
    %c0_9 = arith.constant 0 : index
    %c0_10 = arith.constant 0 : index
    %17 = vector.load %arg7[%c0_9, %c0_10] : memref<1x16xf32, #tpu.memory_space<vmem>>, vector<1x16xf32>
    %18 = vector.broadcast %17 : vector<1x16xf32> to vector<64x16xf32>
    %19 = arith.addf %16, %18 : vector<64x16xf32>
    %cst_11 = arith.constant 0.000000e+00 : f32
    %20 = vector.broadcast %cst_11 : f32 to vector<64x16xf32>
    %21 = arith.maximumf %19, %20 : vector<64x16xf32>
    %c0_12 = arith.constant 0 : index
    %c0_13 = arith.constant 0 : index
    %22 = vector.load %arg3[%c0_12, %c0_13] : memref<64x128xbf16, #tpu.memory_space<vmem>>, vector<64x128xbf16>
    %23 = vector.extract_strided_slice %22 {offsets = [0, 0], sizes = [64, 16], strides = [1, 1]} : vector<64x128xbf16> to vector<64x16xbf16>
    %24 = arith.extf %23 : vector<64x16xbf16> to vector<64x16xf32>
    %c0_14 = arith.constant 0 : index
    %c0_15 = arith.constant 0 : index
    %25 = vector.load %arg8[%c0_14, %c0_15] : memref<1x16xf32, #tpu.memory_space<vmem>>, vector<1x16xf32>
    %26 = vector.broadcast %25 : vector<1x16xf32> to vector<64x16xf32>
    %27 = arith.mulf %24, %26 : vector<64x16xf32>
    %c0_16 = arith.constant 0 : index
    %c0_17 = arith.constant 0 : index
    %28 = vector.load %arg9[%c0_16, %c0_17] : memref<1x16xf32, #tpu.memory_space<vmem>>, vector<1x16xf32>
    %29 = vector.broadcast %28 : vector<1x16xf32> to vector<64x16xf32>
    %30 = arith.addf %27, %29 : vector<64x16xf32>
    %cst_18 = arith.constant 0.000000e+00 : f32
    %31 = vector.broadcast %cst_18 : f32 to vector<64x16xf32>
    %32 = arith.maximumf %30, %31 : vector<64x16xf32>
    %33 = vector.extract_strided_slice %1 {offsets = [0, 32], sizes = [64, 64], strides = [1, 1]} : vector<64x128xf32> to vector<64x64xf32>
    %c0_19 = arith.constant 0 : index
    %c0_20 = arith.constant 0 : index
    %34 = vector.load %arg10[%c0_19, %c0_20] : memref<1x64xf32, #tpu.memory_space<vmem>>, vector<1x64xf32>
    %35 = vector.broadcast %34 : vector<1x64xf32> to vector<64x64xf32>
    %36 = arith.mulf %33, %35 : vector<64x64xf32>
    %c0_21 = arith.constant 0 : index
    %c0_22 = arith.constant 0 : index
    %37 = vector.load %arg11[%c0_21, %c0_22] : memref<1x64xf32, #tpu.memory_space<vmem>>, vector<1x64xf32>
    %38 = vector.broadcast %37 : vector<1x64xf32> to vector<64x64xf32>
    %39 = arith.addf %36, %38 : vector<64x64xf32>
    %40 = tpu.concatenate %10, %21, %32 in 1 : vector<64x32xf32>, vector<64x16xf32>, vector<64x16xf32> -> vector<64x64xf32>
    %41 = arith.addf %40, %39 : vector<64x64xf32>
    %c0_23 = arith.constant 0 : index
    %c0_24 = arith.constant 0 : index
    %42 = vector.load %arg12[%c0_23, %c0_24] : memref<64x64xf32, #tpu.memory_space<vmem>>, vector<64x64xf32>
    tpu.vector_store %arg12[%c0_23, %c0_24], %41 {strides = array<i32>} : memref<64x64xf32, #tpu.memory_space<vmem>>, vector<64x64xf32>,
    return
  }
  func.func @transform_0(%arg0: i32) -> (i32, i32) {
    %c0_i32 = arith.constant 0 : i32
    %c0_i32_0 = arith.constant 0 : i32
    return %arg0, %c0_i32 : i32, i32
  }
  func.func @transform_1(%arg0: i32) -> (i32, i32) {
    %c0_i32 = arith.constant 0 : i32
    %c0_i32_0 = arith.constant 0 : i32
    return %arg0, %c0_i32 : i32, i32
  }
  func.func @transform_2(%arg0: i32) -> (i32, i32) {
    %c0_i32 = arith.constant 0 : i32
    %c0_i32_0 = arith.constant 0 : i32
    return %arg0, %c0_i32 : i32, i32
  }
  func.func @transform_3(%arg0: i32) -> (i32, i32) {
    %c0_i32 = arith.constant 0 : i32
    %c0_i32_0 = arith.constant 0 : i32
    %c0_i32_1 = arith.constant 0 : i32
    return %c0_i32, %c0_i32_0 : i32, i32
  }
  func.func @transform_4(%arg0: i32) -> (i32, i32) {
    %c0_i32 = arith.constant 0 : i32
    %c0_i32_0 = arith.constant 0 : i32
    %c0_i32_1 = arith.constant 0 : i32
    return %c0_i32, %c0_i32_0 : i32, i32
  }
  func.func @transform_5(%arg0: i32) -> (i32, i32) {
    %c0_i32 = arith.constant 0 : i32
    %c0_i32_0 = arith.constant 0 : i32
    %c0_i32_1 = arith.constant 0 : i32
    return %c0_i32, %c0_i32_0 : i32, i32
  }
  func.func @transform_6(%arg0: i32) -> (i32, i32) {
    %c0_i32 = arith.constant 0 : i32
    %c0_i32_0 = arith.constant 0 : i32
    %c0_i32_1 = arith.constant 0 : i32
    return %c0_i32, %c0_i32_0 : i32, i32
  }
  func.func @transform_7(%arg0: i32) -> (i32, i32) {
    %c0_i32 = arith.constant 0 : i32
    %c0_i32_0 = arith.constant 0 : i32
    %c0_i32_1 = arith.constant 0 : i32
    return %c0_i32, %c0_i32_0 : i32, i32
  }
  func.func @transform_8(%arg0: i32) -> (i32, i32) {
    %c0_i32 = arith.constant 0 : i32
    %c0_i32_0 = arith.constant 0 : i32
    %c0_i32_1 = arith.constant 0 : i32
    return %c0_i32, %c0_i32_0 : i32, i32
  }
  func.func @transform_9(%arg0: i32) -> (i32, i32) {
    %c0_i32 = arith.constant 0 : i32
    %c0_i32_0 = arith.constant 0 : i32
    %c0_i32_1 = arith.constant 0 : i32
    return %c0_i32, %c0_i32_0 : i32, i32
  }
  func.func @transform_10(%arg0: i32) -> (i32, i32) {
    %c0_i32 = arith.constant 0 : i32
    %c0_i32_0 = arith.constant 0 : i32
    %c0_i32_1 = arith.constant 0 : i32
    return %c0_i32, %c0_i32_0 : i32, i32
  }
  func.func @transform_11(%arg0: i32) -> (i32, i32) {
    %c0_i32 = arith.constant 0 : i32
    %c0_i32_0 = arith.constant 0 : i32
    return %arg0, %c0_i32 : i32, i32
  }
}

</mosaic_0001>

<llo_original>
// kernel: inception_forward.4
$region0: #{inception_forward.4}
  #allocation0 [shape = 'u32[]', space=smem, size = 0x4, offset = 0x4, fixed_abs, tag = 'smem constant byte address 0x4 - core index']
  #allocation1 [shape = 'u32[144,128]{1,0:T(1,128)}', space=vmem, size = 0x12000, scoped, tag = 'internal scratch']
  %s0 = inlined_call_operand.vmem [shape: bf16[128,32], index: 0, kind: input, shape index: {}]
  %s1 = inlined_call_operand.vmem [shape: bf16[32,128], index: 1, kind: input, shape index: {}]
  %s2 = inlined_call_operand.vmem [shape: bf16[128,128], index: 2, kind: output, shape index: {0}]
  %s3 = inlined_call_operand.vmem [shape: f32[2,1,128], index: 3, kind: output, shape index: {1}]
  %s4 = inlined_call_operand.vmem [shape: f32[2,1,128], index: 4, kind: output, shape index: {2}]
  %5 = xla_tuple %s2, %s3, %s4
  %s6 = sld [smem:[#allocation0]]
  $region57: #{inception_forward.4} parent=0
    _
  %s8 = ssub.s32 1, %s6
  %s9 = scalar_select 0, %s8, %s6
  loop: start=0, step=1, limit=4
  $region2: #{inception_forward.4} parent=0 // loop_pre_header
    _
  $region3: #{inception_forward.4} parent=0 // loop_header
    %s11 = sphi 0, %s15
    %p12 = scmp.ge.s32.totalorder %s11, 4
    %s18 = sphi 0, %s30
    %s19 = sphi 0, %s26
    %s20 = sphi 0, %s18
    %s21 = sphi 0, %s19
    %s22 = sphi 0, %s20
    %s23 = sphi 0, %s21
    %s33 = sphi 0, %s35
    %s36 = sphi 0, %s33
    %s37 = sphi 0, %s36
    %s53 = sphi 0, %s37
    %s59 = sphi 0, %s61
    %s62 = sphi 0, %s59
    %s63 = sphi 0, %s62
    %s79 = sphi 0, %s63
    %s87 = sphi 0, %s89
    %s90 = sphi 0, %s87
    %s91 = sphi 0, %s90
    %s107 = sphi 0, %s91
    %s115 = sphi 0, %s117
    %s118 = sphi 0, %s115
    %s119 = sphi 0, %s118
    %s135 = sphi 0, %s119
    %s143 = sphi 0, %s145
    %s146 = sphi 0, %s143
    %s147 = sphi 0, %s146
    %s163 = sphi 0, %s147
  $region4: #{inception_forward.4} parent=0 // loop_header_branch
    %14 = sbr.rel (%p12) target = $region8
  $region5: #{inception_forward.4} parent=0 // loop_body
    %s16 = ssub.s32 %s11, 1
    %s17 = ssub.s32 %s11, 2
    %s24 = sadd.s32 1, %s19
    %p25 = scmp.ge.s32.totalorder %s24, 1
    %s26 = scalar_select %p25, 0, %s24
    %s27 = sadd.s32 1, %s18
    %s28 = scalar_select %p25, %s27, %s18
    %p29 = scmp.ge.s32.totalorder %s28, 2
    %s30 = scalar_select %p29, 0, %s28
    %s31 = ssub.s32 %s18, %s30
    %p32 = scmp.eq.s32.totalorder %s31, 0
    %s34 = sadd.s32 %s33, 1
    %s35 = scalar_select %p32, %s33, %s34
    %p38 = pneg %p32
    %p39 = scmp.eq.s32.totalorder %s11, 1
    %p40 = por %p38, %p39
    %p41 = scmp.ne.s32.totalorder %s33, %s36
    %p42 = scmp.eq.s32.totalorder %s11, 0
    %p43 = por %p41, %p42
    %p44 = scmp.ne.s32.totalorder %s33, %s36
    %p45 = scmp.eq.s32.totalorder %s16, 1
    %p46 = por %p44, %p45
    %p47 = scmp.ne.s32.totalorder %s36, %s37
    %p48 = scmp.eq.s32.totalorder %s16, 0
    %p49 = por %p47, %p48
    %p50 = scmp.ne.s32.totalorder %s36, %s37
    %p51 = scmp.eq.s32.totalorder %s17, 1
    %p52 = por %p50, %p51
    %p54 = scmp.ne.s32.totalorder %s37, %s53
    %p55 = scmp.eq.s32.totalorder %s17, 0
    %p56 = por %p54, %p55
    %s57 = ssub.s32 %s19, %s26
    %p58 = scmp.eq.s32.totalorder %s57, 0
    %s60 = sadd.s32 %s59, 1
    %s61 = scalar_select %p58, %s59, %s60
    %p64 = pneg %p58
    %p65 = scmp.eq.s32.totalorder %s11, 1
    %p66 = por %p64, %p65
    %p67 = scmp.ne.s32.totalorder %s59, %s62
    %p68 = scmp.eq.s32.totalorder %s11, 0
    %p69 = por %p67, %p68
    %p70 = scmp.ne.s32.totalorder %s59, %s62
    %p71 = scmp.eq.s32.totalorder %s16, 1
    %p72 = por %p70, %p71
    %p73 = scmp.ne.s32.totalorder %s62, %s63
    %p74 = scmp.eq.s32.totalorder %s16, 0
    %p75 = por %p73, %p74
    %p76 = scmp.ne.s32.totalorder %s62, %s63
    %p77 = scmp.eq.s32.totalorder %s17, 1
    %p78 = por %p76, %p77
    %p80 = scmp.ne.s32.totalorder %s63, %s79
    %p81 = scmp.eq.s32.totalorder %s17, 0
    %p82 = por %p80, %p81
    %s83 = ssub.s32 %s18, %s30
    %s84 = ssub.s32 %s19, %s26
    %s85 = sor.u32 %s83, %s84
    %p86 = scmp.eq.s32.totalorder %s85, 0
    %s88 = sadd.s32 %s87, 1
    %s89 = scalar_select %p86, %s87, %s88
    %p92 = pneg %p86
    %p93 = scmp.eq.s32.totalorder %s11, 1
    %p94 = por %p92, %p93
    %p95 = scmp.ne.s32.totalorder %s87, %s90
    %p96 = scmp.eq.s32.totalorder %s11, 0
    %p97 = por %p95, %p96
    %p98 = scmp.ne.s32.totalorder %s87, %s90
    %p99 = scmp.eq.s32.totalorder %s16, 1
    %p100 = por %p98, %p99
    %p101 = scmp.ne.s32.totalorder %s90, %s91
    %p102 = scmp.eq.s32.totalorder %s16, 0
    %p103 = por %p101, %p102
    %p104 = scmp.ne.s32.totalorder %s90, %s91
    %p105 = scmp.eq.s32.totalorder %s17, 1
    %p106 = por %p104, %p105
    %p108 = scmp.ne.s32.totalorder %s91, %s107
    %p109 = scmp.eq.s32.totalorder %s17, 0
    %p110 = por %p108, %p109
    %s111 = ssub.s32 %s18, %s30
    %s112 = ssub.s32 %s19, %s26
    %s113 = sor.u32 %s111, %s112
    %p114 = scmp.eq.s32.totalorder %s113, 0
    %s116 = sadd.s32 %s115, 1
    %s117 = scalar_select %p114, %s115, %s116
    %p120 = pneg %p114
    %p121 = scmp.eq.s32.totalorder %s11, 1
    %p122 = por %p120, %p121
    %p123 = scmp.ne.s32.totalorder %s115, %s118
    %p124 = scmp.eq.s32.totalorder %s11, 0
    %p125 = por %p123, %p124
    %p126 = scmp.ne.s32.totalorder %s115, %s118
    %p127 = scmp.eq.s32.totalorder %s16, 1
    %p128 = por %p126, %p127
    %p129 = scmp.ne.s32.totalorder %s118, %s119
    %p130 = scmp.eq.s32.totalorder %s16, 0
    %p131 = por %p129, %p130
    %p132 = scmp.ne.s32.totalorder %s118, %s119
    %p133 = scmp.eq.s32.totalorder %s17, 1
    %p134 = por %p132, %p133
    %p136 = scmp.ne.s32.totalorder %s119, %s135
    %p137 = scmp.eq.s32.totalorder %s17, 0
    %p138 = por %p136, %p137
    %s139 = ssub.s32 %s18, %s30
    %s140 = ssub.s32 %s19, %s26
    %s141 = sor.u32 %s139, %s140
    %p142 = scmp.eq.s32.totalorder %s141, 0
    %s144 = sadd.s32 %s143, 1
    %s145 = scalar_select %p142, %s143, %s144
    %p148 = pneg %p142
    %p149 = scmp.eq.s32.totalorder %s11, 1
    %p150 = por %p148, %p149
    %p151 = scmp.ne.s32.totalorder %s143, %s146
    %p152 = scmp.eq.s32.totalorder %s11, 0
    %p153 = por %p151, %p152
    %p154 = scmp.ne.s32.totalorder %s143, %s146
    %p155 = scmp.eq.s32.totalorder %s16, 1
    %p156 = por %p154, %p155
    %p157 = scmp.ne.s32.totalorder %s146, %s147
    %p158 = scmp.eq.s32.totalorder %s16, 0
    %p159 = por %p157, %p158
    %p160 = scmp.ne.s32.totalorder %s146, %s147
    %p161 = scmp.eq.s32.totalorder %s17, 1
    %p162 = por %p160, %p161
    %p164 = scmp.ne.s32.totalorder %s147, %s163
    %p165 = scmp.eq.s32.totalorder %s17, 0
    %p166 = por %p164, %p165
    %p167 = scmp.le.s32.totalorder 1, %s11
    %p168 = scmp.lt.s32.totalorder %s11, 3
    %p169 = pnand %p167, %p168
    %p170 = pneg %p169
    // Predicated region
    $region9: #{inception_forward.4} parent=5 // pred_check
      _
    $region10: #{inception_forward.4} parent=5 // pred_check_branch
      %172 = sbr.rel (%p169) target = $region12
    $region11: #{inception_forward.4} parent=5 // pred_region
      %s173 = ssub.s32 %s11, 1
      // Predicated region
      $region13: #{inception_forward.4} parent=11 // pred_check
        %p174 = pneg %p75
      $region14: #{inception_forward.4} parent=11 // pred_check_branch
        %176 = sbr.rel (%p174) target = $region16
      $region15: #{inception_forward.4} parent=11 // pred_region
        %p177 = scmp.lt.s32.totalorder %s21, 0
        %s178 = scalar_select %p177, %s21, 0
        %s179 = smul.addr %s178, 4
        %s180 = scalar_lea.vmem %s1, %s179
      $region16: #{inception_forward.4} parent=11 // pred_fallthru
        _
    $region12: #{inception_forward.4} parent=5 // pred_fallthru
      _
    %p181 = scmp.lt.s32.totalorder %s11, 2
    // Predicated region
    $region17: #{inception_forward.4} parent=5 // pred_check
      %p182 = pneg %p181
    $region18: #{inception_forward.4} parent=5 // pred_check_branch
      %184 = sbr.rel (%p182) target = $region20
    $region19: #{inception_forward.4} parent=5 // pred_region
      // Predicated region
      $region21: #{inception_forward.4} parent=19 // pred_check
        %p185 = pneg %p43
      $region22: #{inception_forward.4} parent=19 // pred_check_branch
        %187 = sbr.rel (%p185) target = $region24
      $region23: #{inception_forward.4} parent=19 // pred_region
        %s188 = smul.u32 8, %s18
        %p189 = scmp.lt.s32.totalorder %s188, 15
        %s190 = scalar_select %p189, %s188, 15
        %s191 = smul.addr %s190, 4
        %s192 = scalar_lea.vmem %s0, %s191
        %s193 = smul.u32 8, %s18
      $region24: #{inception_forward.4} parent=19 // pred_fallthru
        _
    $region20: #{inception_forward.4} parent=5 // pred_fallthru
      _
    %p194 = scmp.le.s32.totalorder 1, %s11
    %p195 = scmp.lt.s32.totalorder %s11, 3
    %p196 = pnand %p194, %p195
    %p197 = pneg %p196
    // Predicated region
    $region25: #{inception_forward.4} parent=5 // pred_check
      _
    $region26: #{inception_forward.4} parent=5 // pred_check_branch
      %199 = sbr.rel (%p196) target = $region28
    $region27: #{inception_forward.4} parent=5 // pred_region
      %s200 = ssub.s32 %s11, 1
      %s201 = smul.u32 8, %s20
      %p202 = scmp.lt.s32.totalorder %s201, 15
      %s203 = scalar_select %p202, %s201, 15
      %s204 = smul.addr %s203, 4
      %s205 = scalar_lea.vmem %s0, %s204
      %p206 = pneg %p49
      %p207 = pneg %p46
      %p208 = scmp.lt.s32.totalorder %s21, 0
      %s209 = scalar_select %p208, %s21, 0
      %s210 = smul.addr %s209, 4
      %s211 = scalar_lea.vmem %s1, %s210
      %p212 = pneg %p75
      %p213 = pneg %p72
      %p214 = pneg %p103
      %p215 = pneg %p100
      %s216 = smul.u32 8, %s20
      %p217 = scmp.lt.s32.totalorder %s216, 15
      %s218 = scalar_select %p217, %s216, 15
      %p219 = scmp.lt.s32.totalorder %s21, 0
      %s220 = scalar_select %p219, %s21, 0
      %s221 = sadd.s32 %s220, %s218
      %s222 = smul.addr %s221, 4
      %s223 = scalar_lea.vmem %s2, %s222
      %p224 = pneg %p131
      %p225 = pneg %p128
      %p226 = scmp.lt.s32.totalorder %s20, 1
      %s227 = scalar_select %p226, %s20, 1
      %p228 = scmp.lt.s32.totalorder %s21, 0
      %s229 = scalar_select %p228, %s21, 0
      %s230 = sadd.s32 %s229, %s227
      %s231 = scalar_lea.vmem %s3, %s230
      %p232 = pneg %p159
      %p233 = pneg %p156
      %p234 = scmp.lt.s32.totalorder %s20, 1
      %s235 = scalar_select %p234, %s20, 1
      %p236 = scmp.lt.s32.totalorder %s21, 0
      %s237 = scalar_select %p236, %s21, 0
      %s238 = sadd.s32 %s237, %s235
      %s239 = scalar_lea.vmem %s4, %s238
      %s240 = smul.u32 8, %s20
      %p241 = scmp.lt.s32.totalorder %s240, 15
      %s242 = scalar_select %p241, %s240, 15
      %s243 = smul.addr %s242, 4
      %s244 = scalar_lea.vmem %s0, %s243
      %s245 = smul.u32 8, %s20
      %p246 = scmp.lt.s32.totalorder %s21, 0
      %s247 = scalar_select %p246, %s21, 0
      %s248 = smul.addr %s247, 4
      %s249 = scalar_lea.vmem %s1, %s248
      %s250 = smul.u32 8, %s20
      %p251 = scmp.lt.s32.totalorder %s250, 15
      %s252 = scalar_select %p251, %s250, 15
      %p253 = scmp.lt.s32.totalorder %s21, 0
      %s254 = scalar_select %p253, %s21, 0
      %s255 = sadd.s32 %s254, %s252
      %s256 = smul.addr %s255, 4
      %s257 = scalar_lea.vmem %s2, %s256
      %s258 = smul.u32 8, %s20
      %p259 = scmp.lt.s32.totalorder %s20, 1
      %s260 = scalar_select %p259, %s20, 1
      %p261 = scmp.lt.s32.totalorder %s21, 0
      %s262 = scalar_select %p261, %s21, 0
      %s263 = sadd.s32 %s262, %s260
      %s264 = scalar_lea.vmem %s3, %s263
      %p265 = scmp.lt.s32.totalorder %s20, 1
      %s266 = scalar_select %p265, %s20, 1
      %p267 = scmp.lt.s32.totalorder %s21, 0
      %s268 = scalar_select %p267, %s21, 0
      %s269 = sadd.s32 %s268, %s266
      %s270 = scalar_lea.vmem %s4, %s269
      %v272 = vld [vmem:[%s244] sm:$0xf]
      %v273 = vld [vmem:[%s244 + $0x4] sm:$0xf]
      %v274 = vld [vmem:[%s244 + $0x8] sm:$0xf]
      %v275 = vld [vmem:[%s244 + $0xc] sm:$0xf]
      %v276 = vld [vmem:[%s244 + $0x10] sm:$0xf]
      %v277 = vld [vmem:[%s244 + $0x14] sm:$0xf]
      %v278 = vld [vmem:[%s244 + $0x18] sm:$0xf]
      %v279 = vld [vmem:[%s244 + $0x1c] sm:$0xf]
      %v280 = vld [vmem:[%s249] sm:$0xf]
      %v281 = vld [vmem:[%s249 + $0x4] sm:$0xf]
      %v282 = vld [vmem:[%s249 + $0x8] sm:$0xf]
      %v283 = vld [vmem:[%s249 + $0xc] sm:$0xf]
      %v292 = vunpack.c.l.b16 %v272
      %v293 = vunpack.c.l.b16 %v273
      %v294 = vunpack.c.l.b16 %v274
      %v295 = vunpack.c.l.b16 %v275
      %v296 = vunpack.c.l.b16 %v276
      %v297 = vunpack.c.l.b16 %v277
      %v298 = vunpack.c.l.b16 %v278
      %v299 = vunpack.c.l.b16 %v279
      %v300 = vpack.c.b16 %v293, %v292
      %v301 = vpack.c.b16 %v295, %v294
      %v302 = vpack.c.b16 %v297, %v296
      %v303 = vpack.c.b16 %v299, %v298
      %v308 = vunpack.c.l.b16 %v280
      %v309 = vunpack.c.l.b16 %v281
      %v310 = vunpack.c.l.b16 %v282
      %v311 = vunpack.c.l.b16 %v283
      %v312 = vpack.c.b16 %v309, %v308
      %v313 = vpack.c.b16 %v311, %v310
      %vm316 = vcmask 261120
      %v318 = vsel %vm316, %v300, 0
      %v321 = vsel %vm316, %v301, 0
      %v324 = vsel %vm316, %v302, 0
      %v327 = vsel %vm316, %v303, 0
      %329 = vmatprep.subr.bf16.mxu0 0
      %330 = vmatpush1.bf16.msra.mxu0 0
      %331 = vmatprep.subr.bf16.mxu0 0
      %332 = vmatpush1.bf16.msra.mxu0 0
      %333 = vmatprep.subr.bf16.mxu0 0
      %334 = vmatpush1.bf16.msra.mxu0 0
      %335 = vmatprep.subr.bf16.mxu0 0
      %336 = vmatpush1.bf16.msra.mxu0 0
      %337 = vmatprep.subr.bf16.mxu0 0
      %338 = vmatpush1.bf16.msra.mxu0 0
      %339 = vmatprep.subr.bf16.mxu0 0
      %340 = vmatpush1.bf16.msra.mxu0 0
      %341 = vmatprep.subr.bf16.mxu0 0
      %342 = vmatpush1.bf16.msra.mxu0 %v313
      %343 = vmatprep.subr.bf16.mxu0 0
      %344 = vmatpush1.bf16.msra.mxu0 %v312
      %345 = vmatprep.subr.bf16.mxu0 0
      %346 = vmatpush2.bf16.msra.mxu0 0
      %347 = vmatprep.subr.bf16.mxu0 0
      %348 = vmatpush2.bf16.msra.mxu0 0
      %349 = vmatprep.subr.bf16.mxu0 0
      %350 = vmatpush2.bf16.msra.mxu0 0
      %351 = vmatprep.subr.bf16.mxu0 0
      %352 = vmatpush2.bf16.msra.mxu0 0
      %353 = vmatprep.subr.bf16.mxu0 0
      %354 = vmatpush2.bf16.msra.mxu0 0
      %355 = vmatprep.subr.bf16.mxu0 0
      %356 = vmatpush2.bf16.msra.mxu0 0
      %357 = vmatprep.subr.bf16.mxu0 0
      %358 = vmatpush2.bf16.msra.mxu0 0
      %359 = vmatprep.subr.bf16.mxu0 0
      %360 = vmatpush2.bf16.msra.mxu0 0
      %361 = vmatprep.mubr.bf16.mxu0 0
      %362 = vmatmul.mubr.bf16.gmra.mxu0 %v318
      %v363 = vpop.f32.mrf.mxu0
      %v364 = vadd.f32 0.0, %v363
      %v365 = vpop.f32.mrf.mxu0
      %v366 = vpop.f32.mrf.mxu0
      %v367 = vadd.f32 0.0, %v366
      %v368 = vpop.f32.mrf.mxu0
      %369 = vmatprep.mubr.bf16.mxu0 0
      %370 = vmatmul.mubr.bf16.gmra.mxu0 %v321
      %v371 = vpop.f32.mrf.mxu0
      %v372 = vadd.f32 0.0, %v371
      %v373 = vpop.f32.mrf.mxu0
      %v374 = vpop.f32.mrf.mxu0
      %v375 = vadd.f32 0.0, %v374
      %v376 = vpop.f32.mrf.mxu0
      %377 = vmatprep.mubr.bf16.mxu0 0
      %378 = vmatmul.mubr.bf16.gmra.mxu0 %v324
      %v379 = vpop.f32.mrf.mxu0
      %v380 = vadd.f32 0.0, %v379
      %v381 = vpop.f32.mrf.mxu0
      %v382 = vpop.f32.mrf.mxu0
      %v383 = vadd.f32 0.0, %v382
      %v384 = vpop.f32.mrf.mxu0
      %385 = vmatprep.mubr.bf16.mxu0 0
      %386 = vmatmul.mubr.bf16.gmra.mxu0 %v327
      %v387 = vpop.f32.mrf.mxu0
      %v388 = vadd.f32 0.0, %v387
      %v389 = vpop.f32.mrf.mxu0
      %v390 = vpop.f32.mrf.mxu0
      %v391 = vadd.f32 0.0, %v390
      %v392 = vpop.f32.mrf.mxu0
      %393 = vdwg.mxu0
      %v394 = vpack.c.bf16 %v367, %v364
      %v395 = vpack.c.bf16 %v375, %v372
      %v396 = vpack.c.bf16 %v383, %v380
      %v397 = vpack.c.bf16 %v391, %v388
      %v402 = vunpack.c.l.b16 %v394
      %v403 = vunpack.c.h.b16 %v394
      %v404 = vunpack.c.l.b16 %v395
      %v405 = vunpack.c.h.b16 %v395
      %v406 = vunpack.c.l.b16 %v396
      %v407 = vunpack.c.h.b16 %v396
      %v408 = vunpack.c.l.b16 %v397
      %v409 = vunpack.c.h.b16 %v397
      %v410 = vpack.c.b16 %v402, %v402
      %v411 = vpack.c.b16 %v403, %v403
      %v412 = vpack.c.b16 %v404, %v404
      %v413 = vpack.c.b16 %v405, %v405
      %v414 = vpack.c.b16 %v406, %v406
      %v415 = vpack.c.b16 %v407, %v407
      %v416 = vpack.c.b16 %v408, %v408
      %v417 = vpack.c.b16 %v409, %v409
      %426 = vst [vmem:[%s257] sm:$0xf] %v410
      %427 = vst [vmem:[%s257 + $0x4] sm:$0xf] %v411
      %428 = vst [vmem:[%s257 + $0x8] sm:$0xf] %v412
      %429 = vst [vmem:[%s257 + $0xc] sm:$0xf] %v413
      %430 = vst [vmem:[%s257 + $0x10] sm:$0xf] %v414
      %431 = vst [vmem:[%s257 + $0x14] sm:$0xf] %v415
      %432 = vst [vmem:[%s257 + $0x18] sm:$0xf] %v416
      %433 = vst [vmem:[%s257 + $0x1c] sm:$0xf] %v417
      %v434 = vadd.f32 %v364, %v367
      %v435 = vadd.f32 %v434, %v372
      %v436 = vadd.f32 %v435, %v375
      %v437 = vadd.f32 %v436, %v380
      %v438 = vadd.f32 %v437, %v383
      %v439 = vadd.f32 %v438, %v388
      %v440 = vadd.f32 %v439, %v391
      %v441 = vrot.slane %v440, 4
      %v442 = vadd.f32 %v440, %v441
      %v443 = vrot.slane %v442, 2
      %v444 = vadd.f32 %v442, %v443
      %v445 = vrot.slane %v444, 1
      %v446 = vadd.f32 %v444, %v445
      %447 = vst [vmem:[%s264] sm:$0x1] %v446
      %v448 = vmul.f32 %v364, %v364
      %v449 = vmul.f32 %v367, %v367
      %v450 = vmul.f32 %v372, %v372
      %v451 = vmul.f32 %v375, %v375
      %v452 = vmul.f32 %v380, %v380
      %v453 = vmul.f32 %v383, %v383
      %v454 = vmul.f32 %v388, %v388
      %v455 = vmul.f32 %v391, %v391
      %v456 = vadd.f32 %v448, %v449
      %v457 = vadd.f32 %v456, %v450
      %v458 = vadd.f32 %v457, %v451
      %v459 = vadd.f32 %v458, %v452
      %v460 = vadd.f32 %v459, %v453
      %v461 = vadd.f32 %v460, %v454
      %v462 = vadd.f32 %v461, %v455
      %v463 = vrot.slane %v462, 4
      %v464 = vadd.f32 %v462, %v463
      %v465 = vrot.slane %v464, 2
      %v466 = vadd.f32 %v464, %v465
      %v467 = vrot.slane %v466, 1
      %v468 = vadd.f32 %v466, %v467
      %469 = vst [vmem:[%s270] sm:$0x1] %v468
      %s470 = smul.u32 8, %s20
      %p471 = scmp.lt.s32.totalorder %s470, 15
      %s472 = scalar_select %p471, %s470, 15
      %p473 = scmp.lt.s32.totalorder %s21, 0
      %s474 = scalar_select %p473, %s21, 0
      %s475 = sadd.s32 %s474, %s472
      %s476 = smul.addr %s475, 4
      %s477 = scalar_lea.vmem %s2, %s476
      %p478 = scmp.lt.s32.totalorder %s20, 1
      %s479 = scalar_select %p478, %s20, 1
      %p480 = scmp.lt.s32.totalorder %s21, 0
      %s481 = scalar_select %p480, %s21, 0
      %s482 = sadd.s32 %s481, %s479
      %s483 = scalar_lea.vmem %s3, %s482
      %p484 = scmp.lt.s32.totalorder %s20, 1
      %s485 = scalar_select %p484, %s20, 1
      %p486 = scmp.lt.s32.totalorder %s21, 0
      %s487 = scalar_select %p486, %s21, 0
      %s488 = sadd.s32 %s487, %s485
      %s489 = scalar_lea.vmem %s4, %s488
      // Predicated region
      $region29: #{inception_forward.4} parent=27 // pred_check
        %p490 = pneg %p100
      $region30: #{inception_forward.4} parent=27 // pred_check_branch
        %492 = sbr.rel (%p490) target = $region32
      $region31: #{inception_forward.4} parent=27 // pred_region
        %s493 = smul.u32 8, %s20
      $region32: #{inception_forward.4} parent=27 // pred_fallthru
        _
      // Predicated region
      $region33: #{inception_forward.4} parent=27 // pred_check
        %p494 = pneg %p128
      $region34: #{inception_forward.4} parent=27 // pred_check_branch
        %496 = sbr.rel (%p494) target = $region36
      $region35: #{inception_forward.4} parent=27 // pred_region
        _
      $region36: #{inception_forward.4} parent=27 // pred_fallthru
        _
      // Predicated region
      $region37: #{inception_forward.4} parent=27 // pred_check
        %p497 = pneg %p156
      $region38: #{inception_forward.4} parent=27 // pred_check_branch
        %499 = sbr.rel (%p497) target = $region40
      $region39: #{inception_forward.4} parent=27 // pred_region
        _
      $region40: #{inception_forward.4} parent=27 // pred_fallthru
        _
    $region28: #{inception_forward.4} parent=5 // pred_fallthru
      _
    %p500 = scmp.le.s32.totalorder 2, %s11
    // Predicated region
    $region41: #{inception_forward.4} parent=5 // pred_check
      %p501 = pneg %p500
    $region42: #{inception_forward.4} parent=5 // pred_check_branch
      %503 = sbr.rel (%p501) target = $region44
    $region43: #{inception_forward.4} parent=5 // pred_region
      %s504 = ssub.s32 %s11, 2
      // Predicated region
      $region45: #{inception_forward.4} parent=43 // pred_check
        %p505 = pneg %p106
      $region46: #{inception_forward.4} parent=43 // pred_check_branch
        %507 = sbr.rel (%p505) target = $region48
      $region47: #{inception_forward.4} parent=43 // pred_region
        %s508 = smul.u32 8, %s22
        %p509 = scmp.lt.s32.totalorder %s508, 15
        %s510 = scalar_select %p509, %s508, 15
        %p511 = scmp.lt.s32.totalorder %s23, 0
        %s512 = scalar_select %p511, %s23, 0
        %s513 = sadd.s32 %s512, %s510
        %s514 = smul.addr %s513, 4
        %s515 = scalar_lea.vmem %s2, %s514
      $region48: #{inception_forward.4} parent=43 // pred_fallthru
        _
      // Predicated region
      $region49: #{inception_forward.4} parent=43 // pred_check
        %p516 = pneg %p134
      $region50: #{inception_forward.4} parent=43 // pred_check_branch
        %518 = sbr.rel (%p516) target = $region52
      $region51: #{inception_forward.4} parent=43 // pred_region
        %p519 = scmp.lt.s32.totalorder %s22, 1
        %s520 = scalar_select %p519, %s22, 1
        %p521 = scmp.lt.s32.totalorder %s23, 0
        %s522 = scalar_select %p521, %s23, 0
        %s523 = sadd.s32 %s522, %s520
        %s524 = scalar_lea.vmem %s3, %s523
      $region52: #{inception_forward.4} parent=43 // pred_fallthru
        _
      // Predicated region
      $region53: #{inception_forward.4} parent=43 // pred_check
        %p525 = pneg %p162
      $region54: #{inception_forward.4} parent=43 // pred_check_branch
        %527 = sbr.rel (%p525) target = $region56
      $region55: #{inception_forward.4} parent=43 // pred_region
        %p528 = scmp.lt.s32.totalorder %s22, 1
        %s529 = scalar_select %p528, %s22, 1
        %p530 = scmp.lt.s32.totalorder %s23, 0
        %s531 = scalar_select %p530, %s23, 0
        %s532 = sadd.s32 %s531, %s529
        %s533 = scalar_lea.vmem %s4, %s532
      $region56: #{inception_forward.4} parent=43 // pred_fallthru
        _
    $region44: #{inception_forward.4} parent=5 // pred_fallthru
      _
  $region6: #{inception_forward.4} parent=0 // loop_footer
    %s15 = sadd.s32 1, %s11
  $region7: #{inception_forward.4} parent=0 // loop_footer_branch
    %10 = sbr.rel target = $region3
  $region8: #{inception_forward.4} parent=0 // loop_exit
    _

// kernel: inception_forward.5
$region0: #{inception_forward.5}
  #allocation0 [shape = 'u32[]', space=smem, size = 0x4, offset = 0x4, fixed_abs, tag = 'smem constant byte address 0x4 - core index']
  #allocation1 [shape = 'u32[144,128]{1,0:T(1,128)}', space=vmem, size = 0x12000, scoped, tag = 'internal scratch']
  %s0 = inlined_call_operand.vmem [shape: bf16[128,288], index: 0, kind: input, shape index: {}]
  %s1 = inlined_call_operand.vmem [shape: bf16[288,128], index: 1, kind: input, shape index: {}]
  %s2 = inlined_call_operand.vmem [shape: bf16[128,128], index: 2, kind: output, shape index: {0}]
  %s3 = inlined_call_operand.vmem [shape: f32[2,1,128], index: 3, kind: output, shape index: {1}]
  %s4 = inlined_call_operand.vmem [shape: f32[2,1,128], index: 4, kind: output, shape index: {2}]
  %5 = xla_tuple %s2, %s3, %s4
  %s6 = sld [smem:[#allocation0]]
  $region57: #{inception_forward.5} parent=0
    _
  %s8 = ssub.s32 1, %s6
  %s9 = scalar_select 0, %s8, %s6
  loop: start=0, step=1, limit=4
  $region2: #{inception_forward.5} parent=0 // loop_pre_header
    _
  $region3: #{inception_forward.5} parent=0 // loop_header
    %s11 = sphi 0, %s15
    %p12 = scmp.ge.s32.totalorder %s11, 4
    %s18 = sphi 0, %s30
    %s19 = sphi 0, %s26
    %s20 = sphi 0, %s18
    %s21 = sphi 0, %s19
    %s22 = sphi 0, %s20
    %s23 = sphi 0, %s21
    %s33 = sphi 0, %s35
    %s36 = sphi 0, %s33
    %s37 = sphi 0, %s36
    %s53 = sphi 0, %s37
    %s59 = sphi 0, %s61
    %s62 = sphi 0, %s59
    %s63 = sphi 0, %s62
    %s79 = sphi 0, %s63
    %s87 = sphi 0, %s89
    %s90 = sphi 0, %s87
    %s91 = sphi 0, %s90
    %s107 = sphi 0, %s91
    %s115 = sphi 0, %s117
    %s118 = sphi 0, %s115
    %s119 = sphi 0, %s118
    %s135 = sphi 0, %s119
    %s143 = sphi 0, %s145
    %s146 = sphi 0, %s143
    %s147 = sphi 0, %s146
    %s163 = sphi 0, %s147
  $region4: #{inception_forward.5} parent=0 // loop_header_branch
    %14 = sbr.rel (%p12) target = $region8
  $region5: #{inception_forward.5} parent=0 // loop_body
    %s16 = ssub.s32 %s11, 1
    %s17 = ssub.s32 %s11, 2
    %s24 = sadd.s32 1, %s19
    %p25 = scmp.ge.s32.totalorder %s24, 1
    %s26 = scalar_select %p25, 0, %s24
    %s27 = sadd.s32 1, %s18
    %s28 = scalar_select %p25, %s27, %s18
    %p29 = scmp.ge.s32.totalorder %s28, 2
    %s30 = scalar_select %p29, 0, %s28
    %s31 = ssub.s32 %s18, %s30
    %p32 = scmp.eq.s32.totalorder %s31, 0
    %s34 = sadd.s32 %s33, 1
    %s35 = scalar_select %p32, %s33, %s34
    %p38 = pneg %p32
    %p39 = scmp.eq.s32.totalorder %s11, 1
    %p40 = por %p38, %p39
    %p41 = scmp.ne.s32.totalorder %s33, %s36
    %p42 = scmp.eq.s32.totalorder %s11, 0
    %p43 = por %p41, %p42
    %p44 = scmp.ne.s32.totalorder %s33, %s36
    %p45 = scmp.eq.s32.totalorder %s16, 1
    %p46 = por %p44, %p45
    %p47 = scmp.ne.s32.totalorder %s36, %s37
    %p48 = scmp.eq.s32.totalorder %s16, 0
    %p49 = por %p47, %p48
    %p50 = scmp.ne.s32.totalorder %s36, %s37
    %p51 = scmp.eq.s32.totalorder %s17, 1
    %p52 = por %p50, %p51
    %p54 = scmp.ne.s32.totalorder %s37, %s53
    %p55 = scmp.eq.s32.totalorder %s17, 0
    %p56 = por %p54, %p55
    %s57 = ssub.s32 %s19, %s26
    %p58 = scmp.eq.s32.totalorder %s57, 0
    %s60 = sadd.s32 %s59, 1
    %s61 = scalar_select %p58, %s59, %s60
    %p64 = pneg %p58
    %p65 = scmp.eq.s32.totalorder %s11, 1
    %p66 = por %p64, %p65
    %p67 = scmp.ne.s32.totalorder %s59, %s62
    %p68 = scmp.eq.s32.totalorder %s11, 0
    %p69 = por %p67, %p68
    %p70 = scmp.ne.s32.totalorder %s59, %s62
    %p71 = scmp.eq.s32.totalorder %s16, 1
    %p72 = por %p70, %p71
    %p73 = scmp.ne.s32.totalorder %s62, %s63
    %p74 = scmp.eq.s32.totalorder %s16, 0
    %p75 = por %p73, %p74
    %p76 = scmp.ne.s32.totalorder %s62, %s63
    %p77 = scmp.eq.s32.totalorder %s17, 1
    %p78 = por %p76, %p77
    %p80 = scmp.ne.s32.totalorder %s63, %s79
    %p81 = scmp.eq.s32.totalorder %s17, 0
    %p82 = por %p80, %p81
    %s83 = ssub.s32 %s18, %s30
    %s84 = ssub.s32 %s19, %s26
    %s85 = sor.u32 %s83, %s84
    %p86 = scmp.eq.s32.totalorder %s85, 0
    %s88 = sadd.s32 %s87, 1
    %s89 = scalar_select %p86, %s87, %s88
    %p92 = pneg %p86
    %p93 = scmp.eq.s32.totalorder %s11, 1
    %p94 = por %p92, %p93
    %p95 = scmp.ne.s32.totalorder %s87, %s90
    %p96 = scmp.eq.s32.totalorder %s11, 0
    %p97 = por %p95, %p96
    %p98 = scmp.ne.s32.totalorder %s87, %s90
    %p99 = scmp.eq.s32.totalorder %s16, 1
    %p100 = por %p98, %p99
    %p101 = scmp.ne.s32.totalorder %s90, %s91
    %p102 = scmp.eq.s32.totalorder %s16, 0
    %p103 = por %p101, %p102
    %p104 = scmp.ne.s32.totalorder %s90, %s91
    %p105 = scmp.eq.s32.totalorder %s17, 1
    %p106 = por %p104, %p105
    %p108 = scmp.ne.s32.totalorder %s91, %s107
    %p109 = scmp.eq.s32.totalorder %s17, 0
    %p110 = por %p108, %p109
    %s111 = ssub.s32 %s18, %s30
    %s112 = ssub.s32 %s19, %s26
    %s113 = sor.u32 %s111, %s112
    %p114 = scmp.eq.s32.totalorder %s113, 0
    %s116 = sadd.s32 %s115, 1
    %s117 = scalar_select %p114, %s115, %s116
    %p120 = pneg %p114
    %p121 = scmp.eq.s32.totalorder %s11, 1
    %p122 = por %p120, %p121
    %p123 = scmp.ne.s32.totalorder %s115, %s118
    %p124 = scmp.eq.s32.totalorder %s11, 0
    %p125 = por %p123, %p124
    %p126 = scmp.ne.s32.totalorder %s115, %s118
    %p127 = scmp.eq.s32.totalorder %s16, 1
    %p128 = por %p126, %p127
    %p129 = scmp.ne.s32.totalorder %s118, %s119
    %p130 = scmp.eq.s32.totalorder %s16, 0
    %p131 = por %p129, %p130
    %p132 = scmp.ne.s32.totalorder %s118, %s119
    %p133 = scmp.eq.s32.totalorder %s17, 1
    %p134 = por %p132, %p133
    %p136 = scmp.ne.s32.totalorder %s119, %s135
    %p137 = scmp.eq.s32.totalorder %s17, 0
    %p138 = por %p136, %p137
    %s139 = ssub.s32 %s18, %s30
    %s140 = ssub.s32 %s19, %s26
    %s141 = sor.u32 %s139, %s140
    %p142 = scmp.eq.s32.totalorder %s141, 0
    %s144 = sadd.s32 %s143, 1
    %s145 = scalar_select %p142, %s143, %s144
    %p148 = pneg %p142
    %p149 = scmp.eq.s32.totalorder %s11, 1
    %p150 = por %p148, %p149
    %p151 = scmp.ne.s32.totalorder %s143, %s146
    %p152 = scmp.eq.s32.totalorder %s11, 0
    %p153 = por %p151, %p152
    %p154 = scmp.ne.s32.totalorder %s143, %s146
    %p155 = scmp.eq.s32.totalorder %s16, 1
    %p156 = por %p154, %p155
    %p157 = scmp.ne.s32.totalorder %s146, %s147
    %p158 = scmp.eq.s32.totalorder %s16, 0
    %p159 = por %p157, %p158
    %p160 = scmp.ne.s32.totalorder %s146, %s147
    %p161 = scmp.eq.s32.totalorder %s17, 1
    %p162 = por %p160, %p161
    %p164 = scmp.ne.s32.totalorder %s147, %s163
    %p165 = scmp.eq.s32.totalorder %s17, 0
    %p166 = por %p164, %p165
    %p167 = scmp.le.s32.totalorder 1, %s11
    %p168 = scmp.lt.s32.totalorder %s11, 3
    %p169 = pnand %p167, %p168
    %p170 = pneg %p169
    // Predicated region
    $region9: #{inception_forward.5} parent=5 // pred_check
      _
    $region10: #{inception_forward.5} parent=5 // pred_check_branch
      %172 = sbr.rel (%p169) target = $region12
    $region11: #{inception_forward.5} parent=5 // pred_region
      %s173 = ssub.s32 %s11, 1
      // Predicated region
      $region13: #{inception_forward.5} parent=11 // pred_check
        %p174 = pneg %p75
      $region14: #{inception_forward.5} parent=11 // pred_check_branch
        %176 = sbr.rel (%p174) target = $region16
      $region15: #{inception_forward.5} parent=11 // pred_region
        %p177 = scmp.lt.s32.totalorder %s21, 0
        %s178 = scalar_select %p177, %s21, 0
        %s179 = smul.addr %s178, 4
        %s180 = scalar_lea.vmem %s1, %s179
      $region16: #{inception_forward.5} parent=11 // pred_fallthru
        _
    $region12: #{inception_forward.5} parent=5 // pred_fallthru
      _
    %p181 = scmp.lt.s32.totalorder %s11, 2
    // Predicated region
    $region17: #{inception_forward.5} parent=5 // pred_check
      %p182 = pneg %p181
    $region18: #{inception_forward.5} parent=5 // pred_check_branch
      %184 = sbr.rel (%p182) target = $region20
    $region19: #{inception_forward.5} parent=5 // pred_region
      // Predicated region
      $region21: #{inception_forward.5} parent=19 // pred_check
        %p185 = pneg %p43
      $region22: #{inception_forward.5} parent=19 // pred_check_branch
        %187 = sbr.rel (%p185) target = $region24
      $region23: #{inception_forward.5} parent=19 // pred_region
        %s188 = smul.u32 8, %s18
        %p189 = scmp.lt.s32.totalorder %s188, 15
        %s190 = scalar_select %p189, %s188, 15
        %s191 = smul.addr %s190, 3
        %s192 = smul.addr %s191, 4
        %s193 = scalar_lea.vmem %s0, %s192
        %s194 = smul.u32 8, %s18
      $region24: #{inception_forward.5} parent=19 // pred_fallthru
        _
    $region20: #{inception_forward.5} parent=5 // pred_fallthru
      _
    %p195 = scmp.le.s32.totalorder 1, %s11
    %p196 = scmp.lt.s32.totalorder %s11, 3
    %p197 = pnand %p195, %p196
    %p198 = pneg %p197
    // Predicated region
    $region25: #{inception_forward.5} parent=5 // pred_check
      _
    $region26: #{inception_forward.5} parent=5 // pred_check_branch
      %200 = sbr.rel (%p197) target = $region28
    $region27: #{inception_forward.5} parent=5 // pred_region
      %s201 = ssub.s32 %s11, 1
      %s202 = smul.u32 8, %s20
      %p203 = scmp.lt.s32.totalorder %s202, 15
      %s204 = scalar_select %p203, %s202, 15
      %s205 = smul.addr %s204, 3
      %s206 = smul.addr %s205, 4
      %s207 = scalar_lea.vmem %s0, %s206
      %p208 = pneg %p49
      %p209 = pneg %p46
      %p210 = scmp.lt.s32.totalorder %s21, 0
      %s211 = scalar_select %p210, %s21, 0
      %s212 = smul.addr %s211, 4
      %s213 = scalar_lea.vmem %s1, %s212
      %p214 = pneg %p75
      %p215 = pneg %p72
      %p216 = pneg %p103
      %p217 = pneg %p100
      %s218 = smul.u32 8, %s20
      %p219 = scmp.lt.s32.totalorder %s218, 15
      %s220 = scalar_select %p219, %s218, 15
      %p221 = scmp.lt.s32.totalorder %s21, 0
      %s222 = scalar_select %p221, %s21, 0
      %s223 = sadd.s32 %s222, %s220
      %s224 = smul.addr %s223, 4
      %s225 = scalar_lea.vmem %s2, %s224
      %p226 = pneg %p131
      %p227 = pneg %p128
      %p228 = scmp.lt.s32.totalorder %s20, 1
      %s229 = scalar_select %p228, %s20, 1
      %p230 = scmp.lt.s32.totalorder %s21, 0
      %s231 = scalar_select %p230, %s21, 0
      %s232 = sadd.s32 %s231, %s229
      %s233 = scalar_lea.vmem %s3, %s232
      %p234 = pneg %p159
      %p235 = pneg %p156
      %p236 = scmp.lt.s32.totalorder %s20, 1
      %s237 = scalar_select %p236, %s20, 1
      %p238 = scmp.lt.s32.totalorder %s21, 0
      %s239 = scalar_select %p238, %s21, 0
      %s240 = sadd.s32 %s239, %s237
      %s241 = scalar_lea.vmem %s4, %s240
      %s242 = smul.u32 8, %s20
      %p243 = scmp.lt.s32.totalorder %s242, 15
      %s244 = scalar_select %p243, %s242, 15
      %s245 = smul.addr %s244, 3
      %s246 = smul.addr %s245, 4
      %s247 = scalar_lea.vmem %s0, %s246
      %s248 = smul.u32 8, %s20
      %p249 = scmp.lt.s32.totalorder %s21, 0
      %s250 = scalar_select %p249, %s21, 0
      %s251 = smul.addr %s250, 4
      %s252 = scalar_lea.vmem %s1, %s251
      %s253 = smul.u32 8, %s20
      %p254 = scmp.lt.s32.totalorder %s253, 15
      %s255 = scalar_select %p254, %s253, 15
      %p256 = scmp.lt.s32.totalorder %s21, 0
      %s257 = scalar_select %p256, %s21, 0
      %s258 = sadd.s32 %s257, %s255
      %s259 = smul.addr %s258, 4
      %s260 = scalar_lea.vmem %s2, %s259
      %s261 = smul.u32 8, %s20
      %p262 = scmp.lt.s32.totalorder %s20, 1
      %s263 = scalar_select %p262, %s20, 1
      %p264 = scmp.lt.s32.totalorder %s21, 0
      %s265 = scalar_select %p264, %s21, 0
      %s266 = sadd.s32 %s265, %s263
      %s267 = scalar_lea.vmem %s3, %s266
      %p268 = scmp.lt.s32.totalorder %s20, 1
      %s269 = scalar_select %p268, %s20, 1
      %p270 = scmp.lt.s32.totalorder %s21, 0
      %s271 = scalar_select %p270, %s21, 0
      %s272 = sadd.s32 %s271, %s269
      %s273 = scalar_lea.vmem %s4, %s272
      %v275 = vld [vmem:[%s247] sm:$0xff]
      %v276 = vld [vmem:[%s247 + $0x8] sm:$0xf]
      %v277 = vld [vmem:[%s247 + $0xc] sm:$0xff]
      %v278 = vld [vmem:[%s247 + $0x14] sm:$0xf]
      %v279 = vld [vmem:[%s247 + $0x18] sm:$0xff]
      %v280 = vld [vmem:[%s247 + $0x20] sm:$0xf]
      %v281 = vld [vmem:[%s247 + $0x24] sm:$0xff]
      %v282 = vld [vmem:[%s247 + $0x2c] sm:$0xf]
      %v283 = vld [vmem:[%s247 + $0x30] sm:$0xff]
      %v284 = vld [vmem:[%s247 + $0x38] sm:$0xf]
      %v285 = vld [vmem:[%s247 + $0x3c] sm:$0xff]
      %v286 = vld [vmem:[%s247 + $0x44] sm:$0xf]
      %v287 = vld [vmem:[%s247 + $0x48] sm:$0xff]
      %v288 = vld [vmem:[%s247 + $0x50] sm:$0xf]
      %v289 = vld [vmem:[%s247 + $0x54] sm:$0xff]
      %v290 = vld [vmem:[%s247 + $0x5c] sm:$0xf]
      %v291 = vld [vmem:[%s252] sm:$0xf]
      %v292 = vld [vmem:[%s252 + $0x4] sm:$0xf]
      %v293 = vld [vmem:[%s252 + $0x8] sm:$0xf]
      %v294 = vld [vmem:[%s252 + $0xc] sm:$0xf]
      %v295 = vld [vmem:[%s252 + $0x10] sm:$0xf]
      %v296 = vld [vmem:[%s252 + $0x14] sm:$0xf]
      %v297 = vld [vmem:[%s252 + $0x18] sm:$0xf]
      %v298 = vld [vmem:[%s252 + $0x1c] sm:$0xf]
      %v299 = vld [vmem:[%s252 + $0x20] sm:$0xf]
      %v300 = vld [vmem:[%s252 + $0x24] sm:$0xf]
      %v301 = vld [vmem:[%s252 + $0x28] sm:$0xf]
      %v302 = vld [vmem:[%s252 + $0x2c] sm:$0xf]
      %v303 = vld [vmem:[%s252 + $0x30] sm:$0xf]
      %v304 = vld [vmem:[%s252 + $0x34] sm:$0xf]
      %v305 = vld [vmem:[%s252 + $0x38] sm:$0xf]
      %v306 = vld [vmem:[%s252 + $0x3c] sm:$0xf]
      %v307 = vld [vmem:[%s252 + $0x40] sm:$0xf]
      %v308 = vld [vmem:[%s252 + $0x44] sm:$0xf]
      %v309 = vld [vmem:[%s252 + $0x48] sm:$0xf]
      %v310 = vld [vmem:[%s252 + $0x4c] sm:$0xf]
      %v311 = vld [vmem:[%s252 + $0x50] sm:$0xf]
      %v312 = vld [vmem:[%s252 + $0x54] sm:$0xf]
      %v313 = vld [vmem:[%s252 + $0x58] sm:$0xf]
      %v314 = vld [vmem:[%s252 + $0x5c] sm:$0xf]
      %v315 = vld [vmem:[%s252 + $0x60] sm:$0xf]
      %v316 = vld [vmem:[%s252 + $0x64] sm:$0xf]
      %v317 = vld [vmem:[%s252 + $0x68] sm:$0xf]
      %v318 = vld [vmem:[%s252 + $0x6c] sm:$0xf]
      %v319 = vld [vmem:[%s252 + $0x70] sm:$0xf]
      %v320 = vld [vmem:[%s252 + $0x74] sm:$0xf]
      %v321 = vld [vmem:[%s252 + $0x78] sm:$0xf]
      %v322 = vld [vmem:[%s252 + $0x7c] sm:$0xf]
      %v323 = vld [vmem:[%s252 + $0x80] sm:$0xf]
      %v324 = vld [vmem:[%s252 + $0x84] sm:$0xf]
      %v325 = vld [vmem:[%s252 + $0x88] sm:$0xf]
      %v326 = vld [vmem:[%s252 + $0x8c] sm:$0xf]
      %v343 = vunpack.c.l.b16 %v275
      %v344 = vunpack.c.h.b16 %v275
      %v345 = vunpack.c.l.b16 %v276
      %v346 = vunpack.c.l.b16 %v277
      %v347 = vunpack.c.h.b16 %v277
      %v348 = vunpack.c.l.b16 %v278
      %v349 = vunpack.c.l.b16 %v279
      %v350 = vunpack.c.h.b16 %v279
      %v351 = vunpack.c.l.b16 %v280
      %v352 = vunpack.c.l.b16 %v281
      %v353 = vunpack.c.h.b16 %v281
      %v354 = vunpack.c.l.b16 %v282
      %v355 = vunpack.c.l.b16 %v283
      %v356 = vunpack.c.h.b16 %v283
      %v357 = vunpack.c.l.b16 %v284
      %v358 = vunpack.c.l.b16 %v285
      %v359 = vunpack.c.h.b16 %v285
      %v360 = vunpack.c.l.b16 %v286
      %v361 = vunpack.c.l.b16 %v287
      %v362 = vunpack.c.h.b16 %v287
      %v363 = vunpack.c.l.b16 %v288
      %v364 = vunpack.c.l.b16 %v289
      %v365 = vunpack.c.h.b16 %v289
      %v366 = vunpack.c.l.b16 %v290
      %v367 = vpack.c.b16 %v346, %v343
      %v368 = vpack.c.b16 %v347, %v344
      %v369 = vpack.c.b16 %v348, %v345
      %v370 = vpack.c.b16 %v352, %v349
      %v371 = vpack.c.b16 %v353, %v350
      %v372 = vpack.c.b16 %v354, %v351
      %v373 = vpack.c.b16 %v358, %v355
      %v374 = vpack.c.b16 %v359, %v356
      %v375 = vpack.c.b16 %v360, %v357
      %v376 = vpack.c.b16 %v364, %v361
      %v377 = vpack.c.b16 %v365, %v362
      %v378 = vpack.c.b16 %v366, %v363
      %v423 = vunpack.c.l.b16 %v291
      %v424 = vunpack.c.l.b16 %v292
      %v425 = vunpack.c.l.b16 %v293
      %v426 = vunpack.c.l.b16 %v294
      %v427 = vunpack.c.l.b16 %v295
      %v428 = vunpack.c.l.b16 %v296
      %v429 = vunpack.c.l.b16 %v297
      %v430 = vunpack.c.l.b16 %v298
      %v431 = vunpack.c.l.b16 %v299
      %v432 = vunpack.c.l.b16 %v300
      %v433 = vunpack.c.l.b16 %v301
      %v434 = vunpack.c.l.b16 %v302
      %v435 = vunpack.c.l.b16 %v303
      %v436 = vunpack.c.l.b16 %v304
      %v437 = vunpack.c.l.b16 %v305
      %v438 = vunpack.c.l.b16 %v306
      %v439 = vunpack.c.l.b16 %v307
      %v440 = vunpack.c.l.b16 %v308
      %v441 = vunpack.c.l.b16 %v309
      %v442 = vunpack.c.l.b16 %v310
      %v443 = vunpack.c.l.b16 %v311
      %v444 = vunpack.c.l.b16 %v312
      %v445 = vunpack.c.l.b16 %v313
      %v446 = vunpack.c.l.b16 %v314
      %v447 = vunpack.c.l.b16 %v315
      %v448 = vunpack.c.l.b16 %v316
      %v449 = vunpack.c.l.b16 %v317
      %v450 = vunpack.c.l.b16 %v318
      %v451 = vunpack.c.l.b16 %v319
      %v452 = vunpack.c.l.b16 %v320
      %v453 = vunpack.c.l.b16 %v321
      %v454 = vunpack.c.l.b16 %v322
      %v455 = vunpack.c.l.b16 %v323
      %v456 = vunpack.c.l.b16 %v324
      %v457 = vunpack.c.l.b16 %v325
      %v458 = vunpack.c.l.b16 %v326
      %v459 = vpack.c.b16 %v424, %v423
      %v460 = vpack.c.b16 %v426, %v425
      %v461 = vpack.c.b16 %v428, %v427
      %v462 = vpack.c.b16 %v430, %v429
      %v463 = vpack.c.b16 %v432, %v431
      %v464 = vpack.c.b16 %v434, %v433
      %v465 = vpack.c.b16 %v436, %v435
      %v466 = vpack.c.b16 %v438, %v437
      %v467 = vpack.c.b16 %v440, %v439
      %v468 = vpack.c.b16 %v442, %v441
      %v469 = vpack.c.b16 %v444, %v443
      %v470 = vpack.c.b16 %v446, %v445
      %v471 = vpack.c.b16 %v448, %v447
      %v472 = vpack.c.b16 %v450, %v449
      %v473 = vpack.c.b16 %v452, %v451
      %v474 = vpack.c.b16 %v454, %v453
      %v475 = vpack.c.b16 %v456, %v455
      %v476 = vpack.c.b16 %v458, %v457
      %vm495 = vcmask 261120
      %v497 = vsel %vm495, %v369, 0
      %v500 = vsel %vm495, %v372, 0
      %v503 = vsel %vm495, %v375, 0
      %v506 = vsel %vm495, %v378, 0
      %508 = vmatprep.subr.bf16.mxu0 0
      %509 = vmatpush1.bf16.msra.mxu0 %v466
      %510 = vmatprep.subr.bf16.mxu0 0
      %511 = vmatpush1.bf16.msra.mxu0 %v465
      %512 = vmatprep.subr.bf16.mxu0 0
      %513 = vmatpush1.bf16.msra.mxu0 %v464
      %514 = vmatprep.subr.bf16.mxu0 0
      %515 = vmatpush1.bf16.msra.mxu0 %v463
      %516 = vmatprep.subr.bf16.mxu0 0
      %517 = vmatpush1.bf16.msra.mxu0 %v462
      %518 = vmatprep.subr.bf16.mxu0 0
      %519 = vmatpush1.bf16.msra.mxu0 %v461
      %520 = vmatprep.subr.bf16.mxu0 0
      %521 = vmatpush1.bf16.msra.mxu0 %v460
      %522 = vmatprep.subr.bf16.mxu0 0
      %523 = vmatpush1.bf16.msra.mxu0 %v459
      %524 = vmatprep.subr.bf16.mxu0 0
      %525 = vmatpush2.bf16.msra.mxu0 %v474
      %526 = vmatprep.subr.bf16.mxu0 0
      %527 = vmatpush2.bf16.msra.mxu0 %v473
      %528 = vmatprep.subr.bf16.mxu0 0
      %529 = vmatpush2.bf16.msra.mxu0 %v472
      %530 = vmatprep.subr.bf16.mxu0 0
      %531 = vmatpush2.bf16.msra.mxu0 %v471
      %532 = vmatprep.subr.bf16.mxu0 0
      %533 = vmatpush2.bf16.msra.mxu0 %v470
      %534 = vmatprep.subr.bf16.mxu0 0
      %535 = vmatpush2.bf16.msra.mxu0 %v469
      %536 = vmatprep.subr.bf16.mxu0 0
      %537 = vmatpush2.bf16.msra.mxu0 %v468
      %538 = vmatprep.subr.bf16.mxu0 0
      %539 = vmatpush2.bf16.msra.mxu0 %v467
      %540 = vmatprep.mubr.bf16.mxu0 %v368
      %541 = vmatmul.mubr.bf16.gmra.mxu0 %v367
      %v542 = vpop.f32.mrf.mxu0
      %v543 = vadd.f32 0.0, %v542
      %v544 = vpop.f32.mrf.mxu0
      %v545 = vpop.f32.mrf.mxu0
      %v546 = vadd.f32 0.0, %v545
      %v547 = vpop.f32.mrf.mxu0
      %548 = vmatprep.mubr.bf16.mxu0 %v371
      %549 = vmatmul.mubr.bf16.gmra.mxu0 %v370
      %v550 = vpop.f32.mrf.mxu0
      %v551 = vadd.f32 0.0, %v550
      %v552 = vpop.f32.mrf.mxu0
      %v553 = vpop.f32.mrf.mxu0
      %v554 = vadd.f32 0.0, %v553
      %v555 = vpop.f32.mrf.mxu0
      %556 = vmatprep.mubr.bf16.mxu0 %v374
      %557 = vmatmul.mubr.bf16.gmra.mxu0 %v373
      %v558 = vpop.f32.mrf.mxu0
      %v559 = vadd.f32 0.0, %v558
      %v560 = vpop.f32.mrf.mxu0
      %v561 = vpop.f32.mrf.mxu0
      %v562 = vadd.f32 0.0, %v561
      %v563 = vpop.f32.mrf.mxu0
      %564 = vmatprep.mubr.bf16.mxu0 %v377
      %565 = vmatmul.mubr.bf16.gmra.mxu0 %v376
      %v566 = vpop.f32.mrf.mxu0
      %v567 = vadd.f32 0.0, %v566
      %v568 = vpop.f32.mrf.mxu0
      %v569 = vpop.f32.mrf.mxu0
      %v570 = vadd.f32 0.0, %v569
      %v571 = vpop.f32.mrf.mxu0
      %572 = vdwg.mxu0
      %573 = vmatprep.subr.bf16.mxu0 0
      %574 = vmatpush1.bf16.msra.mxu0 0
      %575 = vmatprep.subr.bf16.mxu0 0
      %576 = vmatpush1.bf16.msra.mxu0 0
      %577 = vmatprep.subr.bf16.mxu0 0
      %578 = vmatpush1.bf16.msra.mxu0 0
      %579 = vmatprep.subr.bf16.mxu0 0
      %580 = vmatpush1.bf16.msra.mxu0 0
      %581 = vmatprep.subr.bf16.mxu0 0
      %582 = vmatpush1.bf16.msra.mxu0 0
      %583 = vmatprep.subr.bf16.mxu0 0
      %584 = vmatpush1.bf16.msra.mxu0 0
      %585 = vmatprep.subr.bf16.mxu0 0
      %586 = vmatpush1.bf16.msra.mxu0 %v476
      %587 = vmatprep.subr.bf16.mxu0 0
      %588 = vmatpush1.bf16.msra.mxu0 %v475
      %589 = vmatprep.subr.bf16.mxu0 0
      %590 = vmatpush2.bf16.msra.mxu0 0
      %591 = vmatprep.subr.bf16.mxu0 0
      %592 = vmatpush2.bf16.msra.mxu0 0
      %593 = vmatprep.subr.bf16.mxu0 0
      %594 = vmatpush2.bf16.msra.mxu0 0
      %595 = vmatprep.subr.bf16.mxu0 0
      %596 = vmatpush2.bf16.msra.mxu0 0
      %597 = vmatprep.subr.bf16.mxu0 0
      %598 = vmatpush2.bf16.msra.mxu0 0
      %599 = vmatprep.subr.bf16.mxu0 0
      %600 = vmatpush2.bf16.msra.mxu0 0
      %601 = vmatprep.subr.bf16.mxu0 0
      %602 = vmatpush2.bf16.msra.mxu0 0
      %603 = vmatprep.subr.bf16.mxu0 0
      %604 = vmatpush2.bf16.msra.mxu0 0
      %605 = vmatprep.mubr.bf16.mxu0 0
      %606 = vmatmul.mubr.bf16.gmra.mxu0 %v497
      %v607 = vpop.f32.mrf.mxu0
      %v608 = vadd.f32 %v543, %v607
      %v609 = vpop.f32.mrf.mxu0
      %v610 = vpop.f32.mrf.mxu0
      %v611 = vadd.f32 %v546, %v610
      %v612 = vpop.f32.mrf.mxu0
      %613 = vmatprep.mubr.bf16.mxu0 0
      %614 = vmatmul.mubr.bf16.gmra.mxu0 %v500
      %v615 = vpop.f32.mrf.mxu0
      %v616 = vadd.f32 %v551, %v615
      %v617 = vpop.f32.mrf.mxu0
      %v618 = vpop.f32.mrf.mxu0
      %v619 = vadd.f32 %v554, %v618
      %v620 = vpop.f32.mrf.mxu0
      %621 = vmatprep.mubr.bf16.mxu0 0
      %622 = vmatmul.mubr.bf16.gmra.mxu0 %v503
      %v623 = vpop.f32.mrf.mxu0
      %v624 = vadd.f32 %v559, %v623
      %v625 = vpop.f32.mrf.mxu0
      %v626 = vpop.f32.mrf.mxu0
      %v627 = vadd.f32 %v562, %v626
      %v628 = vpop.f32.mrf.mxu0
      %629 = vmatprep.mubr.bf16.mxu0 0
      %630 = vmatmul.mubr.bf16.gmra.mxu0 %v506
      %v631 = vpop.f32.mrf.mxu0
      %v632 = vadd.f32 %v567, %v631
      %v633 = vpop.f32.mrf.mxu0
      %v634 = vpop.f32.mrf.mxu0
      %v635 = vadd.f32 %v570, %v634
      %v636 = vpop.f32.mrf.mxu0
      %637 = vdwg.mxu0
      %v638 = vpack.c.bf16 %v611, %v608
      %v639 = vpack.c.bf16 %v619, %v616
      %v640 = vpack.c.bf16 %v627, %v624
      %v641 = vpack.c.bf16 %v635, %v632
      %v646 = vunpack.c.l.b16 %v638
      %v647 = vunpack.c.h.b16 %v638
      %v648 = vunpack.c.l.b16 %v639
      %v649 = vunpack.c.h.b16 %v639
      %v650 = vunpack.c.l.b16 %v640
      %v651 = vunpack.c.h.b16 %v640
      %v652 = vunpack.c.l.b16 %v641
      %v653 = vunpack.c.h.b16 %v641
      %v654 = vpack.c.b16 %v646, %v646
      %v655 = vpack.c.b16 %v647, %v647
      %v656 = vpack.c.b16 %v648, %v648
      %v657 = vpack.c.b16 %v649, %v649
      %v658 = vpack.c.b16 %v650, %v650
      %v659 = vpack.c.b16 %v651, %v651
      %v660 = vpack.c.b16 %v652, %v652
      %v661 = vpack.c.b16 %v653, %v653
      %670 = vst [vmem:[%s260] sm:$0xf] %v654
      %671 = vst [vmem:[%s260 + $0x4] sm:$0xf] %v655
      %672 = vst [vmem:[%s260 + $0x8] sm:$0xf] %v656
      %673 = vst [vmem:[%s260 + $0xc] sm:$0xf] %v657
      %674 = vst [vmem:[%s260 + $0x10] sm:$0xf] %v658
      %675 = vst [vmem:[%s260 + $0x14] sm:$0xf] %v659
      %676 = vst [vmem:[%s260 + $0x18] sm:$0xf] %v660
      %677 = vst [vmem:[%s260 + $0x1c] sm:$0xf] %v661
      %v678 = vadd.f32 %v608, %v611
      %v679 = vadd.f32 %v678, %v616
      %v680 = vadd.f32 %v679, %v619
      %v681 = vadd.f32 %v680, %v624
      %v682 = vadd.f32 %v681, %v627
      %v683 = vadd.f32 %v682, %v632
      %v684 = vadd.f32 %v683, %v635
      %v685 = vrot.slane %v684, 4
      %v686 = vadd.f32 %v684, %v685
      %v687 = vrot.slane %v686, 2
      %v688 = vadd.f32 %v686, %v687
      %v689 = vrot.slane %v688, 1
      %v690 = vadd.f32 %v688, %v689
      %691 = vst [vmem:[%s267] sm:$0x1] %v690
      %v692 = vmul.f32 %v608, %v608
      %v693 = vmul.f32 %v611, %v611
      %v694 = vmul.f32 %v616, %v616
      %v695 = vmul.f32 %v619, %v619
      %v696 = vmul.f32 %v624, %v624
      %v697 = vmul.f32 %v627, %v627
      %v698 = vmul.f32 %v632, %v632
      %v699 = vmul.f32 %v635, %v635
      %v700 = vadd.f32 %v692, %v693
      %v701 = vadd.f32 %v700, %v694
      %v702 = vadd.f32 %v701, %v695
      %v703 = vadd.f32 %v702, %v696
      %v704 = vadd.f32 %v703, %v697
      %v705 = vadd.f32 %v704, %v698
      %v706 = vadd.f32 %v705, %v699
      %v707 = vrot.slane %v706, 4
      %v708 = vadd.f32 %v706, %v707
      %v709 = vrot.slane %v708, 2
      %v710 = vadd.f32 %v708, %v709
      %v711 = vrot.slane %v710, 1
      %v712 = vadd.f32 %v710, %v711
      %713 = vst [vmem:[%s273] sm:$0x1] %v712
      %s714 = smul.u32 8, %s20
      %p715 = scmp.lt.s32.totalorder %s714, 15
      %s716 = scalar_select %p715, %s714, 15
      %p717 = scmp.lt.s32.totalorder %s21, 0
      %s718 = scalar_select %p717, %s21, 0
      %s719 = sadd.s32 %s718, %s716
      %s720 = smul.addr %s719, 4
      %s721 = scalar_lea.vmem %s2, %s720
      %p722 = scmp.lt.s32.totalorder %s20, 1
      %s723 = scalar_select %p722, %s20, 1
      %p724 = scmp.lt.s32.totalorder %s21, 0
      %s725 = scalar_select %p724, %s21, 0
      %s726 = sadd.s32 %s725, %s723
      %s727 = scalar_lea.vmem %s3, %s726
      %p728 = scmp.lt.s32.totalorder %s20, 1
      %s729 = scalar_select %p728, %s20, 1
      %p730 = scmp.lt.s32.totalorder %s21, 0
      %s731 = scalar_select %p730, %s21, 0
      %s732 = sadd.s32 %s731, %s729
      %s733 = scalar_lea.vmem %s4, %s732
      // Predicated region
      $region29: #{inception_forward.5} parent=27 // pred_check
        %p734 = pneg %p100
      $region30: #{inception_forward.5} parent=27 // pred_check_branch
        %736 = sbr.rel (%p734) target = $region32
      $region31: #{inception_forward.5} parent=27 // pred_region
        %s737 = smul.u32 8, %s20
      $region32: #{inception_forward.5} parent=27 // pred_fallthru
        _
      // Predicated region
      $region33: #{inception_forward.5} parent=27 // pred_check
        %p738 = pneg %p128
      $region34: #{inception_forward.5} parent=27 // pred_check_branch
        %740 = sbr.rel (%p738) target = $region36
      $region35: #{inception_forward.5} parent=27 // pred_region
        _
      $region36: #{inception_forward.5} parent=27 // pred_fallthru
        _
      // Predicated region
      $region37: #{inception_forward.5} parent=27 // pred_check
        %p741 = pneg %p156
      $region38: #{inception_forward.5} parent=27 // pred_check_branch
        %743 = sbr.rel (%p741) target = $region40
      $region39: #{inception_forward.5} parent=27 // pred_region
        _
      $region40: #{inception_forward.5} parent=27 // pred_fallthru
        _
    $region28: #{inception_forward.5} parent=5 // pred_fallthru
      _
    %p744 = scmp.le.s32.totalorder 2, %s11
    // Predicated region
    $region41: #{inception_forward.5} parent=5 // pred_check
      %p745 = pneg %p744
    $region42: #{inception_forward.5} parent=5 // pred_check_branch
      %747 = sbr.rel (%p745) target = $region44
    $region43: #{inception_forward.5} parent=5 // pred_region
      %s748 = ssub.s32 %s11, 2
      // Predicated region
      $region45: #{inception_forward.5} parent=43 // pred_check
        %p749 = pneg %p106
      $region46: #{inception_forward.5} parent=43 // pred_check_branch
        %751 = sbr.rel (%p749) target = $region48
      $region47: #{inception_forward.5} parent=43 // pred_region
        %s752 = smul.u32 8, %s22
        %p753 = scmp.lt.s32.totalorder %s752, 15
        %s754 = scalar_select %p753, %s752, 15
        %p755 = scmp.lt.s32.totalorder %s23, 0
        %s756 = scalar_select %p755, %s23, 0
        %s757 = sadd.s32 %s756, %s754
        %s758 = smul.addr %s757, 4
        %s759 = scalar_lea.vmem %s2, %s758
      $region48: #{inception_forward.5} parent=43 // pred_fallthru
        _
      // Predicated region
      $region49: #{inception_forward.5} parent=43 // pred_check
        %p760 = pneg %p134
      $region50: #{inception_forward.5} parent=43 // pred_check_branch
        %762 = sbr.rel (%p760) target = $region52
      $region51: #{inception_forward.5} parent=43 // pred_region
        %p763 = scmp.lt.s32.totalorder %s22, 1
        %s764 = scalar_select %p763, %s22, 1
        %p765 = scmp.lt.s32.totalorder %s23, 0
        %s766 = scalar_select %p765, %s23, 0
        %s767 = sadd.s32 %s766, %s764
        %s768 = scalar_lea.vmem %s3, %s767
      $region52: #{inception_forward.5} parent=43 // pred_fallthru
        _
      // Predicated region
      $region53: #{inception_forward.5} parent=43 // pred_check
        %p769 = pneg %p162
      $region54: #{inception_forward.5} parent=43 // pred_check_branch
        %771 = sbr.rel (%p769) target = $region56
      $region55: #{inception_forward.5} parent=43 // pred_region
        %p772 = scmp.lt.s32.totalorder %s22, 1
        %s773 = scalar_select %p772, %s22, 1
        %p774 = scmp.lt.s32.totalorder %s23, 0
        %s775 = scalar_select %p774, %s23, 0
        %s776 = sadd.s32 %s775, %s773
        %s777 = scalar_lea.vmem %s4, %s776
      $region56: #{inception_forward.5} parent=43 // pred_fallthru
        _
    $region44: #{inception_forward.5} parent=5 // pred_fallthru
      _
  $region6: #{inception_forward.5} parent=0 // loop_footer
    %s15 = sadd.s32 1, %s11
  $region7: #{inception_forward.5} parent=0 // loop_footer_branch
    %10 = sbr.rel target = $region3
  $region8: #{inception_forward.5} parent=0 // loop_exit
    _

// kernel: inception_forward.6
$region0: #{inception_forward.6}
  #allocation0 [shape = 'u32[]', space=smem, size = 0x4, offset = 0x4, fixed_abs, tag = 'smem constant byte address 0x4 - core index']
  #allocation1 [shape = 'u32[144,128]{1,0:T(1,128)}', space=vmem, size = 0x12000, scoped, tag = 'internal scratch']
  %s0 = inlined_call_operand.vmem [shape: bf16[128,800], index: 0, kind: input, shape index: {}]
  %s1 = inlined_call_operand.vmem [shape: bf16[800,128], index: 1, kind: input, shape index: {}]
  %s2 = inlined_call_operand.vmem [shape: bf16[128,128], index: 2, kind: output, shape index: {0}]
  %s3 = inlined_call_operand.vmem [shape: f32[2,1,128], index: 3, kind: output, shape index: {1}]
  %s4 = inlined_call_operand.vmem [shape: f32[2,1,128], index: 4, kind: output, shape index: {2}]
  %5 = xla_tuple %s2, %s3, %s4
  %s6 = sld [smem:[#allocation0]]
  $region57: #{inception_forward.6} parent=0
    _
  %s8 = ssub.s32 1, %s6
  %s9 = scalar_select 0, %s8, %s6
  loop: start=0, step=1, limit=4
  $region2: #{inception_forward.6} parent=0 // loop_pre_header
    _
  $region3: #{inception_forward.6} parent=0 // loop_header
    %s11 = sphi 0, %s15
    %p12 = scmp.ge.s32.totalorder %s11, 4
    %s18 = sphi 0, %s30
    %s19 = sphi 0, %s26
    %s20 = sphi 0, %s18
    %s21 = sphi 0, %s19
    %s22 = sphi 0, %s20
    %s23 = sphi 0, %s21
    %s33 = sphi 0, %s35
    %s36 = sphi 0, %s33
    %s37 = sphi 0, %s36
    %s53 = sphi 0, %s37
    %s59 = sphi 0, %s61
    %s62 = sphi 0, %s59
    %s63 = sphi 0, %s62
    %s79 = sphi 0, %s63
    %s87 = sphi 0, %s89
    %s90 = sphi 0, %s87
    %s91 = sphi 0, %s90
    %s107 = sphi 0, %s91
    %s115 = sphi 0, %s117
    %s118 = sphi 0, %s115
    %s119 = sphi 0, %s118
    %s135 = sphi 0, %s119
    %s143 = sphi 0, %s145
    %s146 = sphi 0, %s143
    %s147 = sphi 0, %s146
    %s163 = sphi 0, %s147
  $region4: #{inception_forward.6} parent=0 // loop_header_branch
    %14 = sbr.rel (%p12) target = $region8
  $region5: #{inception_forward.6} parent=0 // loop_body
    %s16 = ssub.s32 %s11, 1
    %s17 = ssub.s32 %s11, 2
    %s24 = sadd.s32 1, %s19
    %p25 = scmp.ge.s32.totalorder %s24, 1
    %s26 = scalar_select %p25, 0, %s24
    %s27 = sadd.s32 1, %s18
    %s28 = scalar_select %p25, %s27, %s18
    %p29 = scmp.ge.s32.totalorder %s28, 2
    %s30 = scalar_select %p29, 0, %s28
    %s31 = ssub.s32 %s18, %s30
    %p32 = scmp.eq.s32.totalorder %s31, 0
    %s34 = sadd.s32 %s33, 1
    %s35 = scalar_select %p32, %s33, %s34
    %p38 = pneg %p32
    %p39 = scmp.eq.s32.totalorder %s11, 1
    %p40 = por %p38, %p39
    %p41 = scmp.ne.s32.totalorder %s33, %s36
    %p42 = scmp.eq.s32.totalorder %s11, 0
    %p43 = por %p41, %p42
    %p44 = scmp.ne.s32.totalorder %s33, %s36
    %p45 = scmp.eq.s32.totalorder %s16, 1
    %p46 = por %p44, %p45
    %p47 = scmp.ne.s32.totalorder %s36, %s37
    %p48 = scmp.eq.s32.totalorder %s16, 0
    %p49 = por %p47, %p48
    %p50 = scmp.ne.s32.totalorder %s36, %s37
    %p51 = scmp.eq.s32.totalorder %s17, 1
    %p52 = por %p50, %p51
    %p54 = scmp.ne.s32.totalorder %s37, %s53
    %p55 = scmp.eq.s32.totalorder %s17, 0
    %p56 = por %p54, %p55
    %s57 = ssub.s32 %s19, %s26
    %p58 = scmp.eq.s32.totalorder %s57, 0
    %s60 = sadd.s32 %s59, 1
    %s61 = scalar_select %p58, %s59, %s60
    %p64 = pneg %p58
    %p65 = scmp.eq.s32.totalorder %s11, 1
    %p66 = por %p64, %p65
    %p67 = scmp.ne.s32.totalorder %s59, %s62
    %p68 = scmp.eq.s32.totalorder %s11, 0
    %p69 = por %p67, %p68
    %p70 = scmp.ne.s32.totalorder %s59, %s62
    %p71 = scmp.eq.s32.totalorder %s16, 1
    %p72 = por %p70, %p71
    %p73 = scmp.ne.s32.totalorder %s62, %s63
    %p74 = scmp.eq.s32.totalorder %s16, 0
    %p75 = por %p73, %p74
    %p76 = scmp.ne.s32.totalorder %s62, %s63
    %p77 = scmp.eq.s32.totalorder %s17, 1
    %p78 = por %p76, %p77
    %p80 = scmp.ne.s32.totalorder %s63, %s79
    %p81 = scmp.eq.s32.totalorder %s17, 0
    %p82 = por %p80, %p81
    %s83 = ssub.s32 %s18, %s30
    %s84 = ssub.s32 %s19, %s26
    %s85 = sor.u32 %s83, %s84
    %p86 = scmp.eq.s32.totalorder %s85, 0
    %s88 = sadd.s32 %s87, 1
    %s89 = scalar_select %p86, %s87, %s88
    %p92 = pneg %p86
    %p93 = scmp.eq.s32.totalorder %s11, 1
    %p94 = por %p92, %p93
    %p95 = scmp.ne.s32.totalorder %s87, %s90
    %p96 = scmp.eq.s32.totalorder %s11, 0
    %p97 = por %p95, %p96
    %p98 = scmp.ne.s32.totalorder %s87, %s90
    %p99 = scmp.eq.s32.totalorder %s16, 1
    %p100 = por %p98, %p99
    %p101 = scmp.ne.s32.totalorder %s90, %s91
    %p102 = scmp.eq.s32.totalorder %s16, 0
    %p103 = por %p101, %p102
    %p104 = scmp.ne.s32.totalorder %s90, %s91
    %p105 = scmp.eq.s32.totalorder %s17, 1
    %p106 = por %p104, %p105
    %p108 = scmp.ne.s32.totalorder %s91, %s107
    %p109 = scmp.eq.s32.totalorder %s17, 0
    %p110 = por %p108, %p109
    %s111 = ssub.s32 %s18, %s30
    %s112 = ssub.s32 %s19, %s26
    %s113 = sor.u32 %s111, %s112
    %p114 = scmp.eq.s32.totalorder %s113, 0
    %s116 = sadd.s32 %s115, 1
    %s117 = scalar_select %p114, %s115, %s116
    %p120 = pneg %p114
    %p121 = scmp.eq.s32.totalorder %s11, 1
    %p122 = por %p120, %p121
    %p123 = scmp.ne.s32.totalorder %s115, %s118
    %p124 = scmp.eq.s32.totalorder %s11, 0
    %p125 = por %p123, %p124
    %p126 = scmp.ne.s32.totalorder %s115, %s118
    %p127 = scmp.eq.s32.totalorder %s16, 1
    %p128 = por %p126, %p127
    %p129 = scmp.ne.s32.totalorder %s118, %s119
    %p130 = scmp.eq.s32.totalorder %s16, 0
    %p131 = por %p129, %p130
    %p132 = scmp.ne.s32.totalorder %s118, %s119
    %p133 = scmp.eq.s32.totalorder %s17, 1
    %p134 = por %p132, %p133
    %p136 = scmp.ne.s32.totalorder %s119, %s135
    %p137 = scmp.eq.s32.totalorder %s17, 0
    %p138 = por %p136, %p137
    %s139 = ssub.s32 %s18, %s30
    %s140 = ssub.s32 %s19, %s26
    %s141 = sor.u32 %s139, %s140
    %p142 = scmp.eq.s32.totalorder %s141, 0
    %s144 = sadd.s32 %s143, 1
    %s145 = scalar_select %p142, %s143, %s144
    %p148 = pneg %p142
    %p149 = scmp.eq.s32.totalorder %s11, 1
    %p150 = por %p148, %p149
    %p151 = scmp.ne.s32.totalorder %s143, %s146
    %p152 = scmp.eq.s32.totalorder %s11, 0
    %p153 = por %p151, %p152
    %p154 = scmp.ne.s32.totalorder %s143, %s146
    %p155 = scmp.eq.s32.totalorder %s16, 1
    %p156 = por %p154, %p155
    %p157 = scmp.ne.s32.totalorder %s146, %s147
    %p158 = scmp.eq.s32.totalorder %s16, 0
    %p159 = por %p157, %p158
    %p160 = scmp.ne.s32.totalorder %s146, %s147
    %p161 = scmp.eq.s32.totalorder %s17, 1
    %p162 = por %p160, %p161
    %p164 = scmp.ne.s32.totalorder %s147, %s163
    %p165 = scmp.eq.s32.totalorder %s17, 0
    %p166 = por %p164, %p165
    %p167 = scmp.le.s32.totalorder 1, %s11
    %p168 = scmp.lt.s32.totalorder %s11, 3
    %p169 = pnand %p167, %p168
    %p170 = pneg %p169
    // Predicated region
    $region9: #{inception_forward.6} parent=5 // pred_check
      _
    $region10: #{inception_forward.6} parent=5 // pred_check_branch
      %172 = sbr.rel (%p169) target = $region12
    $region11: #{inception_forward.6} parent=5 // pred_region
      %s173 = ssub.s32 %s11, 1
      // Predicated region
      $region13: #{inception_forward.6} parent=11 // pred_check
        %p174 = pneg %p75
      $region14: #{inception_forward.6} parent=11 // pred_check_branch
        %176 = sbr.rel (%p174) target = $region16
      $region15: #{inception_forward.6} parent=11 // pred_region
        %p177 = scmp.lt.s32.totalorder %s21, 0
        %s178 = scalar_select %p177, %s21, 0
        %s179 = smul.addr %s178, 4
        %s180 = scalar_lea.vmem %s1, %s179
      $region16: #{inception_forward.6} parent=11 // pred_fallthru
        _
    $region12: #{inception_forward.6} parent=5 // pred_fallthru
      _
    %p181 = scmp.lt.s32.totalorder %s11, 2
    // Predicated region
    $region17: #{inception_forward.6} parent=5 // pred_check
      %p182 = pneg %p181
    $region18: #{inception_forward.6} parent=5 // pred_check_branch
      %184 = sbr.rel (%p182) target = $region20
    $region19: #{inception_forward.6} parent=5 // pred_region
      // Predicated region
      $region21: #{inception_forward.6} parent=19 // pred_check
        %p185 = pneg %p43
      $region22: #{inception_forward.6} parent=19 // pred_check_branch
        %187 = sbr.rel (%p185) target = $region24
      $region23: #{inception_forward.6} parent=19 // pred_region
        %s188 = smul.u32 8, %s18
        %p189 = scmp.lt.s32.totalorder %s188, 15
        %s190 = scalar_select %p189, %s188, 15
        %s191 = smul.addr %s190, 7
        %s192 = smul.addr %s191, 4
        %s193 = scalar_lea.vmem %s0, %s192
        %s194 = smul.u32 8, %s18
      $region24: #{inception_forward.6} parent=19 // pred_fallthru
        _
    $region20: #{inception_forward.6} parent=5 // pred_fallthru
      _
    %p195 = scmp.le.s32.totalorder 1, %s11
    %p196 = scmp.lt.s32.totalorder %s11, 3
    %p197 = pnand %p195, %p196
    %p198 = pneg %p197
    // Predicated region
    $region25: #{inception_forward.6} parent=5 // pred_check
      _
    $region26: #{inception_forward.6} parent=5 // pred_check_branch
      %200 = sbr.rel (%p197) target = $region28
    $region27: #{inception_forward.6} parent=5 // pred_region
      %s201 = ssub.s32 %s11, 1
      %s202 = smul.u32 8, %s20
      %p203 = scmp.lt.s32.totalorder %s202, 15
      %s204 = scalar_select %p203, %s202, 15
      %s205 = smul.addr %s204, 7
      %s206 = smul.addr %s205, 4
      %s207 = scalar_lea.vmem %s0, %s206
      %p208 = pneg %p49
      %p209 = pneg %p46
      %p210 = scmp.lt.s32.totalorder %s21, 0
      %s211 = scalar_select %p210, %s21, 0
      %s212 = smul.addr %s211, 4
      %s213 = scalar_lea.vmem %s1, %s212
      %p214 = pneg %p75
      %p215 = pneg %p72
      %p216 = pneg %p103
      %p217 = pneg %p100
      %s218 = smul.u32 8, %s20
      %p219 = scmp.lt.s32.totalorder %s218, 15
      %s220 = scalar_select %p219, %s218, 15
      %p221 = scmp.lt.s32.totalorder %s21, 0
      %s222 = scalar_select %p221, %s21, 0
      %s223 = sadd.s32 %s222, %s220
      %s224 = smul.addr %s223, 4
      %s225 = scalar_lea.vmem %s2, %s224
      %p226 = pneg %p131
      %p227 = pneg %p128
      %p228 = scmp.lt.s32.totalorder %s20, 1
      %s229 = scalar_select %p228, %s20, 1
      %p230 = scmp.lt.s32.totalorder %s21, 0
      %s231 = scalar_select %p230, %s21, 0
      %s232 = sadd.s32 %s231, %s229
      %s233 = scalar_lea.vmem %s3, %s232
      %p234 = pneg %p159
      %p235 = pneg %p156
      %p236 = scmp.lt.s32.totalorder %s20, 1
      %s237 = scalar_select %p236, %s20, 1
      %p238 = scmp.lt.s32.totalorder %s21, 0
      %s239 = scalar_select %p238, %s21, 0
      %s240 = sadd.s32 %s239, %s237
      %s241 = scalar_lea.vmem %s4, %s240
      %s242 = smul.u32 8, %s20
      %p243 = scmp.lt.s32.totalorder %s242, 15
      %s244 = scalar_select %p243, %s242, 15
      %s245 = smul.addr %s244, 7
      %s246 = smul.addr %s245, 4
      %s247 = scalar_lea.vmem %s0, %s246
      %s248 = smul.u32 8, %s20
      %p249 = scmp.lt.s32.totalorder %s21, 0
      %s250 = scalar_select %p249, %s21, 0
      %s251 = smul.addr %s250, 4
      %s252 = scalar_lea.vmem %s1, %s251
      %s253 = smul.u32 8, %s20
      %p254 = scmp.lt.s32.totalorder %s253, 15
      %s255 = scalar_select %p254, %s253, 15
      %p256 = scmp.lt.s32.totalorder %s21, 0
      %s257 = scalar_select %p256, %s21, 0
      %s258 = sadd.s32 %s257, %s255
      %s259 = smul.addr %s258, 4
      %s260 = scalar_lea.vmem %s2, %s259
      %s261 = smul.u32 8, %s20
      %p262 = scmp.lt.s32.totalorder %s20, 1
      %s263 = scalar_select %p262, %s20, 1
      %p264 = scmp.lt.s32.totalorder %s21, 0
      %s265 = scalar_select %p264, %s21, 0
      %s266 = sadd.s32 %s265, %s263
      %s267 = scalar_lea.vmem %s3, %s266
      %p268 = scmp.lt.s32.totalorder %s20, 1
      %s269 = scalar_select %p268, %s20, 1
      %p270 = scmp.lt.s32.totalorder %s21, 0
      %s271 = scalar_select %p270, %s21, 0
      %s272 = sadd.s32 %s271, %s269
      %s273 = scalar_lea.vmem %s4, %s272
      %v275 = vld [vmem:[%s247] sm:$0xff]
      %v276 = vld [vmem:[%s247 + $0x8] sm:$0xff]
      %v277 = vld [vmem:[%s247 + $0x10] sm:$0xff]
      %v278 = vld [vmem:[%s247 + $0x18] sm:$0xf]
      %v279 = vld [vmem:[%s247 + $0x1c] sm:$0xff]
      %v280 = vld [vmem:[%s247 + $0x24] sm:$0xff]
      %v281 = vld [vmem:[%s247 + $0x2c] sm:$0xff]
      %v282 = vld [vmem:[%s247 + $0x34] sm:$0xf]
      %v283 = vld [vmem:[%s247 + $0x38] sm:$0xff]
      %v284 = vld [vmem:[%s247 + $0x40] sm:$0xff]
      %v285 = vld [vmem:[%s247 + $0x48] sm:$0xff]
      %v286 = vld [vmem:[%s247 + $0x50] sm:$0xf]
      %v287 = vld [vmem:[%s247 + $0x54] sm:$0xff]
      %v288 = vld [vmem:[%s247 + $0x5c] sm:$0xff]
      %v289 = vld [vmem:[%s247 + $0x64] sm:$0xff]
      %v290 = vld [vmem:[%s247 + $0x6c] sm:$0xf]
      %v291 = vld [vmem:[%s247 + $0x70] sm:$0xff]
      %v292 = vld [vmem:[%s247 + $0x78] sm:$0xff]
      %v293 = vld [vmem:[%s247 + $0x80] sm:$0xff]
      %v294 = vld [vmem:[%s247 + $0x88] sm:$0xf]
      %v295 = vld [vmem:[%s247 + $0x8c] sm:$0xff]
      %v296 = vld [vmem:[%s247 + $0x94] sm:$0xff]
      %v297 = vld [vmem:[%s247 + $0x9c] sm:$0xff]
      %v298 = vld [vmem:[%s247 + $0xa4] sm:$0xf]
      %v299 = vld [vmem:[%s247 + $0xa8] sm:$0xff]
      %v300 = vld [vmem:[%s247 + $0xb0] sm:$0xff]
      %v301 = vld [vmem:[%s247 + $0xb8] sm:$0xff]
      %v302 = vld [vmem:[%s247 + $0xc0] sm:$0xf]
      %v303 = vld [vmem:[%s247 + $0xc4] sm:$0xff]
      %v304 = vld [vmem:[%s247 + $0xcc] sm:$0xff]
      %v305 = vld [vmem:[%s247 + $0xd4] sm:$0xff]
      %v306 = vld [vmem:[%s247 + $0xdc] sm:$0xf]
      %v307 = vld [vmem:[%s252] sm:$0xf]
      %v308 = vld [vmem:[%s252 + $0x4] sm:$0xf]
      %v309 = vld [vmem:[%s252 + $0x8] sm:$0xf]
      %v310 = vld [vmem:[%s252 + $0xc] sm:$0xf]
      %v311 = vld [vmem:[%s252 + $0x10] sm:$0xf]
      %v312 = vld [vmem:[%s252 + $0x14] sm:$0xf]
      %v313 = vld [vmem:[%s252 + $0x18] sm:$0xf]
      %v314 = vld [vmem:[%s252 + $0x1c] sm:$0xf]
      %v315 = vld [vmem:[%s252 + $0x20] sm:$0xf]
      %v316 = vld [vmem:[%s252 + $0x24] sm:$0xf]
      %v317 = vld [vmem:[%s252 + $0x28] sm:$0xf]
      %v318 = vld [vmem:[%s252 + $0x2c] sm:$0xf]
      %v319 = vld [vmem:[%s252 + $0x30] sm:$0xf]
      %v320 = vld [vmem:[%s252 + $0x34] sm:$0xf]
      %v321 = vld [vmem:[%s252 + $0x38] sm:$0xf]
      %v322 = vld [vmem:[%s252 + $0x3c] sm:$0xf]
      %v323 = vld [vmem:[%s252 + $0x40] sm:$0xf]
      %v324 = vld [vmem:[%s252 + $0x44] sm:$0xf]
      %v325 = vld [vmem:[%s252 + $0x48] sm:$0xf]
      %v326 = vld [vmem:[%s252 + $0x4c] sm:$0xf]
      %v327 = vld [vmem:[%s252 + $0x50] sm:$0xf]
      %v328 = vld [vmem:[%s252 + $0x54] sm:$0xf]
      %v329 = vld [vmem:[%s252 + $0x58] sm:$0xf]
      %v330 = vld [vmem:[%s252 + $0x5c] sm:$0xf]
      %v331 = vld [vmem:[%s252 + $0x60] sm:$0xf]
      %v332 = vld [vmem:[%s252 + $0x64] sm:$0xf]
      %v333 = vld [vmem:[%s252 + $0x68] sm:$0xf]
      %v334 = vld [vmem:[%s252 + $0x6c] sm:$0xf]
      %v335 = vld [vmem:[%s252 + $0x70] sm:$0xf]
      %v336 = vld [vmem:[%s252 + $0x74] sm:$0xf]
      %v337 = vld [vmem:[%s252 + $0x78] sm:$0xf]
      %v338 = vld [vmem:[%s252 + $0x7c] sm:$0xf]
      %v339 = vld [vmem:[%s252 + $0x80] sm:$0xf]
      %v340 = vld [vmem:[%s252 + $0x84] sm:$0xf]
      %v341 = vld [vmem:[%s252 + $0x88] sm:$0xf]
      %v342 = vld [vmem:[%s252 + $0x8c] sm:$0xf]
      %v343 = vld [vmem:[%s252 + $0x90] sm:$0xf]
      %v344 = vld [vmem:[%s252 + $0x94] sm:$0xf]
      %v345 = vld [vmem:[%s252 + $0x98] sm:$0xf]
      %v346 = vld [vmem:[%s252 + $0x9c] sm:$0xf]
      %v347 = vld [vmem:[%s252 + $0xa0] sm:$0xf]
      %v348 = vld [vmem:[%s252 + $0xa4] sm:$0xf]
      %v349 = vld [vmem:[%s252 + $0xa8] sm:$0xf]
      %v350 = vld [vmem:[%s252 + $0xac] sm:$0xf]
      %v351 = vld [vmem:[%s252 + $0xb0] sm:$0xf]
      %v352 = vld [vmem:[%s252 + $0xb4] sm:$0xf]
      %v353 = vld [vmem:[%s252 + $0xb8] sm:$0xf]
      %v354 = vld [vmem:[%s252 + $0xbc] sm:$0xf]
      %v355 = vld [vmem:[%s252 + $0xc0] sm:$0xf]
      %v356 = vld [vmem:[%s252 + $0xc4] sm:$0xf]
      %v357 = vld [vmem:[%s252 + $0xc8] sm:$0xf]
      %v358 = vld [vmem:[%s252 + $0xcc] sm:$0xf]
      %v359 = vld [vmem:[%s252 + $0xd0] sm:$0xf]
      %v360 = vld [vmem:[%s252 + $0xd4] sm:$0xf]
      %v361 = vld [vmem:[%s252 + $0xd8] sm:$0xf]
      %v362 = vld [vmem:[%s252 + $0xdc] sm:$0xf]
      %v363 = vld [vmem:[%s252 + $0xe0] sm:$0xf]
      %v364 = vld [vmem:[%s252 + $0xe4] sm:$0xf]
      %v365 = vld [vmem:[%s252 + $0xe8] sm:$0xf]
      %v366 = vld [vmem:[%s252 + $0xec] sm:$0xf]
      %v367 = vld [vmem:[%s252 + $0xf0] sm:$0xf]
      %v368 = vld [vmem:[%s252 + $0xf4] sm:$0xf]
      %v369 = vld [vmem:[%s252 + $0xf8] sm:$0xf]
      %v370 = vld [vmem:[%s252 + $0xfc] sm:$0xf]
      %v371 = vld [vmem:[%s252 + $0x100] sm:$0xf]
      %v372 = vld [vmem:[%s252 + $0x104] sm:$0xf]
      %v373 = vld [vmem:[%s252 + $0x108] sm:$0xf]
      %v374 = vld [vmem:[%s252 + $0x10c] sm:$0xf]
      %v375 = vld [vmem:[%s252 + $0x110] sm:$0xf]
      %v376 = vld [vmem:[%s252 + $0x114] sm:$0xf]
      %v377 = vld [vmem:[%s252 + $0x118] sm:$0xf]
      %v378 = vld [vmem:[%s252 + $0x11c] sm:$0xf]
      %v379 = vld [vmem:[%s252 + $0x120] sm:$0xf]
      %v380 = vld [vmem:[%s252 + $0x124] sm:$0xf]
      %v381 = vld [vmem:[%s252 + $0x128] sm:$0xf]
      %v382 = vld [vmem:[%s252 + $0x12c] sm:$0xf]
      %v383 = vld [vmem:[%s252 + $0x130] sm:$0xf]
      %v384 = vld [vmem:[%s252 + $0x134] sm:$0xf]
      %v385 = vld [vmem:[%s252 + $0x138] sm:$0xf]
      %v386 = vld [vmem:[%s252 + $0x13c] sm:$0xf]
      %v387 = vld [vmem:[%s252 + $0x140] sm:$0xf]
      %v388 = vld [vmem:[%s252 + $0x144] sm:$0xf]
      %v389 = vld [vmem:[%s252 + $0x148] sm:$0xf]
      %v390 = vld [vmem:[%s252 + $0x14c] sm:$0xf]
      %v391 = vld [vmem:[%s252 + $0x150] sm:$0xf]
      %v392 = vld [vmem:[%s252 + $0x154] sm:$0xf]
      %v393 = vld [vmem:[%s252 + $0x158] sm:$0xf]
      %v394 = vld [vmem:[%s252 + $0x15c] sm:$0xf]
      %v395 = vld [vmem:[%s252 + $0x160] sm:$0xf]
      %v396 = vld [vmem:[%s252 + $0x164] sm:$0xf]
      %v397 = vld [vmem:[%s252 + $0x168] sm:$0xf]
      %v398 = vld [vmem:[%s252 + $0x16c] sm:$0xf]
      %v399 = vld [vmem:[%s252 + $0x170] sm:$0xf]
      %v400 = vld [vmem:[%s252 + $0x174] sm:$0xf]
      %v401 = vld [vmem:[%s252 + $0x178] sm:$0xf]
      %v402 = vld [vmem:[%s252 + $0x17c] sm:$0xf]
      %v403 = vld [vmem:[%s252 + $0x180] sm:$0xf]
      %v404 = vld [vmem:[%s252 + $0x184] sm:$0xf]
      %v405 = vld [vmem:[%s252 + $0x188] sm:$0xf]
      %v406 = vld [vmem:[%s252 + $0x18c] sm:$0xf]
      %v439 = vunpack.c.l.b16 %v275
      %v440 = vunpack.c.h.b16 %v275
      %v441 = vunpack.c.l.b16 %v276
      %v442 = vunpack.c.h.b16 %v276
      %v443 = vunpack.c.l.b16 %v277
      %v444 = vunpack.c.h.b16 %v277
      %v445 = vunpack.c.l.b16 %v278
      %v446 = vunpack.c.l.b16 %v279
      %v447 = vunpack.c.h.b16 %v279
      %v448 = vunpack.c.l.b16 %v280
      %v449 = vunpack.c.h.b16 %v280
      %v450 = vunpack.c.l.b16 %v281
      %v451 = vunpack.c.h.b16 %v281
      %v452 = vunpack.c.l.b16 %v282
      %v453 = vunpack.c.l.b16 %v283
      %v454 = vunpack.c.h.b16 %v283
      %v455 = vunpack.c.l.b16 %v284
      %v456 = vunpack.c.h.b16 %v284
      %v457 = vunpack.c.l.b16 %v285
      %v458 = vunpack.c.h.b16 %v285
      %v459 = vunpack.c.l.b16 %v286
      %v460 = vunpack.c.l.b16 %v287
      %v461 = vunpack.c.h.b16 %v287
      %v462 = vunpack.c.l.b16 %v288
      %v463 = vunpack.c.h.b16 %v288
      %v464 = vunpack.c.l.b16 %v289
      %v465 = vunpack.c.h.b16 %v289
      %v466 = vunpack.c.l.b16 %v290
      %v467 = vunpack.c.l.b16 %v291
      %v468 = vunpack.c.h.b16 %v291
      %v469 = vunpack.c.l.b16 %v292
      %v470 = vunpack.c.h.b16 %v292
      %v471 = vunpack.c.l.b16 %v293
      %v472 = vunpack.c.h.b16 %v293
      %v473 = vunpack.c.l.b16 %v294
      %v474 = vunpack.c.l.b16 %v295
      %v475 = vunpack.c.h.b16 %v295
      %v476 = vunpack.c.l.b16 %v296
      %v477 = vunpack.c.h.b16 %v296
      %v478 = vunpack.c.l.b16 %v297
      %v479 = vunpack.c.h.b16 %v297
      %v480 = vunpack.c.l.b16 %v298
      %v481 = vunpack.c.l.b16 %v299
      %v482 = vunpack.c.h.b16 %v299
      %v483 = vunpack.c.l.b16 %v300
      %v484 = vunpack.c.h.b16 %v300
      %v485 = vunpack.c.l.b16 %v301
      %v486 = vunpack.c.h.b16 %v301
      %v487 = vunpack.c.l.b16 %v302
      %v488 = vunpack.c.l.b16 %v303
      %v489 = vunpack.c.h.b16 %v303
      %v490 = vunpack.c.l.b16 %v304
      %v491 = vunpack.c.h.b16 %v304
      %v492 = vunpack.c.l.b16 %v305
      %v493 = vunpack.c.h.b16 %v305
      %v494 = vunpack.c.l.b16 %v306
      %v495 = vpack.c.b16 %v446, %v439
      %v496 = vpack.c.b16 %v447, %v440
      %v497 = vpack.c.b16 %v448, %v441
      %v498 = vpack.c.b16 %v449, %v442
      %v499 = vpack.c.b16 %v450, %v443
      %v500 = vpack.c.b16 %v451, %v444
      %v501 = vpack.c.b16 %v452, %v445
      %v502 = vpack.c.b16 %v460, %v453
      %v503 = vpack.c.b16 %v461, %v454
      %v504 = vpack.c.b16 %v462, %v455
      %v505 = vpack.c.b16 %v463, %v456
      %v506 = vpack.c.b16 %v464, %v457
      %v507 = vpack.c.b16 %v465, %v458
      %v508 = vpack.c.b16 %v466, %v459
      %v509 = vpack.c.b16 %v474, %v467
      %v510 = vpack.c.b16 %v475, %v468
      %v511 = vpack.c.b16 %v476, %v469
      %v512 = vpack.c.b16 %v477, %v470
      %v513 = vpack.c.b16 %v478, %v471
      %v514 = vpack.c.b16 %v479, %v472
      %v515 = vpack.c.b16 %v480, %v473
      %v516 = vpack.c.b16 %v488, %v481
      %v517 = vpack.c.b16 %v489, %v482
      %v518 = vpack.c.b16 %v490, %v483
      %v519 = vpack.c.b16 %v491, %v484
      %v520 = vpack.c.b16 %v492, %v485
      %v521 = vpack.c.b16 %v493, %v486
      %v522 = vpack.c.b16 %v494, %v487
      %v647 = vunpack.c.l.b16 %v307
      %v648 = vunpack.c.l.b16 %v308
      %v649 = vunpack.c.l.b16 %v309
      %v650 = vunpack.c.l.b16 %v310
      %v651 = vunpack.c.l.b16 %v311
      %v652 = vunpack.c.l.b16 %v312
      %v653 = vunpack.c.l.b16 %v313
      %v654 = vunpack.c.l.b16 %v314
      %v655 = vunpack.c.l.b16 %v315
      %v656 = vunpack.c.l.b16 %v316
      %v657 = vunpack.c.l.b16 %v317
      %v658 = vunpack.c.l.b16 %v318
      %v659 = vunpack.c.l.b16 %v319
      %v660 = vunpack.c.l.b16 %v320
      %v661 = vunpack.c.l.b16 %v321
      %v662 = vunpack.c.l.b16 %v322
      %v663 = vunpack.c.l.b16 %v323
      %v664 = vunpack.c.l.b16 %v324
      %v665 = vunpack.c.l.b16 %v325
      %v666 = vunpack.c.l.b16 %v326
      %v667 = vunpack.c.l.b16 %v327
      %v668 = vunpack.c.l.b16 %v328
      %v669 = vunpack.c.l.b16 %v329
      %v670 = vunpack.c.l.b16 %v330
      %v671 = vunpack.c.l.b16 %v331
      %v672 = vunpack.c.l.b16 %v332
      %v673 = vunpack.c.l.b16 %v333
      %v674 = vunpack.c.l.b16 %v334
      %v675 = vunpack.c.l.b16 %v335
      %v676 = vunpack.c.l.b16 %v336
      %v677 = vunpack.c.l.b16 %v337
      %v678 = vunpack.c.l.b16 %v338
      %v679 = vunpack.c.l.b16 %v339
      %v680 = vunpack.c.l.b16 %v340
      %v681 = vunpack.c.l.b16 %v341
      %v682 = vunpack.c.l.b16 %v342
      %v683 = vunpack.c.l.b16 %v343
      %v684 = vunpack.c.l.b16 %v344
      %v685 = vunpack.c.l.b16 %v345
      %v686 = vunpack.c.l.b16 %v346
      %v687 = vunpack.c.l.b16 %v347
      %v688 = vunpack.c.l.b16 %v348
      %v689 = vunpack.c.l.b16 %v349
      %v690 = vunpack.c.l.b16 %v350
      %v691 = vunpack.c.l.b16 %v351
      %v692 = vunpack.c.l.b16 %v352
      %v693 = vunpack.c.l.b16 %v353
      %v694 = vunpack.c.l.b16 %v354
      %v695 = vunpack.c.l.b16 %v355
      %v696 = vunpack.c.l.b16 %v356
      %v697 = vunpack.c.l.b16 %v357
      %v698 = vunpack.c.l.b16 %v358
      %v699 = vunpack.c.l.b16 %v359
      %v700 = vunpack.c.l.b16 %v360
      %v701 = vunpack.c.l.b16 %v361
      %v702 = vunpack.c.l.b16 %v362
      %v703 = vunpack.c.l.b16 %v363
      %v704 = vunpack.c.l.b16 %v364
      %v705 = vunpack.c.l.b16 %v365
      %v706 = vunpack.c.l.b16 %v366
      %v707 = vunpack.c.l.b16 %v367
      %v708 = vunpack.c.l.b16 %v368
      %v709 = vunpack.c.l.b16 %v369
      %v710 = vunpack.c.l.b16 %v370
      %v711 = vunpack.c.l.b16 %v371
      %v712 = vunpack.c.l.b16 %v372
      %v713 = vunpack.c.l.b16 %v373
      %v714 = vunpack.c.l.b16 %v374
      %v715 = vunpack.c.l.b16 %v375
      %v716 = vunpack.c.l.b16 %v376
      %v717 = vunpack.c.l.b16 %v377
      %v718 = vunpack.c.l.b16 %v378
      %v719 = vunpack.c.l.b16 %v379
      %v720 = vunpack.c.l.b16 %v380
      %v721 = vunpack.c.l.b16 %v381
      %v722 = vunpack.c.l.b16 %v382
      %v723 = vunpack.c.l.b16 %v383
      %v724 = vunpack.c.l.b16 %v384
      %v725 = vunpack.c.l.b16 %v385
      %v726 = vunpack.c.l.b16 %v386
      %v727 = vunpack.c.l.b16 %v387
      %v728 = vunpack.c.l.b16 %v388
      %v729 = vunpack.c.l.b16 %v389
      %v730 = vunpack.c.l.b16 %v390
      %v731 = vunpack.c.l.b16 %v391
      %v732 = vunpack.c.l.b16 %v392
      %v733 = vunpack.c.l.b16 %v393
      %v734 = vunpack.c.l.b16 %v394
      %v735 = vunpack.c.l.b16 %v395
      %v736 = vunpack.c.l.b16 %v396
      %v737 = vunpack.c.l.b16 %v397
      %v738 = vunpack.c.l.b16 %v398
      %v739 = vunpack.c.l.b16 %v399
      %v740 = vunpack.c.l.b16 %v400
      %v741 = vunpack.c.l.b16 %v401
      %v742 = vunpack.c.l.b16 %v402
      %v743 = vunpack.c.l.b16 %v403
      %v744 = vunpack.c.l.b16 %v404
      %v745 = vunpack.c.l.b16 %v405
      %v746 = vunpack.c.l.b16 %v406
      %v747 = vpack.c.b16 %v648, %v647
      %v748 = vpack.c.b16 %v650, %v649
      %v749 = vpack.c.b16 %v652, %v651
      %v750 = vpack.c.b16 %v654, %v653
      %v751 = vpack.c.b16 %v656, %v655
      %v752 = vpack.c.b16 %v658, %v657
      %v753 = vpack.c.b16 %v660, %v659
      %v754 = vpack.c.b16 %v662, %v661
      %v755 = vpack.c.b16 %v664, %v663
      %v756 = vpack.c.b16 %v666, %v665
      %v757 = vpack.c.b16 %v668, %v667
      %v758 = vpack.c.b16 %v670, %v669
      %v759 = vpack.c.b16 %v672, %v671
      %v760 = vpack.c.b16 %v674, %v673
      %v761 = vpack.c.b16 %v676, %v675
      %v762 = vpack.c.b16 %v678, %v677
      %v763 = vpack.c.b16 %v680, %v679
      %v764 = vpack.c.b16 %v682, %v681
      %v765 = vpack.c.b16 %v684, %v683
      %v766 = vpack.c.b16 %v686, %v685
      %v767 = vpack.c.b16 %v688, %v687
      %v768 = vpack.c.b16 %v690, %v689
      %v769 = vpack.c.b16 %v692, %v691
      %v770 = vpack.c.b16 %v694, %v693
      %v771 = vpack.c.b16 %v696, %v695
      %v772 = vpack.c.b16 %v698, %v697
      %v773 = vpack.c.b16 %v700, %v699
      %v774 = vpack.c.b16 %v702, %v701
      %v775 = vpack.c.b16 %v704, %v703
      %v776 = vpack.c.b16 %v706, %v705
      %v777 = vpack.c.b16 %v708, %v707
      %v778 = vpack.c.b16 %v710, %v709
      %v779 = vpack.c.b16 %v712, %v711
      %v780 = vpack.c.b16 %v714, %v713
      %v781 = vpack.c.b16 %v716, %v715
      %v782 = vpack.c.b16 %v718, %v717
      %v783 = vpack.c.b16 %v720, %v719
      %v784 = vpack.c.b16 %v722, %v721
      %v785 = vpack.c.b16 %v724, %v723
      %v786 = vpack.c.b16 %v726, %v725
      %v787 = vpack.c.b16 %v728, %v727
      %v788 = vpack.c.b16 %v730, %v729
      %v789 = vpack.c.b16 %v732, %v731
      %v790 = vpack.c.b16 %v734, %v733
      %v791 = vpack.c.b16 %v736, %v735
      %v792 = vpack.c.b16 %v738, %v737
      %v793 = vpack.c.b16 %v740, %v739
      %v794 = vpack.c.b16 %v742, %v741
      %v795 = vpack.c.b16 %v744, %v743
      %v796 = vpack.c.b16 %v746, %v745
      %vm847 = vcmask 261120
      %v849 = vsel %vm847, %v501, 0
      %v852 = vsel %vm847, %v508, 0
      %v855 = vsel %vm847, %v515, 0
      %v858 = vsel %vm847, %v522, 0
      %860 = vmatprep.subr.bf16.mxu0 0
      %861 = vmatpush1.bf16.msra.mxu0 %v754
      %862 = vmatprep.subr.bf16.mxu0 0
      %863 = vmatpush1.bf16.msra.mxu0 %v753
      %864 = vmatprep.subr.bf16.mxu0 0
      %865 = vmatpush1.bf16.msra.mxu0 %v752
      %866 = vmatprep.subr.bf16.mxu0 0
      %867 = vmatpush1.bf16.msra.mxu0 %v751
      %868 = vmatprep.subr.bf16.mxu0 0
      %869 = vmatpush1.bf16.msra.mxu0 %v750
      %870 = vmatprep.subr.bf16.mxu0 0
      %871 = vmatpush1.bf16.msra.mxu0 %v749
      %872 = vmatprep.subr.bf16.mxu0 0
      %873 = vmatpush1.bf16.msra.mxu0 %v748
      %874 = vmatprep.subr.bf16.mxu0 0
      %875 = vmatpush1.bf16.msra.mxu0 %v747
      %876 = vmatprep.subr.bf16.mxu0 0
      %877 = vmatpush2.bf16.msra.mxu0 %v762
      %878 = vmatprep.subr.bf16.mxu0 0
      %879 = vmatpush2.bf16.msra.mxu0 %v761
      %880 = vmatprep.subr.bf16.mxu0 0
      %881 = vmatpush2.bf16.msra.mxu0 %v760
      %882 = vmatprep.subr.bf16.mxu0 0
      %883 = vmatpush2.bf16.msra.mxu0 %v759
      %884 = vmatprep.subr.bf16.mxu0 0
      %885 = vmatpush2.bf16.msra.mxu0 %v758
      %886 = vmatprep.subr.bf16.mxu0 0
      %887 = vmatpush2.bf16.msra.mxu0 %v757
      %888 = vmatprep.subr.bf16.mxu0 0
      %889 = vmatpush2.bf16.msra.mxu0 %v756
      %890 = vmatprep.subr.bf16.mxu0 0
      %891 = vmatpush2.bf16.msra.mxu0 %v755
      %892 = vmatprep.mubr.bf16.mxu0 %v496
      %893 = vmatmul.mubr.bf16.gmra.mxu0 %v495
      %v894 = vpop.f32.mrf.mxu0
      %v895 = vadd.f32 0.0, %v894
      %v896 = vpop.f32.mrf.mxu0
      %v897 = vpop.f32.mrf.mxu0
      %v898 = vadd.f32 0.0, %v897
      %v899 = vpop.f32.mrf.mxu0
      %900 = vmatprep.mubr.bf16.mxu0 %v503
      %901 = vmatmul.mubr.bf16.gmra.mxu0 %v502
      %v902 = vpop.f32.mrf.mxu0
      %v903 = vadd.f32 0.0, %v902
      %v904 = vpop.f32.mrf.mxu0
      %v905 = vpop.f32.mrf.mxu0
      %v906 = vadd.f32 0.0, %v905
      %v907 = vpop.f32.mrf.mxu0
      %908 = vmatprep.mubr.bf16.mxu0 %v510
      %909 = vmatmul.mubr.bf16.gmra.mxu0 %v509
      %v910 = vpop.f32.mrf.mxu0
      %v911 = vadd.f32 0.0, %v910
      %v912 = vpop.f32.mrf.mxu0
      %v913 = vpop.f32.mrf.mxu0
      %v914 = vadd.f32 0.0, %v913
      %v915 = vpop.f32.mrf.mxu0
      %916 = vmatprep.mubr.bf16.mxu0 %v517
      %917 = vmatmul.mubr.bf16.gmra.mxu0 %v516
      %v918 = vpop.f32.mrf.mxu0
      %v919 = vadd.f32 0.0, %v918
      %v920 = vpop.f32.mrf.mxu0
      %v921 = vpop.f32.mrf.mxu0
      %v922 = vadd.f32 0.0, %v921
      %v923 = vpop.f32.mrf.mxu0
      %924 = vdwg.mxu0
      %925 = vmatprep.subr.bf16.mxu0 0
      %926 = vmatpush1.bf16.msra.mxu0 %v770
      %927 = vmatprep.subr.bf16.mxu0 0
      %928 = vmatpush1.bf16.msra.mxu0 %v769
      %929 = vmatprep.subr.bf16.mxu0 0
      %930 = vmatpush1.bf16.msra.mxu0 %v768
      %931 = vmatprep.subr.bf16.mxu0 0
      %932 = vmatpush1.bf16.msra.mxu0 %v767
      %933 = vmatprep.subr.bf16.mxu0 0
      %934 = vmatpush1.bf16.msra.mxu0 %v766
      %935 = vmatprep.subr.bf16.mxu0 0
      %936 = vmatpush1.bf16.msra.mxu0 %v765
      %937 = vmatprep.subr.bf16.mxu0 0
      %938 = vmatpush1.bf16.msra.mxu0 %v764
      %939 = vmatprep.subr.bf16.mxu0 0
      %940 = vmatpush1.bf16.msra.mxu0 %v763
      %941 = vmatprep.subr.bf16.mxu0 0
      %942 = vmatpush2.bf16.msra.mxu0 %v778
      %943 = vmatprep.subr.bf16.mxu0 0
      %944 = vmatpush2.bf16.msra.mxu0 %v777
      %945 = vmatprep.subr.bf16.mxu0 0
      %946 = vmatpush2.bf16.msra.mxu0 %v776
      %947 = vmatprep.subr.bf16.mxu0 0
      %948 = vmatpush2.bf16.msra.mxu0 %v775
      %949 = vmatprep.subr.bf16.mxu0 0
      %950 = vmatpush2.bf16.msra.mxu0 %v774
      %951 = vmatprep.subr.bf16.mxu0 0
      %952 = vmatpush2.bf16.msra.mxu0 %v773
      %953 = vmatprep.subr.bf16.mxu0 0
      %954 = vmatpush2.bf16.msra.mxu0 %v772
      %955 = vmatprep.subr.bf16.mxu0 0
      %956 = vmatpush2.bf16.msra.mxu0 %v771
      %957 = vmatprep.mubr.bf16.mxu0 %v498
      %958 = vmatmul.mubr.bf16.gmra.mxu0 %v497
      %v959 = vpop.f32.mrf.mxu0
      %v960 = vadd.f32 %v895, %v959
      %v961 = vpop.f32.mrf.mxu0
      %v962 = vpop.f32.mrf.mxu0
      %v963 = vadd.f32 %v898, %v962
      %v964 = vpop.f32.mrf.mxu0
      %965 = vmatprep.mubr.bf16.mxu0 %v505
      %966 = vmatmul.mubr.bf16.gmra.mxu0 %v504
      %v967 = vpop.f32.mrf.mxu0
      %v968 = vadd.f32 %v903, %v967
      %v969 = vpop.f32.mrf.mxu0
      %v970 = vpop.f32.mrf.mxu0
      %v971 = vadd.f32 %v906, %v970
      %v972 = vpop.f32.mrf.mxu0
      %973 = vmatprep.mubr.bf16.mxu0 %v512
      %974 = vmatmul.mubr.bf16.gmra.mxu0 %v511
      %v975 = vpop.f32.mrf.mxu0
      %v976 = vadd.f32 %v911, %v975
      %v977 = vpop.f32.mrf.mxu0
      %v978 = vpop.f32.mrf.mxu0
      %v979 = vadd.f32 %v914, %v978
      %v980 = vpop.f32.mrf.mxu0
      %981 = vmatprep.mubr.bf16.mxu0 %v519
      %982 = vmatmul.mubr.bf16.gmra.mxu0 %v518
      %v983 = vpop.f32.mrf.mxu0
      %v984 = vadd.f32 %v919, %v983
      %v985 = vpop.f32.mrf.mxu0
      %v986 = vpop.f32.mrf.mxu0
      %v987 = vadd.f32 %v922, %v986
      %v988 = vpop.f32.mrf.mxu0
      %989 = vdwg.mxu0
      %990 = vmatprep.subr.bf16.mxu0 0
      %991 = vmatpush1.bf16.msra.mxu0 %v786
      %992 = vmatprep.subr.bf16.mxu0 0
      %993 = vmatpush1.bf16.msra.mxu0 %v785
      %994 = vmatprep.subr.bf16.mxu0 0
      %995 = vmatpush1.bf16.msra.mxu0 %v784
      %996 = vmatprep.subr.bf16.mxu0 0
      %997 = vmatpush1.bf16.msra.mxu0 %v783
      %998 = vmatprep.subr.bf16.mxu0 0
      %999 = vmatpush1.bf16.msra.mxu0 %v782
      %1000 = vmatprep.subr.bf16.mxu0 0
      %1001 = vmatpush1.bf16.msra.mxu0 %v781
      %1002 = vmatprep.subr.bf16.mxu0 0
      %1003 = vmatpush1.bf16.msra.mxu0 %v780
      %1004 = vmatprep.subr.bf16.mxu0 0
      %1005 = vmatpush1.bf16.msra.mxu0 %v779
      %1006 = vmatprep.subr.bf16.mxu0 0
      %1007 = vmatpush2.bf16.msra.mxu0 %v794
      %1008 = vmatprep.subr.bf16.mxu0 0
      %1009 = vmatpush2.bf16.msra.mxu0 %v793
      %1010 = vmatprep.subr.bf16.mxu0 0
      %1011 = vmatpush2.bf16.msra.mxu0 %v792
      %1012 = vmatprep.subr.bf16.mxu0 0
      %1013 = vmatpush2.bf16.msra.mxu0 %v791
      %1014 = vmatprep.subr.bf16.mxu0 0
      %1015 = vmatpush2.bf16.msra.mxu0 %v790
      %1016 = vmatprep.subr.bf16.mxu0 0
      %1017 = vmatpush2.bf16.msra.mxu0 %v789
      %1018 = vmatprep.subr.bf16.mxu0 0
      %1019 = vmatpush2.bf16.msra.mxu0 %v788
      %1020 = vmatprep.subr.bf16.mxu0 0
      %1021 = vmatpush2.bf16.msra.mxu0 %v787
      %1022 = vmatprep.mubr.bf16.mxu0 %v500
      %1023 = vmatmul.mubr.bf16.gmra.mxu0 %v499
      %v1024 = vpop.f32.mrf.mxu0
      %v1025 = vadd.f32 %v960, %v1024
      %v1026 = vpop.f32.mrf.mxu0
      %v1027 = vpop.f32.mrf.mxu0
      %v1028 = vadd.f32 %v963, %v1027
      %v1029 = vpop.f32.mrf.mxu0
      %1030 = vmatprep.mubr.bf16.mxu0 %v507
      %1031 = vmatmul.mubr.bf16.gmra.mxu0 %v506
      %v1032 = vpop.f32.mrf.mxu0
      %v1033 = vadd.f32 %v968, %v1032
      %v1034 = vpop.f32.mrf.mxu0
      %v1035 = vpop.f32.mrf.mxu0
      %v1036 = vadd.f32 %v971, %v1035
      %v1037 = vpop.f32.mrf.mxu0
      %1038 = vmatprep.mubr.bf16.mxu0 %v514
      %1039 = vmatmul.mubr.bf16.gmra.mxu0 %v513
      %v1040 = vpop.f32.mrf.mxu0
      %v1041 = vadd.f32 %v976, %v1040
      %v1042 = vpop.f32.mrf.mxu0
      %v1043 = vpop.f32.mrf.mxu0
      %v1044 = vadd.f32 %v979, %v1043
      %v1045 = vpop.f32.mrf.mxu0
      %1046 = vmatprep.mubr.bf16.mxu0 %v521
      %1047 = vmatmul.mubr.bf16.gmra.mxu0 %v520
      %v1048 = vpop.f32.mrf.mxu0
      %v1049 = vadd.f32 %v984, %v1048
      %v1050 = vpop.f32.mrf.mxu0
      %v1051 = vpop.f32.mrf.mxu0
      %v1052 = vadd.f32 %v987, %v1051
      %v1053 = vpop.f32.mrf.mxu0
      %1054 = vdwg.mxu0
      %1055 = vmatprep.subr.bf16.mxu0 0
      %1056 = vmatpush1.bf16.msra.mxu0 0
      %1057 = vmatprep.subr.bf16.mxu0 0
      %1058 = vmatpush1.bf16.msra.mxu0 0
      %1059 = vmatprep.subr.bf16.mxu0 0
      %1060 = vmatpush1.bf16.msra.mxu0 0
      %1061 = vmatprep.subr.bf16.mxu0 0
      %1062 = vmatpush1.bf16.msra.mxu0 0
      %1063 = vmatprep.subr.bf16.mxu0 0
      %1064 = vmatpush1.bf16.msra.mxu0 0
      %1065 = vmatprep.subr.bf16.mxu0 0
      %1066 = vmatpush1.bf16.msra.mxu0 0
      %1067 = vmatprep.subr.bf16.mxu0 0
      %1068 = vmatpush1.bf16.msra.mxu0 %v796
      %1069 = vmatprep.subr.bf16.mxu0 0
      %1070 = vmatpush1.bf16.msra.mxu0 %v795
      %1071 = vmatprep.subr.bf16.mxu0 0
      %1072 = vmatpush2.bf16.msra.mxu0 0
      %1073 = vmatprep.subr.bf16.mxu0 0
      %1074 = vmatpush2.bf16.msra.mxu0 0
      %1075 = vmatprep.subr.bf16.mxu0 0
      %1076 = vmatpush2.bf16.msra.mxu0 0
      %1077 = vmatprep.subr.bf16.mxu0 0
      %1078 = vmatpush2.bf16.msra.mxu0 0
      %1079 = vmatprep.subr.bf16.mxu0 0
      %1080 = vmatpush2.bf16.msra.mxu0 0
      %1081 = vmatprep.subr.bf16.mxu0 0
      %1082 = vmatpush2.bf16.msra.mxu0 0
      %1083 = vmatprep.subr.bf16.mxu0 0
      %1084 = vmatpush2.bf16.msra.mxu0 0
      %1085 = vmatprep.subr.bf16.mxu0 0
      %1086 = vmatpush2.bf16.msra.mxu0 0
      %1087 = vmatprep.mubr.bf16.mxu0 0
      %1088 = vmatmul.mubr.bf16.gmra.mxu0 %v849
      %v1089 = vpop.f32.mrf.mxu0
      %v1090 = vadd.f32 %v1025, %v1089
      %v1091 = vpop.f32.mrf.mxu0
      %v1092 = vpop.f32.mrf.mxu0
      %v1093 = vadd.f32 %v1028, %v1092
      %v1094 = vpop.f32.mrf.mxu0
      %1095 = vmatprep.mubr.bf16.mxu0 0
      %1096 = vmatmul.mubr.bf16.gmra.mxu0 %v852
      %v1097 = vpop.f32.mrf.mxu0
      %v1098 = vadd.f32 %v1033, %v1097
      %v1099 = vpop.f32.mrf.mxu0
      %v1100 = vpop.f32.mrf.mxu0
      %v1101 = vadd.f32 %v1036, %v1100
      %v1102 = vpop.f32.mrf.mxu0
      %1103 = vmatprep.mubr.bf16.mxu0 0
      %1104 = vmatmul.mubr.bf16.gmra.mxu0 %v855
      %v1105 = vpop.f32.mrf.mxu0
      %v1106 = vadd.f32 %v1041, %v1105
      %v1107 = vpop.f32.mrf.mxu0
      %v1108 = vpop.f32.mrf.mxu0
      %v1109 = vadd.f32 %v1044, %v1108
      %v1110 = vpop.f32.mrf.mxu0
      %1111 = vmatprep.mubr.bf16.mxu0 0
      %1112 = vmatmul.mubr.bf16.gmra.mxu0 %v858
      %v1113 = vpop.f32.mrf.mxu0
      %v1114 = vadd.f32 %v1049, %v1113
      %v1115 = vpop.f32.mrf.mxu0
      %v1116 = vpop.f32.mrf.mxu0
      %v1117 = vadd.f32 %v1052, %v1116
      %v1118 = vpop.f32.mrf.mxu0
      %1119 = vdwg.mxu0
      %v1120 = vpack.c.bf16 %v1093, %v1090
      %v1121 = vpack.c.bf16 %v1101, %v1098
      %v1122 = vpack.c.bf16 %v1109, %v1106
      %v1123 = vpack.c.bf16 %v1117, %v1114
      %v1128 = vunpack.c.l.b16 %v1120
      %v1129 = vunpack.c.h.b16 %v1120
      %v1130 = vunpack.c.l.b16 %v1121
      %v1131 = vunpack.c.h.b16 %v1121
      %v1132 = vunpack.c.l.b16 %v1122
      %v1133 = vunpack.c.h.b16 %v1122
      %v1134 = vunpack.c.l.b16 %v1123
      %v1135 = vunpack.c.h.b16 %v1123
      %v1136 = vpack.c.b16 %v1128, %v1128
      %v1137 = vpack.c.b16 %v1129, %v1129
      %v1138 = vpack.c.b16 %v1130, %v1130
      %v1139 = vpack.c.b16 %v1131, %v1131
      %v1140 = vpack.c.b16 %v1132, %v1132
      %v1141 = vpack.c.b16 %v1133, %v1133
      %v1142 = vpack.c.b16 %v1134, %v1134
      %v1143 = vpack.c.b16 %v1135, %v1135
      %1152 = vst [vmem:[%s260] sm:$0xf] %v1136
      %1153 = vst [vmem:[%s260 + $0x4] sm:$0xf] %v1137
      %1154 = vst [vmem:[%s260 + $0x8] sm:$0xf] %v1138
      %1155 = vst [vmem:[%s260 + $0xc] sm:$0xf] %v1139
      %1156 = vst [vmem:[%s260 + $0x10] sm:$0xf] %v1140
      %1157 = vst [vmem:[%s260 + $0x14] sm:$0xf] %v1141
      %1158 = vst [vmem:[%s260 + $0x18] sm:$0xf] %v1142
      %1159 = vst [vmem:[%s260 + $0x1c] sm:$0xf] %v1143
      %v1160 = vadd.f32 %v1090, %v1093
      %v1161 = vadd.f32 %v1160, %v1098
      %v1162 = vadd.f32 %v1161, %v1101
      %v1163 = vadd.f32 %v1162, %v1106
      %v1164 = vadd.f32 %v1163, %v1109
      %v1165 = vadd.f32 %v1164, %v1114
      %v1166 = vadd.f32 %v1165, %v1117
      %v1167 = vrot.slane %v1166, 4
      %v1168 = vadd.f32 %v1166, %v1167
      %v1169 = vrot.slane %v1168, 2
      %v1170 = vadd.f32 %v1168, %v1169
      %v1171 = vrot.slane %v1170, 1
      %v1172 = vadd.f32 %v1170, %v1171
      %1173 = vst [vmem:[%s267] sm:$0x1] %v1172
      %v1174 = vmul.f32 %v1090, %v1090
      %v1175 = vmul.f32 %v1093, %v1093
      %v1176 = vmul.f32 %v1098, %v1098
      %v1177 = vmul.f32 %v1101, %v1101
      %v1178 = vmul.f32 %v1106, %v1106
      %v1179 = vmul.f32 %v1109, %v1109
      %v1180 = vmul.f32 %v1114, %v1114
      %v1181 = vmul.f32 %v1117, %v1117
      %v1182 = vadd.f32 %v1174, %v1175
      %v1183 = vadd.f32 %v1182, %v1176
      %v1184 = vadd.f32 %v1183, %v1177
      %v1185 = vadd.f32 %v1184, %v1178
      %v1186 = vadd.f32 %v1185, %v1179
      %v1187 = vadd.f32 %v1186, %v1180
      %v1188 = vadd.f32 %v1187, %v1181
      %v1189 = vrot.slane %v1188, 4
      %v1190 = vadd.f32 %v1188, %v1189
      %v1191 = vrot.slane %v1190, 2
      %v1192 = vadd.f32 %v1190, %v1191
      %v1193 = vrot.slane %v1192, 1
      %v1194 = vadd.f32 %v1192, %v1193
      %1195 = vst [vmem:[%s273] sm:$0x1] %v1194
      %s1196 = smul.u32 8, %s20
      %p1197 = scmp.lt.s32.totalorder %s1196, 15
      %s1198 = scalar_select %p1197, %s1196, 15
      %p1199 = scmp.lt.s32.totalorder %s21, 0
      %s1200 = scalar_select %p1199, %s21, 0
      %s1201 = sadd.s32 %s1200, %s1198
      %s1202 = smul.addr %s1201, 4
      %s1203 = scalar_lea.vmem %s2, %s1202
      %p1204 = scmp.lt.s32.totalorder %s20, 1
      %s1205 = scalar_select %p1204, %s20, 1
      %p1206 = scmp.lt.s32.totalorder %s21, 0
      %s1207 = scalar_select %p1206, %s21, 0
      %s1208 = sadd.s32 %s1207, %s1205
      %s1209 = scalar_lea.vmem %s3, %s1208
      %p1210 = scmp.lt.s32.totalorder %s20, 1
      %s1211 = scalar_select %p1210, %s20, 1
      %p1212 = scmp.lt.s32.totalorder %s21, 0
      %s1213 = scalar_select %p1212, %s21, 0
      %s1214 = sadd.s32 %s1213, %s1211
      %s1215 = scalar_lea.vmem %s4, %s1214
      // Predicated region
      $region29: #{inception_forward.6} parent=27 // pred_check
        %p1216 = pneg %p100
      $region30: #{inception_forward.6} parent=27 // pred_check_branch
        %1218 = sbr.rel (%p1216) target = $region32
      $region31: #{inception_forward.6} parent=27 // pred_region
        %s1219 = smul.u32 8, %s20
      $region32: #{inception_forward.6} parent=27 // pred_fallthru
        _
      // Predicated region
      $region33: #{inception_forward.6} parent=27 // pred_check
        %p1220 = pneg %p128
      $region34: #{inception_forward.6} parent=27 // pred_check_branch
        %1222 = sbr.rel (%p1220) target = $region36
      $region35: #{inception_forward.6} parent=27 // pred_region
        _
      $region36: #{inception_forward.6} parent=27 // pred_fallthru
        _
      // Predicated region
      $region37: #{inception_forward.6} parent=27 // pred_check
        %p1223 = pneg %p156
      $region38: #{inception_forward.6} parent=27 // pred_check_branch
        %1225 = sbr.rel (%p1223) target = $region40
      $region39: #{inception_forward.6} parent=27 // pred_region
        _
      $region40: #{inception_forward.6} parent=27 // pred_fallthru
        _
    $region28: #{inception_forward.6} parent=5 // pred_fallthru
      _
    %p1226 = scmp.le.s32.totalorder 2, %s11
    // Predicated region
    $region41: #{inception_forward.6} parent=5 // pred_check
      %p1227 = pneg %p1226
    $region42: #{inception_forward.6} parent=5 // pred_check_branch
      %1229 = sbr.rel (%p1227) target = $region44
    $region43: #{inception_forward.6} parent=5 // pred_region
      %s1230 = ssub.s32 %s11, 2
      // Predicated region
      $region45: #{inception_forward.6} parent=43 // pred_check
        %p1231 = pneg %p106
      $region46: #{inception_forward.6} parent=43 // pred_check_branch
        %1233 = sbr.rel (%p1231) target = $region48
      $region47: #{inception_forward.6} parent=43 // pred_region
        %s1234 = smul.u32 8, %s22
        %p1235 = scmp.lt.s32.totalorder %s1234, 15
        %s1236 = scalar_select %p1235, %s1234, 15
        %p1237 = scmp.lt.s32.totalorder %s23, 0
        %s1238 = scalar_select %p1237, %s23, 0
        %s1239 = sadd.s32 %s1238, %s1236
        %s1240 = smul.addr %s1239, 4
        %s1241 = scalar_lea.vmem %s2, %s1240
      $region48: #{inception_forward.6} parent=43 // pred_fallthru
        _
      // Predicated region
      $region49: #{inception_forward.6} parent=43 // pred_check
        %p1242 = pneg %p134
      $region50: #{inception_forward.6} parent=43 // pred_check_branch
        %1244 = sbr.rel (%p1242) target = $region52
      $region51: #{inception_forward.6} parent=43 // pred_region
        %p1245 = scmp.lt.s32.totalorder %s22, 1
        %s1246 = scalar_select %p1245, %s22, 1
        %p1247 = scmp.lt.s32.totalorder %s23, 0
        %s1248 = scalar_select %p1247, %s23, 0
        %s1249 = sadd.s32 %s1248, %s1246
        %s1250 = scalar_lea.vmem %s3, %s1249
      $region52: #{inception_forward.6} parent=43 // pred_fallthru
        _
      // Predicated region
      $region53: #{inception_forward.6} parent=43 // pred_check
        %p1251 = pneg %p162
      $region54: #{inception_forward.6} parent=43 // pred_check_branch
        %1253 = sbr.rel (%p1251) target = $region56
      $region55: #{inception_forward.6} parent=43 // pred_region
        %p1254 = scmp.lt.s32.totalorder %s22, 1
        %s1255 = scalar_select %p1254, %s22, 1
        %p1256 = scmp.lt.s32.totalorder %s23, 0
        %s1257 = scalar_select %p1256, %s23, 0
        %s1258 = sadd.s32 %s1257, %s1255
        %s1259 = scalar_lea.vmem %s4, %s1258
      $region56: #{inception_forward.6} parent=43 // pred_fallthru
        _
    $region44: #{inception_forward.6} parent=5 // pred_fallthru
      _
  $region6: #{inception_forward.6} parent=0 // loop_footer
    %s15 = sadd.s32 1, %s11
  $region7: #{inception_forward.6} parent=0 // loop_footer_branch
    %10 = sbr.rel target = $region3
  $region8: #{inception_forward.6} parent=0 // loop_exit
    _

// kernel: inception_forward.7
$region0: #{inception_forward.7}
  #allocation0 [shape = 'u32[]', space=smem, size = 0x4, offset = 0x4, fixed_abs, tag = 'smem constant byte address 0x4 - core index']
  #allocation1 [shape = 'u32[144,128]{1,0:T(1,128)}', space=vmem, size = 0x12000, scoped, tag = 'internal scratch']
  %s0 = inlined_call_operand.vmem [shape: bf16[128,128], index: 0, kind: input, shape index: {}]
  %s1 = inlined_call_operand.vmem [shape: bf16[128,128], index: 1, kind: input, shape index: {}]
  %s2 = inlined_call_operand.vmem [shape: bf16[128,128], index: 2, kind: input, shape index: {}]
  %s3 = inlined_call_operand.vmem [shape: f32[1,32], index: 3, kind: input, shape index: {}]
  %s4 = inlined_call_operand.vmem [shape: f32[1,32], index: 4, kind: input, shape index: {}]
  %s5 = inlined_call_operand.vmem [shape: f32[1,16], index: 5, kind: input, shape index: {}]
  %s6 = inlined_call_operand.vmem [shape: f32[1,16], index: 6, kind: input, shape index: {}]
  %s7 = inlined_call_operand.vmem [shape: f32[1,16], index: 7, kind: input, shape index: {}]
  %s8 = inlined_call_operand.vmem [shape: f32[1,16], index: 8, kind: input, shape index: {}]
  %s9 = inlined_call_operand.vmem [shape: f32[1,64], index: 9, kind: input, shape index: {}]
  %s10 = inlined_call_operand.vmem [shape: f32[1,64], index: 10, kind: input, shape index: {}]
  %s11 = inlined_call_operand.hbm [shape: f32[128,64], index: 11, kind: output, shape index: {}]
  %s12 = sld [smem:[#allocation0]]
  $region77: #{inception_forward.7} parent=0
    _
  %s14 = ssub.s32 1, %s12
  %s15 = scalar_select 0, %s14, %s12
  $region1: #{inception_forward.7} parent=0
    #allocation2 [shape = 'u8[65536]{0}', space=vmem, size = 0x10000, scoped, tag = 'output window, operand 0']
    #allocation3 [shape = 's32[2]{0}', space=sflag, size = 0x8, scoped, tag = 'scoped memory for inception_forward.7']
    %16 = vsyncpa [#allocation3], 0
    %s17 = scalar_lea.sflag [#allocation3], 1
    %18 = vsyncpa %s17, 0
    loop: start=0, step=1, limit=4
    $region2: #{inception_forward.7} parent=1 // loop_pre_header
      _
    $region3: #{inception_forward.7} parent=1 // loop_header
      %s20 = sphi 0, %s24
      %p21 = scmp.ge.s32.totalorder %s20, 4
      %s30 = sphi 0, %s32
      %s33 = sphi 0, %s30
      %s34 = sphi 0, %s33
      %s50 = sphi 0, %s34
      %s56 = sphi 0, %s58
      %s59 = sphi 0, %s56
      %s60 = sphi 0, %s59
      %s76 = sphi 0, %s60
      %s82 = sphi 0, %s84
      %s85 = sphi 0, %s82
      %s86 = sphi 0, %s85
      %s102 = sphi 0, %s86
      %s106 = sphi 0, %s106
      %s108 = sphi 0, %s106
      %s109 = sphi 0, %s108
      %s123 = sphi 0, %s109
      %s127 = sphi 0, %s127
      %s129 = sphi 0, %s127
      %s130 = sphi 0, %s129
      %s144 = sphi 0, %s130
      %s148 = sphi 0, %s148
      %s150 = sphi 0, %s148
      %s151 = sphi 0, %s150
      %s165 = sphi 0, %s151
      %s169 = sphi 0, %s169
      %s171 = sphi 0, %s169
      %s172 = sphi 0, %s171
      %s186 = sphi 0, %s172
      %s190 = sphi 0, %s190
      %s192 = sphi 0, %s190
      %s193 = sphi 0, %s192
      %s207 = sphi 0, %s193
      %s211 = sphi 0, %s211
      %s213 = sphi 0, %s211
      %s214 = sphi 0, %s213
      %s228 = sphi 0, %s214
      %s232 = sphi 0, %s232
      %s234 = sphi 0, %s232
      %s235 = sphi 0, %s234
      %s249 = sphi 0, %s235
      %s253 = sphi 0, %s253
      %s255 = sphi 0, %s253
      %s256 = sphi 0, %s255
      %s270 = sphi 0, %s256
      %s276 = sphi 0, %s278
      %s279 = sphi 0, %s276
      %s280 = sphi 0, %s279
      %s296 = sphi 0, %s280
    $region4: #{inception_forward.7} parent=1 // loop_header_branch
      %23 = sbr.rel (%p21) target = $region8
    $region5: #{inception_forward.7} parent=1 // loop_body
      %s25 = ssub.s32 %s20, 1
      %s26 = ssub.s32 %s20, 2
      %s27 = sadd.s32 %s20, 1
      %s28 = ssub.s32 %s20, %s27
      %p29 = scmp.eq.s32.totalorder %s28, 0
      %s31 = sadd.s32 %s30, 1
      %s32 = scalar_select %p29, %s30, %s31
      %p35 = pneg %p29
      %p36 = scmp.eq.s32.totalorder %s20, 1
      %p37 = por %p35, %p36
      %p38 = scmp.ne.s32.totalorder %s30, %s33
      %p39 = scmp.eq.s32.totalorder %s20, 0
      %p40 = por %p38, %p39
      %p41 = scmp.ne.s32.totalorder %s30, %s33
      %p42 = scmp.eq.s32.totalorder %s25, 1
      %p43 = por %p41, %p42
      %p44 = scmp.ne.s32.totalorder %s33, %s34
      %p45 = scmp.eq.s32.totalorder %s25, 0
      %p46 = por %p44, %p45
      %p47 = scmp.ne.s32.totalorder %s33, %s34
      %p48 = scmp.eq.s32.totalorder %s26, 1
      %p49 = por %p47, %p48
      %p51 = scmp.ne.s32.totalorder %s34, %s50
      %p52 = scmp.eq.s32.totalorder %s26, 0
      %p53 = por %p51, %p52
      %s54 = ssub.s32 %s20, %s27
      %p55 = scmp.eq.s32.totalorder %s54, 0
      %s57 = sadd.s32 %s56, 1
      %s58 = scalar_select %p55, %s56, %s57
      %p61 = pneg %p55
      %p62 = scmp.eq.s32.totalorder %s20, 1
      %p63 = por %p61, %p62
      %p64 = scmp.ne.s32.totalorder %s56, %s59
      %p65 = scmp.eq.s32.totalorder %s20, 0
      %p66 = por %p64, %p65
      %p67 = scmp.ne.s32.totalorder %s56, %s59
      %p68 = scmp.eq.s32.totalorder %s25, 1
      %p69 = por %p67, %p68
      %p70 = scmp.ne.s32.totalorder %s59, %s60
      %p71 = scmp.eq.s32.totalorder %s25, 0
      %p72 = por %p70, %p71
      %p73 = scmp.ne.s32.totalorder %s59, %s60
      %p74 = scmp.eq.s32.totalorder %s26, 1
      %p75 = por %p73, %p74
      %p77 = scmp.ne.s32.totalorder %s60, %s76
      %p78 = scmp.eq.s32.totalorder %s26, 0
      %p79 = por %p77, %p78
      %s80 = ssub.s32 %s20, %s27
      %p81 = scmp.eq.s32.totalorder %s80, 0
      %s83 = sadd.s32 %s82, 1
      %s84 = scalar_select %p81, %s82, %s83
      %p87 = pneg %p81
      %p88 = scmp.eq.s32.totalorder %s20, 1
      %p89 = por %p87, %p88
      %p90 = scmp.ne.s32.totalorder %s82, %s85
      %p91 = scmp.eq.s32.totalorder %s20, 0
      %p92 = por %p90, %p91
      %p93 = scmp.ne.s32.totalorder %s82, %s85
      %p94 = scmp.eq.s32.totalorder %s25, 1
      %p95 = por %p93, %p94
      %p96 = scmp.ne.s32.totalorder %s85, %s86
      %p97 = scmp.eq.s32.totalorder %s25, 0
      %p98 = por %p96, %p97
      %p99 = scmp.ne.s32.totalorder %s85, %s86
      %p100 = scmp.eq.s32.totalorder %s26, 1
      %p101 = por %p99, %p100
      %p103 = scmp.ne.s32.totalorder %s86, %s102
      %p104 = scmp.eq.s32.totalorder %s26, 0
      %p105 = por %p103, %p104
      %s107 = sadd.s32 %s106, 1
      %p110 = scmp.eq.s32.totalorder %s20, 1
      %p111 = scmp.ne.s32.totalorder %s106, %s108
      %p112 = scmp.eq.s32.totalorder %s20, 0
      %p113 = por %p111, %p112
      %p114 = scmp.ne.s32.totalorder %s106, %s108
      %p115 = scmp.eq.s32.totalorder %s25, 1
      %p116 = por %p114, %p115
      %p117 = scmp.ne.s32.totalorder %s108, %s109
      %p118 = scmp.eq.s32.totalorder %s25, 0
      %p119 = por %p117, %p118
      %p120 = scmp.ne.s32.totalorder %s108, %s109
      %p121 = scmp.eq.s32.totalorder %s26, 1
      %p122 = por %p120, %p121
      %p124 = scmp.ne.s32.totalorder %s109, %s123
      %p125 = scmp.eq.s32.totalorder %s26, 0
      %p126 = por %p124, %p125
      %s128 = sadd.s32 %s127, 1
      %p131 = scmp.eq.s32.totalorder %s20, 1
      %p132 = scmp.ne.s32.totalorder %s127, %s129
      %p133 = scmp.eq.s32.totalorder %s20, 0
      %p134 = por %p132, %p133
      %p135 = scmp.ne.s32.totalorder %s127, %s129
      %p136 = scmp.eq.s32.totalorder %s25, 1
      %p137 = por %p135, %p136
      %p138 = scmp.ne.s32.totalorder %s129, %s130
      %p139 = scmp.eq.s32.totalorder %s25, 0
      %p140 = por %p138, %p139
      %p141 = scmp.ne.s32.totalorder %s129, %s130
      %p142 = scmp.eq.s32.totalorder %s26, 1
      %p143 = por %p141, %p142
      %p145 = scmp.ne.s32.totalorder %s130, %s144
      %p146 = scmp.eq.s32.totalorder %s26, 0
      %p147 = por %p145, %p146
      %s149 = sadd.s32 %s148, 1
      %p152 = scmp.eq.s32.totalorder %s20, 1
      %p153 = scmp.ne.s32.totalorder %s148, %s150
      %p154 = scmp.eq.s32.totalorder %s20, 0
      %p155 = por %p153, %p154
      %p156 = scmp.ne.s32.totalorder %s148, %s150
      %p157 = scmp.eq.s32.totalorder %s25, 1
      %p158 = por %p156, %p157
      %p159 = scmp.ne.s32.totalorder %s150, %s151
      %p160 = scmp.eq.s32.totalorder %s25, 0
      %p161 = por %p159, %p160
      %p162 = scmp.ne.s32.totalorder %s150, %s151
      %p163 = scmp.eq.s32.totalorder %s26, 1
      %p164 = por %p162, %p163
      %p166 = scmp.ne.s32.totalorder %s151, %s165
      %p167 = scmp.eq.s32.totalorder %s26, 0
      %p168 = por %p166, %p167
      %s170 = sadd.s32 %s169, 1
      %p173 = scmp.eq.s32.totalorder %s20, 1
      %p174 = scmp.ne.s32.totalorder %s169, %s171
      %p175 = scmp.eq.s32.totalorder %s20, 0
      %p176 = por %p174, %p175
      %p177 = scmp.ne.s32.totalorder %s169, %s171
      %p178 = scmp.eq.s32.totalorder %s25, 1
      %p179 = por %p177, %p178
      %p180 = scmp.ne.s32.totalorder %s171, %s172
      %p181 = scmp.eq.s32.totalorder %s25, 0
      %p182 = por %p180, %p181
      %p183 = scmp.ne.s32.totalorder %s171, %s172
      %p184 = scmp.eq.s32.totalorder %s26, 1
      %p185 = por %p183, %p184
      %p187 = scmp.ne.s32.totalorder %s172, %s186
      %p188 = scmp.eq.s32.totalorder %s26, 0
      %p189 = por %p187, %p188
      %s191 = sadd.s32 %s190, 1
      %p194 = scmp.eq.s32.totalorder %s20, 1
      %p195 = scmp.ne.s32.totalorder %s190, %s192
      %p196 = scmp.eq.s32.totalorder %s20, 0
      %p197 = por %p195, %p196
      %p198 = scmp.ne.s32.totalorder %s190, %s192
      %p199 = scmp.eq.s32.totalorder %s25, 1
      %p200 = por %p198, %p199
      %p201 = scmp.ne.s32.totalorder %s192, %s193
      %p202 = scmp.eq.s32.totalorder %s25, 0
      %p203 = por %p201, %p202
      %p204 = scmp.ne.s32.totalorder %s192, %s193
      %p205 = scmp.eq.s32.totalorder %s26, 1
      %p206 = por %p204, %p205
      %p208 = scmp.ne.s32.totalorder %s193, %s207
      %p209 = scmp.eq.s32.totalorder %s26, 0
      %p210 = por %p208, %p209
      %s212 = sadd.s32 %s211, 1
      %p215 = scmp.eq.s32.totalorder %s20, 1
      %p216 = scmp.ne.s32.totalorder %s211, %s213
      %p217 = scmp.eq.s32.totalorder %s20, 0
      %p218 = por %p216, %p217
      %p219 = scmp.ne.s32.totalorder %s211, %s213
      %p220 = scmp.eq.s32.totalorder %s25, 1
      %p221 = por %p219, %p220
      %p222 = scmp.ne.s32.totalorder %s213, %s214
      %p223 = scmp.eq.s32.totalorder %s25, 0
      %p224 = por %p222, %p223
      %p225 = scmp.ne.s32.totalorder %s213, %s214
      %p226 = scmp.eq.s32.totalorder %s26, 1
      %p227 = por %p225, %p226
      %p229 = scmp.ne.s32.totalorder %s214, %s228
      %p230 = scmp.eq.s32.totalorder %s26, 0
      %p231 = por %p229, %p230
      %s233 = sadd.s32 %s232, 1
      %p236 = scmp.eq.s32.totalorder %s20, 1
      %p237 = scmp.ne.s32.totalorder %s232, %s234
      %p238 = scmp.eq.s32.totalorder %s20, 0
      %p239 = por %p237, %p238
      %p240 = scmp.ne.s32.totalorder %s232, %s234
      %p241 = scmp.eq.s32.totalorder %s25, 1
      %p242 = por %p240, %p241
      %p243 = scmp.ne.s32.totalorder %s234, %s235
      %p244 = scmp.eq.s32.totalorder %s25, 0
      %p245 = por %p243, %p244
      %p246 = scmp.ne.s32.totalorder %s234, %s235
      %p247 = scmp.eq.s32.totalorder %s26, 1
      %p248 = por %p246, %p247
      %p250 = scmp.ne.s32.totalorder %s235, %s249
      %p251 = scmp.eq.s32.totalorder %s26, 0
      %p252 = por %p250, %p251
      %s254 = sadd.s32 %s253, 1
      %p257 = scmp.eq.s32.totalorder %s20, 1
      %p258 = scmp.ne.s32.totalorder %s253, %s255
      %p259 = scmp.eq.s32.totalorder %s20, 0
      %p260 = por %p258, %p259
      %p261 = scmp.ne.s32.totalorder %s253, %s255
      %p262 = scmp.eq.s32.totalorder %s25, 1
      %p263 = por %p261, %p262
      %p264 = scmp.ne.s32.totalorder %s255, %s256
      %p265 = scmp.eq.s32.totalorder %s25, 0
      %p266 = por %p264, %p265
      %p267 = scmp.ne.s32.totalorder %s255, %s256
      %p268 = scmp.eq.s32.totalorder %s26, 1
      %p269 = por %p267, %p268
      %p271 = scmp.ne.s32.totalorder %s256, %s270
      %p272 = scmp.eq.s32.totalorder %s26, 0
      %p273 = por %p271, %p272
      %s274 = ssub.s32 %s20, %s27
      %p275 = scmp.eq.s32.totalorder %s274, 0
      %s277 = sadd.s32 %s276, 1
      %s278 = scalar_select %p275, %s276, %s277
      %p281 = pneg %p275
      %p282 = scmp.eq.s32.totalorder %s20, 1
      %p283 = por %p281, %p282
      %p284 = scmp.ne.s32.totalorder %s276, %s279
      %p285 = scmp.eq.s32.totalorder %s20, 0
      %p286 = por %p284, %p285
      %p287 = scmp.ne.s32.totalorder %s276, %s279
      %p288 = scmp.eq.s32.totalorder %s25, 1
      %p289 = por %p287, %p288
      %p290 = scmp.ne.s32.totalorder %s279, %s280
      %p291 = scmp.eq.s32.totalorder %s25, 0
      %p292 = por %p290, %p291
      %p293 = scmp.ne.s32.totalorder %s279, %s280
      %p294 = scmp.eq.s32.totalorder %s26, 1
      %p295 = por %p293, %p294
      %p297 = scmp.ne.s32.totalorder %s280, %s296
      %p298 = scmp.eq.s32.totalorder %s26, 0
      %p299 = por %p297, %p298
      %p300 = scmp.le.s32.totalorder 1, %s20
      %p301 = scmp.lt.s32.totalorder %s20, 3
      %p302 = pnand %p300, %p301
      %p303 = pneg %p302
      // Predicated region
      $region9: #{inception_forward.7} parent=5 // pred_check
        _
      $region10: #{inception_forward.7} parent=5 // pred_check_branch
        %305 = sbr.rel (%p302) target = $region12
      $region11: #{inception_forward.7} parent=5 // pred_region
        %s306 = ssub.s32 %s20, 1
        // Predicated region
        $region13: #{inception_forward.7} parent=11 // pred_check
          %p307 = pneg %p119
        $region14: #{inception_forward.7} parent=11 // pred_check_branch
          %309 = sbr.rel (%p307) target = $region16
        $region15: #{inception_forward.7} parent=11 // pred_region
          _
        $region16: #{inception_forward.7} parent=11 // pred_fallthru
          _
        // Predicated region
        $region17: #{inception_forward.7} parent=11 // pred_check
          %p310 = pneg %p140
        $region18: #{inception_forward.7} parent=11 // pred_check_branch
          %312 = sbr.rel (%p310) target = $region20
        $region19: #{inception_forward.7} parent=11 // pred_region
          _
        $region20: #{inception_forward.7} parent=11 // pred_fallthru
          _
        // Predicated region
        $region21: #{inception_forward.7} parent=11 // pred_check
          %p313 = pneg %p161
        $region22: #{inception_forward.7} parent=11 // pred_check_branch
          %315 = sbr.rel (%p313) target = $region24
        $region23: #{inception_forward.7} parent=11 // pred_region
          _
        $region24: #{inception_forward.7} parent=11 // pred_fallthru
          _
        // Predicated region
        $region25: #{inception_forward.7} parent=11 // pred_check
          %p316 = pneg %p182
        $region26: #{inception_forward.7} parent=11 // pred_check_branch
          %318 = sbr.rel (%p316) target = $region28
        $region27: #{inception_forward.7} parent=11 // pred_region
          _
        $region28: #{inception_forward.7} parent=11 // pred_fallthru
          _
        // Predicated region
        $region29: #{inception_forward.7} parent=11 // pred_check
          %p319 = pneg %p203
        $region30: #{inception_forward.7} parent=11 // pred_check_branch
          %321 = sbr.rel (%p319) target = $region32
        $region31: #{inception_forward.7} parent=11 // pred_region
          _
        $region32: #{inception_forward.7} parent=11 // pred_fallthru
          _
        // Predicated region
        $region33: #{inception_forward.7} parent=11 // pred_check
          %p322 = pneg %p224
        $region34: #{inception_forward.7} parent=11 // pred_check_branch
          %324 = sbr.rel (%p322) target = $region36
        $region35: #{inception_forward.7} parent=11 // pred_region
          _
        $region36: #{inception_forward.7} parent=11 // pred_fallthru
          _
        // Predicated region
        $region37: #{inception_forward.7} parent=11 // pred_check
          %p325 = pneg %p245
        $region38: #{inception_forward.7} parent=11 // pred_check_branch
          %327 = sbr.rel (%p325) target = $region40
        $region39: #{inception_forward.7} parent=11 // pred_region
          _
        $region40: #{inception_forward.7} parent=11 // pred_fallthru
          _
        // Predicated region
        $region41: #{inception_forward.7} parent=11 // pred_check
          %p328 = pneg %p266
        $region42: #{inception_forward.7} parent=11 // pred_check_branch
          %330 = sbr.rel (%p328) target = $region44
        $region43: #{inception_forward.7} parent=11 // pred_region
          _
        $region44: #{inception_forward.7} parent=11 // pred_fallthru
          _
      $region12: #{inception_forward.7} parent=5 // pred_fallthru
        _
      %p331 = scmp.lt.s32.totalorder %s20, 2
      // Predicated region
      $region45: #{inception_forward.7} parent=5 // pred_check
        %p332 = pneg %p331
      $region46: #{inception_forward.7} parent=5 // pred_check_branch
        %334 = sbr.rel (%p332) target = $region48
      $region47: #{inception_forward.7} parent=5 // pred_region
        // Predicated region
        $region49: #{inception_forward.7} parent=47 // pred_check
          %p335 = pneg %p40
        $region50: #{inception_forward.7} parent=47 // pred_check_branch
          %337 = sbr.rel (%p335) target = $region52
        $region51: #{inception_forward.7} parent=47 // pred_region
          %s338 = smul.u32 8, %s20
          %p339 = scmp.lt.s32.totalorder %s338, 15
          %s340 = scalar_select %p339, %s338, 15
          %s341 = smul.addr %s340, 4
          %s342 = scalar_lea.vmem %s0, %s341
          %s343 = smul.u32 8, %s20
        $region52: #{inception_forward.7} parent=47 // pred_fallthru
          _
        // Predicated region
        $region53: #{inception_forward.7} parent=47 // pred_check
          %p344 = pneg %p66
        $region54: #{inception_forward.7} parent=47 // pred_check_branch
          %346 = sbr.rel (%p344) target = $region56
        $region55: #{inception_forward.7} parent=47 // pred_region
          %s347 = smul.u32 8, %s20
          %p348 = scmp.lt.s32.totalorder %s347, 15
          %s349 = scalar_select %p348, %s347, 15
          %s350 = smul.addr %s349, 4
          %s351 = scalar_lea.vmem %s1, %s350
          %s352 = smul.u32 8, %s20
        $region56: #{inception_forward.7} parent=47 // pred_fallthru
          _
        // Predicated region
        $region57: #{inception_forward.7} parent=47 // pred_check
          %p353 = pneg %p92
        $region58: #{inception_forward.7} parent=47 // pred_check_branch
          %355 = sbr.rel (%p353) target = $region60
        $region59: #{inception_forward.7} parent=47 // pred_region
          %s356 = smul.u32 8, %s20
          %p357 = scmp.lt.s32.totalorder %s356, 15
          %s358 = scalar_select %p357, %s356, 15
          %s359 = smul.addr %s358, 4
          %s360 = scalar_lea.vmem %s2, %s359
          %s361 = smul.u32 8, %s20
        $region60: #{inception_forward.7} parent=47 // pred_fallthru
          _
      $region48: #{inception_forward.7} parent=5 // pred_fallthru
        _
      %p362 = scmp.le.s32.totalorder 1, %s20
      %p363 = scmp.lt.s32.totalorder %s20, 3
      %p364 = pnand %p362, %p363
      %p365 = pneg %p364
      // Predicated region
      $region61: #{inception_forward.7} parent=5 // pred_check
        _
      $region62: #{inception_forward.7} parent=5 // pred_check_branch
        %367 = sbr.rel (%p364) target = $region64
      $region63: #{inception_forward.7} parent=5 // pred_region
        %s368 = ssub.s32 %s20, 1
        %s369 = smul.u32 8, %s25
        %p370 = scmp.lt.s32.totalorder %s369, 15
        %s371 = scalar_select %p370, %s369, 15
        %s372 = smul.addr %s371, 4
        %s373 = scalar_lea.vmem %s0, %s372
        %p374 = pneg %p46
        %p375 = pneg %p43
        %s376 = smul.u32 8, %s25
        %p377 = scmp.lt.s32.totalorder %s376, 15
        %s378 = scalar_select %p377, %s376, 15
        %s379 = smul.addr %s378, 4
        %s380 = scalar_lea.vmem %s1, %s379
        %p381 = pneg %p72
        %p382 = pneg %p69
        %s383 = smul.u32 8, %s25
        %p384 = scmp.lt.s32.totalorder %s383, 15
        %s385 = scalar_select %p384, %s383, 15
        %s386 = smul.addr %s385, 4
        %s387 = scalar_lea.vmem %s2, %s386
        %p388 = pneg %p98
        %p389 = pneg %p95
        %p390 = pneg %p119
        %p391 = pneg %p116
        %p392 = pneg %p140
        %p393 = pneg %p137
        %p394 = pneg %p161
        %p395 = pneg %p158
        %p396 = pneg %p182
        %p397 = pneg %p179
        %p398 = pneg %p203
        %p399 = pneg %p200
        %p400 = pneg %p224
        %p401 = pneg %p221
        %p402 = pneg %p245
        %p403 = pneg %p242
        %p404 = pneg %p266
        %p405 = pneg %p263
        %p406 = pneg %p292
        %p407 = pneg %p289
        %s408 = sand.u32 %s279, 1
        %s409 = scalar_lea.sflag [#allocation3], %s408
        %s410 = sand.u32 %s279, 1
        %s411 = smul.addr %s410, 64
        %s412 = scalar_lea.vmem [#allocation2], %s411
        %s413 = smul.u32 8, %s25
        %p414 = scmp.lt.s32.totalorder %s413, 15
        %s415 = scalar_select %p414, %s413, 15
        %s416 = smul.addr %s415, 4
        %s417 = scalar_lea.vmem %s0, %s416
        %s418 = smul.u32 8, %s25
        %s419 = smul.u32 8, %s25
        %p420 = scmp.lt.s32.totalorder %s419, 15
        %s421 = scalar_select %p420, %s419, 15
        %s422 = smul.addr %s421, 4
        %s423 = scalar_lea.vmem %s1, %s422
        %s424 = smul.u32 8, %s25
        %s425 = smul.u32 8, %s25
        %p426 = scmp.lt.s32.totalorder %s425, 15
        %s427 = scalar_select %p426, %s425, 15
        %s428 = smul.addr %s427, 4
        %s429 = scalar_lea.vmem %s2, %s428
        %s430 = smul.u32 8, %s25
        %s431 = smul.u32 8, %s25
        %v432 = vld [vmem:[%s417] sm:$0xf]
        %v433 = vld [vmem:[%s417 + $0x4] sm:$0xf]
        %v434 = vld [vmem:[%s417 + $0x8] sm:$0xf]
        %v435 = vld [vmem:[%s417 + $0xc] sm:$0xf]
        %v436 = vld [vmem:[%s417 + $0x10] sm:$0xf]
        %v437 = vld [vmem:[%s417 + $0x14] sm:$0xf]
        %v438 = vld [vmem:[%s417 + $0x18] sm:$0xf]
        %v439 = vld [vmem:[%s417 + $0x1c] sm:$0xf]
        %v440 = vunpack.c.l.bf16 %v432
        %v441 = vunpack.c.l.bf16 %v433
        %v442 = vunpack.c.l.bf16 %v434
        %v443 = vunpack.c.l.bf16 %v435
        %v444 = vunpack.c.l.bf16 %v436
        %v445 = vunpack.c.l.bf16 %v437
        %v446 = vunpack.c.l.bf16 %v438
        %v447 = vunpack.c.l.bf16 %v439
        %v448 = vld [vmem:[%s3] sm:$0x1]
        %v450 = vlaneseq
        %v451 = vshrl.u32 %v450, 7
        %v452 = vsub.s32 0, %v451
        %v453 = vrot.slane %v448, %v452
        %v455 = vmul.f32 %v440, %v453
        %v456 = vmul.f32 %v441, %v453
        %v457 = vmul.f32 %v442, %v453
        %v458 = vmul.f32 %v443, %v453
        %v459 = vmul.f32 %v444, %v453
        %v460 = vmul.f32 %v445, %v453
        %v461 = vmul.f32 %v446, %v453
        %v462 = vmul.f32 %v447, %v453
        %v463 = vld [vmem:[%s4] sm:$0x1]
        %v465 = vlaneseq
        %v466 = vshrl.u32 %v465, 7
        %v467 = vsub.s32 0, %v466
        %v468 = vrot.slane %v463, %v467
        %v470 = vadd.f32 %v455, %v468
        %v471 = vadd.f32 %v456, %v468
        %v472 = vadd.f32 %v457, %v468
        %v473 = vadd.f32 %v458, %v468
        %v474 = vadd.f32 %v459, %v468
        %v475 = vadd.f32 %v460, %v468
        %v476 = vadd.f32 %v461, %v468
        %v477 = vadd.f32 %v462, %v468
        %v478 = vmax.f32 %v470, 0.0
        %v479 = vmax.f32 %v471, 0.0
        %v480 = vmax.f32 %v472, 0.0
        %v481 = vmax.f32 %v473, 0.0
        %v482 = vmax.f32 %v474, 0.0
        %v483 = vmax.f32 %v475, 0.0
        %v484 = vmax.f32 %v476, 0.0
        %v485 = vmax.f32 %v477, 0.0
        %v486 = vld [vmem:[%s423] sm:$0xf]
        %v487 = vld [vmem:[%s423 + $0x4] sm:$0xf]
        %v488 = vld [vmem:[%s423 + $0x8] sm:$0xf]
        %v489 = vld [vmem:[%s423 + $0xc] sm:$0xf]
        %v490 = vld [vmem:[%s423 + $0x10] sm:$0xf]
        %v491 = vld [vmem:[%s423 + $0x14] sm:$0xf]
        %v492 = vld [vmem:[%s423 + $0x18] sm:$0xf]
        %v493 = vld [vmem:[%s423 + $0x1c] sm:$0xf]
        %v494 = vunpack.c.l.bf16 %v486
        %v495 = vunpack.c.l.bf16 %v487
        %v496 = vunpack.c.l.bf16 %v488
        %v497 = vunpack.c.l.bf16 %v489
        %v498 = vunpack.c.l.bf16 %v490
        %v499 = vunpack.c.l.bf16 %v491
        %v500 = vunpack.c.l.bf16 %v492
        %v501 = vunpack.c.l.bf16 %v493
        %v502 = vld [vmem:[%s5] sm:$0x1]
        %v504 = vlaneseq
        %v505 = vshrl.u32 %v504, 7
        %v506 = vsub.s32 0, %v505
        %v507 = vrot.slane %v502, %v506
        %v509 = vmul.f32 %v494, %v507
        %v510 = vmul.f32 %v495, %v507
        %v511 = vmul.f32 %v496, %v507
        %v512 = vmul.f32 %v497, %v507
        %v513 = vmul.f32 %v498, %v507
        %v514 = vmul.f32 %v499, %v507
        %v515 = vmul.f32 %v500, %v507
        %v516 = vmul.f32 %v501, %v507
        %v517 = vld [vmem:[%s6] sm:$0x1]
        %v519 = vlaneseq
        %v520 = vshrl.u32 %v519, 7
        %v521 = vsub.s32 0, %v520
        %v522 = vrot.slane %v517, %v521
        %v524 = vadd.f32 %v509, %v522
        %v525 = vadd.f32 %v510, %v522
        %v526 = vadd.f32 %v511, %v522
        %v527 = vadd.f32 %v512, %v522
        %v528 = vadd.f32 %v513, %v522
        %v529 = vadd.f32 %v514, %v522
        %v530 = vadd.f32 %v515, %v522
        %v531 = vadd.f32 %v516, %v522
        %v532 = vmax.f32 %v524, 0.0
        %v533 = vmax.f32 %v525, 0.0
        %v534 = vmax.f32 %v526, 0.0
        %v535 = vmax.f32 %v527, 0.0
        %v536 = vmax.f32 %v528, 0.0
        %v537 = vmax.f32 %v529, 0.0
        %v538 = vmax.f32 %v530, 0.0
        %v539 = vmax.f32 %v531, 0.0
        %v540 = vld [vmem:[%s429] sm:$0xf]
        %v541 = vld [vmem:[%s429 + $0x4] sm:$0xf]
        %v542 = vld [vmem:[%s429 + $0x8] sm:$0xf]
        %v543 = vld [vmem:[%s429 + $0xc] sm:$0xf]
        %v544 = vld [vmem:[%s429 + $0x10] sm:$0xf]
        %v545 = vld [vmem:[%s429 + $0x14] sm:$0xf]
        %v546 = vld [vmem:[%s429 + $0x18] sm:$0xf]
        %v547 = vld [vmem:[%s429 + $0x1c] sm:$0xf]
        %v548 = vunpack.c.l.bf16 %v540
        %v549 = vunpack.c.l.bf16 %v541
        %v550 = vunpack.c.l.bf16 %v542
        %v551 = vunpack.c.l.bf16 %v543
        %v552 = vunpack.c.l.bf16 %v544
        %v553 = vunpack.c.l.bf16 %v545
        %v554 = vunpack.c.l.bf16 %v546
        %v555 = vunpack.c.l.bf16 %v547
        %v556 = vld [vmem:[%s7] sm:$0x1]
        %v558 = vlaneseq
        %v559 = vshrl.u32 %v558, 7
        %v560 = vsub.s32 0, %v559
        %v561 = vrot.slane %v556, %v560
        %v563 = vmul.f32 %v548, %v561
        %v564 = vmul.f32 %v549, %v561
        %v565 = vmul.f32 %v550, %v561
        %v566 = vmul.f32 %v551, %v561
        %v567 = vmul.f32 %v552, %v561
        %v568 = vmul.f32 %v553, %v561
        %v569 = vmul.f32 %v554, %v561
        %v570 = vmul.f32 %v555, %v561
        %v571 = vld [vmem:[%s8] sm:$0x1]
        %v573 = vlaneseq
        %v574 = vshrl.u32 %v573, 7
        %v575 = vsub.s32 0, %v574
        %v576 = vrot.slane %v571, %v575
        %v578 = vadd.f32 %v563, %v576
        %v579 = vadd.f32 %v564, %v576
        %v580 = vadd.f32 %v565, %v576
        %v581 = vadd.f32 %v566, %v576
        %v582 = vadd.f32 %v567, %v576
        %v583 = vadd.f32 %v568, %v576
        %v584 = vadd.f32 %v569, %v576
        %v585 = vadd.f32 %v570, %v576
        %v586 = vmax.f32 %v578, 0.0
        %v587 = vmax.f32 %v579, 0.0
        %v588 = vmax.f32 %v580, 0.0
        %v589 = vmax.f32 %v581, 0.0
        %v590 = vmax.f32 %v582, 0.0
        %v591 = vmax.f32 %v583, 0.0
        %v592 = vmax.f32 %v584, 0.0
        %v593 = vmax.f32 %v585, 0.0
        %v594 = vld [vmem:[%s9] sm:$0x1]
        %v596 = vlaneseq
        %v597 = vshrl.u32 %v596, 7
        %v598 = vsub.s32 0, %v597
        %v599 = vrot.slane %v594, %v598
        %600 = vrot.lane.b32.xlu0 %v599, 32
        %v601 = vpop.permute.xlu0 %600
        %v603 = vmul.f32 %v440, %v601
        %v604 = vmul.f32 %v441, %v601
        %v605 = vmul.f32 %v442, %v601
        %v606 = vmul.f32 %v443, %v601
        %v607 = vmul.f32 %v444, %v601
        %v608 = vmul.f32 %v445, %v601
        %v609 = vmul.f32 %v446, %v601
        %v610 = vmul.f32 %v447, %v601
        %v611 = vld [vmem:[%s10] sm:$0x1]
        %v613 = vlaneseq
        %v614 = vshrl.u32 %v613, 7
        %v615 = vsub.s32 0, %v614
        %v616 = vrot.slane %v611, %v615
        %617 = vrot.lane.b32.xlu0 %v616, 32
        %v618 = vpop.permute.xlu0 %617
        %v620 = vadd.f32 %v603, %v618
        %v621 = vadd.f32 %v604, %v618
        %v622 = vadd.f32 %v605, %v618
        %v623 = vadd.f32 %v606, %v618
        %v624 = vadd.f32 %v607, %v618
        %v625 = vadd.f32 %v608, %v618
        %v626 = vadd.f32 %v609, %v618
        %v627 = vadd.f32 %v610, %v618
        %636 = vrot.lane.b32.xlu0 %v532, 32
        %v637 = vpop.permute.xlu0 %636
        %638 = vrot.lane.b32.xlu0 %v533, 32
        %v639 = vpop.permute.xlu0 %638
        %640 = vrot.lane.b32.xlu0 %v534, 32
        %v641 = vpop.permute.xlu0 %640
        %642 = vrot.lane.b32.xlu0 %v535, 32
        %v643 = vpop.permute.xlu0 %642
        %644 = vrot.lane.b32.xlu0 %v536, 32
        %v645 = vpop.permute.xlu0 %644
        %646 = vrot.lane.b32.xlu0 %v537, 32
        %v647 = vpop.permute.xlu0 %646
        %648 = vrot.lane.b32.xlu0 %v538, 32
        %v649 = vpop.permute.xlu0 %648
        %650 = vrot.lane.b32.xlu0 %v539, 32
        %v651 = vpop.permute.xlu0 %650
        %668 = vrot.lane.b32.xlu0 %v586, 48
        %v669 = vpop.permute.xlu0 %668
        %670 = vrot.lane.b32.xlu0 %v587, 48
        %v671 = vpop.permute.xlu0 %670
        %672 = vrot.lane.b32.xlu0 %v588, 48
        %v673 = vpop.permute.xlu0 %672
        %674 = vrot.lane.b32.xlu0 %v589, 48
        %v675 = vpop.permute.xlu0 %674
        %676 = vrot.lane.b32.xlu0 %v590, 48
        %v677 = vpop.permute.xlu0 %676
        %678 = vrot.lane.b32.xlu0 %v591, 48
        %v679 = vpop.permute.xlu0 %678
        %680 = vrot.lane.b32.xlu0 %v592, 48
        %v681 = vpop.permute.xlu0 %680
        %682 = vrot.lane.b32.xlu0 %v593, 48
        %v683 = vpop.permute.xlu0 %682
        %vm692 = vcmask 261120
        %v693 = vsel %vm692, %v478, %v637
        %v694 = vsel %vm692, %v479, %v639
        %v695 = vsel %vm692, %v480, %v641
        %v696 = vsel %vm692, %v481, %v643
        %v697 = vsel %vm692, %v482, %v645
        %v698 = vsel %vm692, %v483, %v647
        %v699 = vsel %vm692, %v484, %v649
        %v700 = vsel %vm692, %v485, %v651
        %vm701 = vcmask 392192
        %v702 = vsel %vm701, %v693, %v669
        %v703 = vsel %vm701, %v694, %v671
        %v704 = vsel %vm701, %v695, %v673
        %v705 = vsel %vm701, %v696, %v675
        %v706 = vsel %vm701, %v697, %v677
        %v707 = vsel %vm701, %v698, %v679
        %v708 = vsel %vm701, %v699, %v681
        %v709 = vsel %vm701, %v700, %v683
        %718 = vrot.lane.b32.xlu0 %v620, 96
        %v719 = vpop.permute.xlu0 %718
        %720 = vrot.lane.b32.xlu0 %v621, 96
        %v721 = vpop.permute.xlu0 %720
        %722 = vrot.lane.b32.xlu0 %v622, 96
        %v723 = vpop.permute.xlu0 %722
        %724 = vrot.lane.b32.xlu0 %v623, 96
        %v725 = vpop.permute.xlu0 %724
        %726 = vrot.lane.b32.xlu0 %v624, 96
        %v727 = vpop.permute.xlu0 %726
        %728 = vrot.lane.b32.xlu0 %v625, 96
        %v729 = vpop.permute.xlu0 %728
        %730 = vrot.lane.b32.xlu0 %v626, 96
        %v731 = vpop.permute.xlu0 %730
        %732 = vrot.lane.b32.xlu0 %v627, 96
        %v733 = vpop.permute.xlu0 %732
        %v742 = vadd.f32 %v702, %v719
        %v743 = vadd.f32 %v703, %v721
        %v744 = vadd.f32 %v704, %v723
        %v745 = vadd.f32 %v705, %v725
        %v746 = vadd.f32 %v706, %v727
        %v747 = vadd.f32 %v707, %v729
        %v748 = vadd.f32 %v708, %v731
        %v749 = vadd.f32 %v709, %v733
        %vm750 = vcmask 523264
        %751 = vst.msk [vmem:[%s412] sm:$0xff] %vm750, %v742
        %752 = vst.msk [vmem:[%s412 + $0x8] sm:$0xff] %vm750, %v743
        %753 = vst.msk [vmem:[%s412 + $0x10] sm:$0xff] %vm750, %v744
        %754 = vst.msk [vmem:[%s412 + $0x18] sm:$0xff] %vm750, %v745
        %755 = vst.msk [vmem:[%s412 + $0x20] sm:$0xff] %vm750, %v746
        %756 = vst.msk [vmem:[%s412 + $0x28] sm:$0xff] %vm750, %v747
        %757 = vst.msk [vmem:[%s412 + $0x30] sm:$0xff] %vm750, %v748
        %758 = vst.msk [vmem:[%s412 + $0x38] sm:$0xff] %vm750, %v749
        %s759 = sand.u32 %s279, 1
        %s760 = scalar_lea.sflag [#allocation3], %s759
        %s761 = sand.u32 %s279, 1
        %s762 = smul.addr %s761, 64
        %s763 = scalar_lea.vmem [#allocation2], %s762
        // Predicated region
        $region65: #{inception_forward.7} parent=63 // pred_check
          %p764 = pneg %p289
        $region66: #{inception_forward.7} parent=63 // pred_check_branch
          %766 = sbr.rel (%p764) target = $region68
        $region67: #{inception_forward.7} parent=63 // pred_region
          %s767 = smul.u32 8, %s25
          %s769 = ssub.s32 1024, 1024
          %770 = vsyncadd %s760, %s769
          %s771 = smul.addr %s767, 128
          %s772 = scalar_lea.hbm %s11, %s771
          %s773 = sshll.u32 %s763, 4
          %s774 = int_to_ptr.vmem [resolvable:$true] %s773
          %779 = dma.vmem_to_hbm [thread:$0]  %s774, 1024, %s772, %s760, 128, 128, 8
        $region68: #{inception_forward.7} parent=63 // pred_fallthru
          _
      $region64: #{inception_forward.7} parent=5 // pred_fallthru
        _
      %p780 = scmp.le.s32.totalorder 2, %s20
      // Predicated region
      $region69: #{inception_forward.7} parent=5 // pred_check
        %p781 = pneg %p780
      $region70: #{inception_forward.7} parent=5 // pred_check_branch
        %783 = sbr.rel (%p781) target = $region72
      $region71: #{inception_forward.7} parent=5 // pred_region
        %s784 = ssub.s32 %s20, 2
        // Predicated region
        $region73: #{inception_forward.7} parent=71 // pred_check
          %p785 = pneg %p295
        $region74: #{inception_forward.7} parent=71 // pred_check_branch
          %787 = sbr.rel (%p785) target = $region76
        $region75: #{inception_forward.7} parent=71 // pred_region
          %s788 = sand.u32 %s280, 1
          %s789 = scalar_lea.sflag [#allocation3], %s788
          %s790 = sand.u32 %s280, 1
          %s791 = smul.addr %s790, 64
          %s792 = scalar_lea.vmem [#allocation2], %s791
          %793 = dma.done %s789, 1024
        $region76: #{inception_forward.7} parent=71 // pred_fallthru
          _
      $region72: #{inception_forward.7} parent=5 // pred_fallthru
        _
    $region6: #{inception_forward.7} parent=1 // loop_footer
      %s24 = sadd.s32 1, %s20
    $region7: #{inception_forward.7} parent=1 // loop_footer_branch
      %19 = sbr.rel target = $region3
    $region8: #{inception_forward.7} parent=1 // loop_exit
      _
    %794 = vsyncpa [#allocation3], 1
    %s795 = scalar_lea.sflag [#allocation3], 1
    %796 = vsyncpa %s795, 1

</llo_original>
